<compile_context>
chip_gen: v5e
topology: v5e:2x2
jax: 0.10.0
libtpu: 0.0.40
codegen_flags: <defaults>
</compile_context>

<pallas_src>
import jax
import jax.numpy as jnp
from jax import lax
from jax.experimental import pallas as pl
from jax.experimental.pallas import tpu as pltpu

H = 16
W = 16
HW = H * W
C_IN = 2             # conv1 in_channels
C_MID = 16           # hidden channels
C1_PAD = 8           # conv1 input channels zero-padded to sublane minimum
C_PAD = 16           # conv2..conv4 input channels
NUM_CLASSES = 1
TAPS = tuple((dh, dw) for dh in (-1, 0, 1) for dw in (-1, 0, 1))


def cnn_skip_kernel(x_ref, mask_ref, pool_ref, w1_ref, wm_ref, out_ref):
    """One grid step = one batch block of BB images laid out along lanes."""
    L = x_ref.shape[1]                                    # BB * HW

    def conv(inp, weight_row):
        # 9 accumulating MXU matmuls; RHS is the lane-shifted, boundary-masked
        # input fed straight from vregs (no tap-stack scratch round trip).
        acc = None
        for t, (dh, dw) in enumerate(TAPS):
            off = dh * W + dw
            # shifted[:, p] = inp[:, (p + off) % L]; masked where off-image.
            shifted = inp if off == 0 else pltpu.roll(inp, (-off) % L, 1)
            if off != 0:   # centre tap mask is all-ones -> skip the multiply
                shifted = shifted * mask_ref[pl.ds(t, 1), :]   # (1, L) bcast
            part = jnp.dot(weight_row(t), shifted,
                           preferred_element_type=jnp.float32)
            acc = part if acc is None else acc + part
        return acc

    x = x_ref[...]                                        # (C1_PAD, L)
    x1 = conv(x, lambda t: w1_ref[t])                     # conv1
    a = jnp.maximum(x1, 0.0)                              # relu1
    x2 = conv(a, lambda t: wm_ref[t])                     # conv2
    a = jnp.maximum(x2 + x1, 0.0)                         # relu2(skip)
    x3 = conv(a, lambda t: wm_ref[9 + t])                 # conv3
    a = jnp.maximum(x3 + x2, 0.0)                         # relu3(skip)
    x4 = conv(a, lambda t: wm_ref[18 + t])                # conv4
    a = jnp.maximum(x4 + x3, 0.0)                         # relu4(skip)

    # Adaptive average pool (1x1) == trans-B matmul with the lane-dense
    # (bb, L) per-image averaging matrix: (C_MID, L) x (bb, L)^T -> (C_MID, bb)
    out_ref[0, :, :] = lax.dot_general(
        a, pool_ref[...],
        dimension_numbers=(((1,), (1,)), ((), ())),
        preferred_element_type=jnp.float32)


def _tap_weights(w_oihw, cin_pad):
    """PyTorch OIHW conv weight -> (9, Cout, cin_pad); row t matches TAPS[t]."""
    o, i = w_oihw.shape[0], w_oihw.shape[1]
    w = jnp.pad(w_oihw.astype(jnp.float32),
                ((0, 0), (0, cin_pad - i), (0, 0), (0, 0)))
    return jnp.transpose(w, (2, 3, 0, 1)).reshape(9, o, cin_pad)


def _build_mask(bb):
    """(9, bb*HW) f32 0/1 boundary mask, one row per tap (shared over chans)."""
    lane = jnp.arange(bb * HW, dtype=jnp.int32)
    pp = lane % HW
    hh = pp // W
    ww = pp % W
    rows = []
    for dh, dw in TAPS:
        v = ((hh + dh >= 0) & (hh + dh < H) & (ww + dw >= 0) & (ww + dw < W))
        rows.append(v.astype(jnp.float32))
    return jnp.stack(rows, axis=0)


def _build_pool(bb):
    """(bb, bb*HW) lane-dense averaging matrix: P[b,p] = 1/HW iff p//HW == b."""
    lane = jnp.arange(bb * HW, dtype=jnp.int32)
    return (jnp.arange(bb, dtype=jnp.int32)[:, None] ==
            (lane[None, :] // HW)).astype(jnp.float32) / HW


def cnn_with_skip(x_nchw, params, *, block_batch=32):
    """x_nchw: (N, 2, H, W) float32 (PyTorch NCHW). Returns (N, num_classes)."""
    n = x_nchw.shape[0]
    w1, w2, w3, w4, wfc = params

    # images per grid step; keep n_blocks >= 2 whenever n >= 2 so the
    # "parallel" batch axis can shard across both v7x TensorCores.
    if n <= 1:
        bb = 1
    else:
        bb = max(1, min(block_batch, (n + 1) // 2))
    n_blocks = -(-n // bb)
    n_pad = n_blocks * bb
    L = bb * HW                                           # multiple of 256

    x = x_nchw.astype(jnp.float32)
    x = jnp.pad(x, ((0, n_pad - n), (0, C1_PAD - C_IN), (0, 0), (0, 0)))
    # channels on sublanes, [image | h | w] row-major flattened on lanes
    # TODO(synk): this relayout is one extra HBM round trip of the input;
    #             hoist it out of hot loops / rely on XLA fusion if reused.
    x_flat = jnp.transpose(x, (1, 0, 2, 3)).reshape(C1_PAD, n_pad * HW)

    mask = _build_mask(bb)                                # (9, L)
    pool = _build_pool(bb)                                # (bb, L)
    w1s = _tap_weights(w1, C1_PAD)                        # (9, 16, 8)
    wms = jnp.concatenate([_tap_weights(w, C_PAD) for w in (w2, w3, w4)],
                          axis=0)                         # (27, 16, 16)

    pooled = pl.pallas_call(
        cnn_skip_kernel,
        out_shape=jax.ShapeDtypeStruct((n_blocks, C_MID, bb), jnp.float32),
        grid_spec=pltpu.PrefetchScalarGridSpec(
            num_scalar_prefetch=0,
            grid=(n_blocks,),
            in_specs=[
                pl.BlockSpec((C1_PAD, L), lambda b: (0, b)),            # x
                pl.BlockSpec((9, L), lambda b: (0, 0)),                 # masks
                pl.BlockSpec((bb, L), lambda b: (0, 0)),                # pool
                pl.BlockSpec((9, C_MID, C1_PAD), lambda b: (0, 0, 0)),  # w1
                pl.BlockSpec((27, C_MID, C_PAD), lambda b: (0, 0, 0)),  # w2..w4
            ],
            out_specs=pl.BlockSpec((1, C_MID, bb), lambda b: (b, 0, 0)),
        ),
        compiler_params=pltpu.CompilerParams(
            dimension_semantics=("parallel",),        # blocks are independent
            vmem_limit_bytes=32 * 1024 * 1024),
    )(x_flat, mask, pool, w1s, wms)

    # (n_blocks, C_MID, bb) -> (n_pad, C_MID) -> drop padding -> final FC (XLA)
    pooled_all = jnp.transpose(pooled, (0, 2, 1)).reshape(n_pad, C_MID)[:n]
    return pooled_all @ wfc.T                             # (N, num_classes)


def reference_forward(x_nchw, params):
    """Pure-JAX reference mirroring the PyTorch module (bias=False everywhere)."""
    w1, w2, w3, w4, wfc = params
    dn = ("NCHW", "OIHW", "NCHW")

    def conv(x, w):
        return lax.conv_general_dilated(x, w, (1, 1), ((1, 1), (1, 1)),
                                        dimension_numbers=dn,
                                        precision=lax.Precision.HIGHEST)

    x1 = conv(x_nchw, w1)
    a = jax.nn.relu(x1)
    x2 = conv(a, w2)
    a = jax.nn.relu(x2 + x1)
    x3 = conv(a, w3)
    a = jax.nn.relu(x3 + x2)
    x4 = conv(a, w4)
    a = jax.nn.relu(x4 + x3)
    pooled = jnp.mean(a, axis=(2, 3))                     # (N, 16)
    return jnp.dot(pooled, wfc.T, precision=lax.Precision.HIGHEST)


if __name__ == "__main__":
    key = jax.random.PRNGKey(0)
    ks = jax.random.split(key, 6)
    N = 2

    x = jax.random.normal(ks[0], (N, C_IN, H, W), dtype=jnp.float32)
    # Deterministic synthetic parameters (PyTorch shapes: OIHW conv, (out,in)
    # fc; all convs and the fc are bias=False in the original module).
    w1 = jax.random.normal(ks[1], (C_MID, C_IN, 3, 3), jnp.float32) * 0.2
    w2 = jax.random.normal(ks[2], (C_MID, C_MID, 3, 3), jnp.float32) * 0.1
    w3 = jax.random.normal(ks[3], (C_MID, C_MID, 3, 3), jnp.float32) * 0.1
    w4 = jax.random.normal(ks[4], (C_MID, C_MID, 3, 3), jnp.float32) * 0.1
    wfc = jax.random.normal(ks[5], (NUM_CLASSES, C_MID), jnp.float32) * 0.1
    params = (w1, w2, w3, w4, wfc)

    out = jax.block_until_ready(cnn_with_skip(x, params))
    ref = reference_forward(x, params)

    assert out.shape == (N, NUM_CLASSES), out.shape
    assert jnp.allclose(out, ref, atol=2e-3, rtol=2e-3), (out, ref)
    print("KERNEL_OK")
</pallas_src>

<mosaic_0001>
module attributes {stable_mosaic.version = 11 : i64} {
  func.func @cnn_skip_kernel(%arg0: i32, %arg1: memref<8x256xf32, #tpu.memory_space<vmem>>, %arg2: memref<9x256xf32, #tpu.memory_space<vmem>>, %arg3: memref<1x256xf32, #tpu.memory_space<vmem>>, %arg4: memref<9x16x8xf32, #tpu.memory_space<vmem>>, %arg5: memref<27x16x16xf32, #tpu.memory_space<vmem>>, %arg6: memref<1x16x1xf32, #tpu.memory_space<vmem>>) attributes {dimension_semantics = [#tpu.dimension_semantics<parallel>], iteration_bounds = array<i64: 2>, scalar_prefetch = 0 : i64, scratch_operands = 0 : i64, tpu.core_type = #tpu.core_type<tc>, window_params = [{transform_indices = @transform_0, window_bounds = array<i64: 8, 256>}, {pipeline_mode = #tpu.pipeline_mode<synchronous>, transform_indices = @transform_1, window_bounds = array<i64: 9, 256>}, {pipeline_mode = #tpu.pipeline_mode<synchronous>, transform_indices = @transform_2, window_bounds = array<i64: 1, 256>}, {pipeline_mode = #tpu.pipeline_mode<synchronous>, transform_indices = @transform_3, window_bounds = array<i64: 9, 16, 8>}, {pipeline_mode = #tpu.pipeline_mode<synchronous>, transform_indices = @transform_4, window_bounds = array<i64: 27, 16, 16>}, {transform_indices = @transform_5, window_bounds = array<i64: 1, 16, 1>}]} {
    %c0 = arith.constant 0 : index
    %c0_0 = arith.constant 0 : index
    %0 = vector.load %arg1[%c0, %c0_0] : memref<8x256xf32, #tpu.memory_space<vmem>>, vector<8x256xf32>
    %c17_i32 = arith.constant 17 : i32
    %1 = tpu.dynamic_rotate %0 by %c17_i32 dim 1 : vector<8x256xf32>, i32 -> vector<8x256xf32>
    %c0_1 = arith.constant 0 : index
    %c0_2 = arith.constant 0 : index
    %2 = vector.load %arg2[%c0_1, %c0_2] : memref<9x256xf32, #tpu.memory_space<vmem>>, vector<1x256xf32>
    %3 = vector.broadcast %2 : vector<1x256xf32> to vector<8x256xf32>
    %4 = arith.mulf %1, %3 : vector<8x256xf32>
    %c0_3 = arith.constant 0 : index
    %c0_4 = arith.constant 0 : index
    %c0_5 = arith.constant 0 : index
    %5 = vector.load %arg4[%c0_3, %c0_4, %c0_5] : memref<9x16x8xf32, #tpu.memory_space<vmem>>, vector<1x16x8xf32>
    %6 = vector.shape_cast %5 : vector<1x16x8xf32> to vector<16x8xf32>
    %cst = arith.constant dense<0.000000e+00> : vector<16x256xf32>
    %7 = tpu.matmul %6, %4, %cst {dimension_numbers = #tpu.dot_dimension_numbers<[1], [0], [0], [1], [0, 0, 1, 1], [], []>} : vector<16x8xf32>, vector<8x256xf32>, vector<16x256xf32> -> vector<16x256xf32>
    %c16_i32 = arith.constant 16 : i32
    %8 = tpu.dynamic_rotate %0 by %c16_i32 dim 1 : vector<8x256xf32>, i32 -> vector<8x256xf32>
    %c1 = arith.constant 1 : index
    %c0_6 = arith.constant 0 : index
    %9 = vector.load %arg2[%c1, %c0_6] : memref<9x256xf32, #tpu.memory_space<vmem>>, vector<1x256xf32>
    %10 = vector.broadcast %9 : vector<1x256xf32> to vector<8x256xf32>
    %11 = arith.mulf %8, %10 : vector<8x256xf32>
    %c1_7 = arith.constant 1 : index
    %c0_8 = arith.constant 0 : index
    %c0_9 = arith.constant 0 : index
    %12 = vector.load %arg4[%c1_7, %c0_8, %c0_9] : memref<9x16x8xf32, #tpu.memory_space<vmem>>, vector<1x16x8xf32>
    %13 = vector.shape_cast %12 : vector<1x16x8xf32> to vector<16x8xf32>
    %cst_10 = arith.constant dense<0.000000e+00> : vector<16x256xf32>
    %14 = tpu.matmul %13, %11, %cst_10 {dimension_numbers = #tpu.dot_dimension_numbers<[1], [0], [0], [1], [0, 0, 1, 1], [], []>} : vector<16x8xf32>, vector<8x256xf32>, vector<16x256xf32> -> vector<16x256xf32>
    %15 = arith.addf %7, %14 : vector<16x256xf32>
    %c15_i32 = arith.constant 15 : i32
    %16 = tpu.dynamic_rotate %0 by %c15_i32 dim 1 : vector<8x256xf32>, i32 -> vector<8x256xf32>
    %c2 = arith.constant 2 : index
    %c0_11 = arith.constant 0 : index
    %17 = vector.load %arg2[%c2, %c0_11] : memref<9x256xf32, #tpu.memory_space<vmem>>, vector<1x256xf32>
    %18 = vector.broadcast %17 : vector<1x256xf32> to vector<8x256xf32>
    %19 = arith.mulf %16, %18 : vector<8x256xf32>
    %c2_12 = arith.constant 2 : index
    %c0_13 = arith.constant 0 : index
    %c0_14 = arith.constant 0 : index
    %20 = vector.load %arg4[%c2_12, %c0_13, %c0_14] : memref<9x16x8xf32, #tpu.memory_space<vmem>>, vector<1x16x8xf32>
    %21 = vector.shape_cast %20 : vector<1x16x8xf32> to vector<16x8xf32>
    %cst_15 = arith.constant dense<0.000000e+00> : vector<16x256xf32>
    %22 = tpu.matmul %21, %19, %cst_15 {dimension_numbers = #tpu.dot_dimension_numbers<[1], [0], [0], [1], [0, 0, 1, 1], [], []>} : vector<16x8xf32>, vector<8x256xf32>, vector<16x256xf32> -> vector<16x256xf32>
    %23 = arith.addf %15, %22 : vector<16x256xf32>
    %c1_i32 = arith.constant 1 : i32
    %24 = tpu.dynamic_rotate %0 by %c1_i32 dim 1 : vector<8x256xf32>, i32 -> vector<8x256xf32>
    %c3 = arith.constant 3 : index
    %c0_16 = arith.constant 0 : index
    %25 = vector.load %arg2[%c3, %c0_16] : memref<9x256xf32, #tpu.memory_space<vmem>>, vector<1x256xf32>
    %26 = vector.broadcast %25 : vector<1x256xf32> to vector<8x256xf32>
    %27 = arith.mulf %24, %26 : vector<8x256xf32>
    %c3_17 = arith.constant 3 : index
    %c0_18 = arith.constant 0 : index
    %c0_19 = arith.constant 0 : index
    %28 = vector.load %arg4[%c3_17, %c0_18, %c0_19] : memref<9x16x8xf32, #tpu.memory_space<vmem>>, vector<1x16x8xf32>
    %29 = vector.shape_cast %28 : vector<1x16x8xf32> to vector<16x8xf32>
    %cst_20 = arith.constant dense<0.000000e+00> : vector<16x256xf32>
    %30 = tpu.matmul %29, %27, %cst_20 {dimension_numbers = #tpu.dot_dimension_numbers<[1], [0], [0], [1], [0, 0, 1, 1], [], []>} : vector<16x8xf32>, vector<8x256xf32>, vector<16x256xf32> -> vector<16x256xf32>
    %31 = arith.addf %23, %30 : vector<16x256xf32>
    %c4 = arith.constant 4 : index
    %c0_21 = arith.constant 0 : index
    %c0_22 = arith.constant 0 : index
    %32 = vector.load %arg4[%c4, %c0_21, %c0_22] : memref<9x16x8xf32, #tpu.memory_space<vmem>>, vector<1x16x8xf32>
    %33 = vector.shape_cast %32 : vector<1x16x8xf32> to vector<16x8xf32>
    %cst_23 = arith.constant dense<0.000000e+00> : vector<16x256xf32>
    %34 = tpu.matmul %33, %0, %cst_23 {dimension_numbers = #tpu.dot_dimension_numbers<[1], [0], [0], [1], [0, 0, 1, 1], [], []>} : vector<16x8xf32>, vector<8x256xf32>, vector<16x256xf32> -> vector<16x256xf32>
    %35 = arith.addf %31, %34 : vector<16x256xf32>
    %c255_i32 = arith.constant 255 : i32
    %36 = tpu.dynamic_rotate %0 by %c255_i32 dim 1 : vector<8x256xf32>, i32 -> vector<8x256xf32>
    %c5 = arith.constant 5 : index
    %c0_24 = arith.constant 0 : index
    %37 = vector.load %arg2[%c5, %c0_24] : memref<9x256xf32, #tpu.memory_space<vmem>>, vector<1x256xf32>
    %38 = vector.broadcast %37 : vector<1x256xf32> to vector<8x256xf32>
    %39 = arith.mulf %36, %38 : vector<8x256xf32>
    %c5_25 = arith.constant 5 : index
    %c0_26 = arith.constant 0 : index
    %c0_27 = arith.constant 0 : index
    %40 = vector.load %arg4[%c5_25, %c0_26, %c0_27] : memref<9x16x8xf32, #tpu.memory_space<vmem>>, vector<1x16x8xf32>
    %41 = vector.shape_cast %40 : vector<1x16x8xf32> to vector<16x8xf32>
    %cst_28 = arith.constant dense<0.000000e+00> : vector<16x256xf32>
    %42 = tpu.matmul %41, %39, %cst_28 {dimension_numbers = #tpu.dot_dimension_numbers<[1], [0], [0], [1], [0, 0, 1, 1], [], []>} : vector<16x8xf32>, vector<8x256xf32>, vector<16x256xf32> -> vector<16x256xf32>
    %43 = arith.addf %35, %42 : vector<16x256xf32>
    %c241_i32 = arith.constant 241 : i32
    %44 = tpu.dynamic_rotate %0 by %c241_i32 dim 1 : vector<8x256xf32>, i32 -> vector<8x256xf32>
    %c6 = arith.constant 6 : index
    %c0_29 = arith.constant 0 : index
    %45 = vector.load %arg2[%c6, %c0_29] : memref<9x256xf32, #tpu.memory_space<vmem>>, vector<1x256xf32>
    %46 = vector.broadcast %45 : vector<1x256xf32> to vector<8x256xf32>
    %47 = arith.mulf %44, %46 : vector<8x256xf32>
    %c6_30 = arith.constant 6 : index
    %c0_31 = arith.constant 0 : index
    %c0_32 = arith.constant 0 : index
    %48 = vector.load %arg4[%c6_30, %c0_31, %c0_32] : memref<9x16x8xf32, #tpu.memory_space<vmem>>, vector<1x16x8xf32>
    %49 = vector.shape_cast %48 : vector<1x16x8xf32> to vector<16x8xf32>
    %cst_33 = arith.constant dense<0.000000e+00> : vector<16x256xf32>
    %50 = tpu.matmul %49, %47, %cst_33 {dimension_numbers = #tpu.dot_dimension_numbers<[1], [0], [0], [1], [0, 0, 1, 1], [], []>} : vector<16x8xf32>, vector<8x256xf32>, vector<16x256xf32> -> vector<16x256xf32>
    %51 = arith.addf %43, %50 : vector<16x256xf32>
    %c240_i32 = arith.constant 240 : i32
    %52 = tpu.dynamic_rotate %0 by %c240_i32 dim 1 : vector<8x256xf32>, i32 -> vector<8x256xf32>
    %c7 = arith.constant 7 : index
    %c0_34 = arith.constant 0 : index
    %53 = vector.load %arg2[%c7, %c0_34] : memref<9x256xf32, #tpu.memory_space<vmem>>, vector<1x256xf32>
    %54 = vector.broadcast %53 : vector<1x256xf32> to vector<8x256xf32>
    %55 = arith.mulf %52, %54 : vector<8x256xf32>
    %c7_35 = arith.constant 7 : index
    %c0_36 = arith.constant 0 : index
    %c0_37 = arith.constant 0 : index
    %56 = vector.load %arg4[%c7_35, %c0_36, %c0_37] : memref<9x16x8xf32, #tpu.memory_space<vmem>>, vector<1x16x8xf32>
    %57 = vector.shape_cast %56 : vector<1x16x8xf32> to vector<16x8xf32>
    %cst_38 = arith.constant dense<0.000000e+00> : vector<16x256xf32>
    %58 = tpu.matmul %57, %55, %cst_38 {dimension_numbers = #tpu.dot_dimension_numbers<[1], [0], [0], [1], [0, 0, 1, 1], [], []>} : vector<16x8xf32>, vector<8x256xf32>, vector<16x256xf32> -> vector<16x256xf32>
    %59 = arith.addf %51, %58 : vector<16x256xf32>
    %c239_i32 = arith.constant 239 : i32
    %60 = tpu.dynamic_rotate %0 by %c239_i32 dim 1 : vector<8x256xf32>, i32 -> vector<8x256xf32>
    %c8 = arith.constant 8 : index
    %c0_39 = arith.constant 0 : index
    %61 = vector.load %arg2[%c8, %c0_39] : memref<9x256xf32, #tpu.memory_space<vmem>>, vector<1x256xf32>
    %62 = vector.broadcast %61 : vector<1x256xf32> to vector<8x256xf32>
    %63 = arith.mulf %60, %62 : vector<8x256xf32>
    %c8_40 = arith.constant 8 : index
    %c0_41 = arith.constant 0 : index
    %c0_42 = arith.constant 0 : index
    %64 = vector.load %arg4[%c8_40, %c0_41, %c0_42] : memref<9x16x8xf32, #tpu.memory_space<vmem>>, vector<1x16x8xf32>
    %65 = vector.shape_cast %64 : vector<1x16x8xf32> to vector<16x8xf32>
    %cst_43 = arith.constant dense<0.000000e+00> : vector<16x256xf32>
    %66 = tpu.matmul %65, %63, %cst_43 {dimension_numbers = #tpu.dot_dimension_numbers<[1], [0], [0], [1], [0, 0, 1, 1], [], []>} : vector<16x8xf32>, vector<8x256xf32>, vector<16x256xf32> -> vector<16x256xf32>
    %67 = arith.addf %59, %66 : vector<16x256xf32>
    %cst_44 = arith.constant 0.000000e+00 : f32
    %68 = vector.broadcast %cst_44 : f32 to vector<16x256xf32>
    %69 = arith.maximumf %67, %68 : vector<16x256xf32>
    %c17_i32_45 = arith.constant 17 : i32
    %70 = tpu.dynamic_rotate %69 by %c17_i32_45 dim 1 : vector<16x256xf32>, i32 -> vector<16x256xf32>
    %c0_46 = arith.constant 0 : index
    %c0_47 = arith.constant 0 : index
    %71 = vector.load %arg2[%c0_46, %c0_47] : memref<9x256xf32, #tpu.memory_space<vmem>>, vector<1x256xf32>
    %72 = vector.broadcast %71 : vector<1x256xf32> to vector<16x256xf32>
    %73 = arith.mulf %70, %72 : vector<16x256xf32>
    %c0_48 = arith.constant 0 : index
    %c0_49 = arith.constant 0 : index
    %c0_50 = arith.constant 0 : index
    %74 = vector.load %arg5[%c0_48, %c0_49, %c0_50] : memref<27x16x16xf32, #tpu.memory_space<vmem>>, vector<1x16x16xf32>
    %75 = vector.shape_cast %74 : vector<1x16x16xf32> to vector<16x16xf32>
    %cst_51 = arith.constant dense<0.000000e+00> : vector<16x256xf32>
    %76 = tpu.matmul %75, %73, %cst_51 {dimension_numbers = #tpu.dot_dimension_numbers<[1], [0], [0], [1], [0, 0, 1, 1], [], []>} : vector<16x16xf32>, vector<16x256xf32>, vector<16x256xf32> -> vector<16x256xf32>
    %c16_i32_52 = arith.constant 16 : i32
    %77 = tpu.dynamic_rotate %69 by %c16_i32_52 dim 1 : vector<16x256xf32>, i32 -> vector<16x256xf32>
    %c1_53 = arith.constant 1 : index
    %c0_54 = arith.constant 0 : index
    %78 = vector.load %arg2[%c1_53, %c0_54] : memref<9x256xf32, #tpu.memory_space<vmem>>, vector<1x256xf32>
    %79 = vector.broadcast %78 : vector<1x256xf32> to vector<16x256xf32>
    %80 = arith.mulf %77, %79 : vector<16x256xf32>
    %c1_55 = arith.constant 1 : index
    %c0_56 = arith.constant 0 : index
    %c0_57 = arith.constant 0 : index
    %81 = vector.load %arg5[%c1_55, %c0_56, %c0_57] : memref<27x16x16xf32, #tpu.memory_space<vmem>>, vector<1x16x16xf32>
    %82 = vector.shape_cast %81 : vector<1x16x16xf32> to vector<16x16xf32>
    %cst_58 = arith.constant dense<0.000000e+00> : vector<16x256xf32>
    %83 = tpu.matmul %82, %80, %cst_58 {dimension_numbers = #tpu.dot_dimension_numbers<[1], [0], [0], [1], [0, 0, 1, 1], [], []>} : vector<16x16xf32>, vector<16x256xf32>, vector<16x256xf32> -> vector<16x256xf32>
    %84 = arith.addf %76, %83 : vector<16x256xf32>
    %c15_i32_59 = arith.constant 15 : i32
    %85 = tpu.dynamic_rotate %69 by %c15_i32_59 dim 1 : vector<16x256xf32>, i32 -> vector<16x256xf32>
    %c2_60 = arith.constant 2 : index
    %c0_61 = arith.constant 0 : index
    %86 = vector.load %arg2[%c2_60, %c0_61] : memref<9x256xf32, #tpu.memory_space<vmem>>, vector<1x256xf32>
    %87 = vector.broadcast %86 : vector<1x256xf32> to vector<16x256xf32>
    %88 = arith.mulf %85, %87 : vector<16x256xf32>
    %c2_62 = arith.constant 2 : index
    %c0_63 = arith.constant 0 : index
    %c0_64 = arith.constant 0 : index
    %89 = vector.load %arg5[%c2_62, %c0_63, %c0_64] : memref<27x16x16xf32, #tpu.memory_space<vmem>>, vector<1x16x16xf32>
    %90 = vector.shape_cast %89 : vector<1x16x16xf32> to vector<16x16xf32>
    %cst_65 = arith.constant dense<0.000000e+00> : vector<16x256xf32>
    %91 = tpu.matmul %90, %88, %cst_65 {dimension_numbers = #tpu.dot_dimension_numbers<[1], [0], [0], [1], [0, 0, 1, 1], [], []>} : vector<16x16xf32>, vector<16x256xf32>, vector<16x256xf32> -> vector<16x256xf32>
    %92 = arith.addf %84, %91 : vector<16x256xf32>
    %c1_i32_66 = arith.constant 1 : i32
    %93 = tpu.dynamic_rotate %69 by %c1_i32_66 dim 1 : vector<16x256xf32>, i32 -> vector<16x256xf32>
    %c3_67 = arith.constant 3 : index
    %c0_68 = arith.constant 0 : index
    %94 = vector.load %arg2[%c3_67, %c0_68] : memref<9x256xf32, #tpu.memory_space<vmem>>, vector<1x256xf32>
    %95 = vector.broadcast %94 : vector<1x256xf32> to vector<16x256xf32>
    %96 = arith.mulf %93, %95 : vector<16x256xf32>
    %c3_69 = arith.constant 3 : index
    %c0_70 = arith.constant 0 : index
    %c0_71 = arith.constant 0 : index
    %97 = vector.load %arg5[%c3_69, %c0_70, %c0_71] : memref<27x16x16xf32, #tpu.memory_space<vmem>>, vector<1x16x16xf32>
    %98 = vector.shape_cast %97 : vector<1x16x16xf32> to vector<16x16xf32>
    %cst_72 = arith.constant dense<0.000000e+00> : vector<16x256xf32>
    %99 = tpu.matmul %98, %96, %cst_72 {dimension_numbers = #tpu.dot_dimension_numbers<[1], [0], [0], [1], [0, 0, 1, 1], [], []>} : vector<16x16xf32>, vector<16x256xf32>, vector<16x256xf32> -> vector<16x256xf32>
    %100 = arith.addf %92, %99 : vector<16x256xf32>
    %c4_73 = arith.constant 4 : index
    %c0_74 = arith.constant 0 : index
    %c0_75 = arith.constant 0 : index
    %101 = vector.load %arg5[%c4_73, %c0_74, %c0_75] : memref<27x16x16xf32, #tpu.memory_space<vmem>>, vector<1x16x16xf32>
    %102 = vector.shape_cast %101 : vector<1x16x16xf32> to vector<16x16xf32>
    %cst_76 = arith.constant dense<0.000000e+00> : vector<16x256xf32>
    %103 = tpu.matmul %102, %69, %cst_76 {dimension_numbers = #tpu.dot_dimension_numbers<[1], [0], [0], [1], [0, 0, 1, 1], [], []>} : vector<16x16xf32>, vector<16x256xf32>, vector<16x256xf32> -> vector<16x256xf32>
    %104 = arith.addf %100, %103 : vector<16x256xf32>
    %c255_i32_77 = arith.constant 255 : i32
    %105 = tpu.dynamic_rotate %69 by %c255_i32_77 dim 1 : vector<16x256xf32>, i32 -> vector<16x256xf32>
    %c5_78 = arith.constant 5 : index
    %c0_79 = arith.constant 0 : index
    %106 = vector.load %arg2[%c5_78, %c0_79] : memref<9x256xf32, #tpu.memory_space<vmem>>, vector<1x256xf32>
    %107 = vector.broadcast %106 : vector<1x256xf32> to vector<16x256xf32>
    %108 = arith.mulf %105, %107 : vector<16x256xf32>
    %c5_80 = arith.constant 5 : index
    %c0_81 = arith.constant 0 : index
    %c0_82 = arith.constant 0 : index
    %109 = vector.load %arg5[%c5_80, %c0_81, %c0_82] : memref<27x16x16xf32, #tpu.memory_space<vmem>>, vector<1x16x16xf32>
    %110 = vector.shape_cast %109 : vector<1x16x16xf32> to vector<16x16xf32>
    %cst_83 = arith.constant dense<0.000000e+00> : vector<16x256xf32>
    %111 = tpu.matmul %110, %108, %cst_83 {dimension_numbers = #tpu.dot_dimension_numbers<[1], [0], [0], [1], [0, 0, 1, 1], [], []>} : vector<16x16xf32>, vector<16x256xf32>, vector<16x256xf32> -> vector<16x256xf32>
    %112 = arith.addf %104, %111 : vector<16x256xf32>
    %c241_i32_84 = arith.constant 241 : i32
    %113 = tpu.dynamic_rotate %69 by %c241_i32_84 dim 1 : vector<16x256xf32>, i32 -> vector<16x256xf32>
    %c6_85 = arith.constant 6 : index
    %c0_86 = arith.constant 0 : index
    %114 = vector.load %arg2[%c6_85, %c0_86] : memref<9x256xf32, #tpu.memory_space<vmem>>, vector<1x256xf32>
    %115 = vector.broadcast %114 : vector<1x256xf32> to vector<16x256xf32>
    %116 = arith.mulf %113, %115 : vector<16x256xf32>
    %c6_87 = arith.constant 6 : index
    %c0_88 = arith.constant 0 : index
    %c0_89 = arith.constant 0 : index
    %117 = vector.load %arg5[%c6_87, %c0_88, %c0_89] : memref<27x16x16xf32, #tpu.memory_space<vmem>>, vector<1x16x16xf32>
    %118 = vector.shape_cast %117 : vector<1x16x16xf32> to vector<16x16xf32>
    %cst_90 = arith.constant dense<0.000000e+00> : vector<16x256xf32>
    %119 = tpu.matmul %118, %116, %cst_90 {dimension_numbers = #tpu.dot_dimension_numbers<[1], [0], [0], [1], [0, 0, 1, 1], [], []>} : vector<16x16xf32>, vector<16x256xf32>, vector<16x256xf32> -> vector<16x256xf32>
    %120 = arith.addf %112, %119 : vector<16x256xf32>
    %c240_i32_91 = arith.constant 240 : i32
    %121 = tpu.dynamic_rotate %69 by %c240_i32_91 dim 1 : vector<16x256xf32>, i32 -> vector<16x256xf32>
    %c7_92 = arith.constant 7 : index
    %c0_93 = arith.constant 0 : index
    %122 = vector.load %arg2[%c7_92, %c0_93] : memref<9x256xf32, #tpu.memory_space<vmem>>, vector<1x256xf32>
    %123 = vector.broadcast %122 : vector<1x256xf32> to vector<16x256xf32>
    %124 = arith.mulf %121, %123 : vector<16x256xf32>
    %c7_94 = arith.constant 7 : index
    %c0_95 = arith.constant 0 : index
    %c0_96 = arith.constant 0 : index
    %125 = vector.load %arg5[%c7_94, %c0_95, %c0_96] : memref<27x16x16xf32, #tpu.memory_space<vmem>>, vector<1x16x16xf32>
    %126 = vector.shape_cast %125 : vector<1x16x16xf32> to vector<16x16xf32>
    %cst_97 = arith.constant dense<0.000000e+00> : vector<16x256xf32>
    %127 = tpu.matmul %126, %124, %cst_97 {dimension_numbers = #tpu.dot_dimension_numbers<[1], [0], [0], [1], [0, 0, 1, 1], [], []>} : vector<16x16xf32>, vector<16x256xf32>, vector<16x256xf32> -> vector<16x256xf32>
    %128 = arith.addf %120, %127 : vector<16x256xf32>
    %c239_i32_98 = arith.constant 239 : i32
    %129 = tpu.dynamic_rotate %69 by %c239_i32_98 dim 1 : vector<16x256xf32>, i32 -> vector<16x256xf32>
    %c8_99 = arith.constant 8 : index
    %c0_100 = arith.constant 0 : index
    %130 = vector.load %arg2[%c8_99, %c0_100] : memref<9x256xf32, #tpu.memory_space<vmem>>, vector<1x256xf32>
    %131 = vector.broadcast %130 : vector<1x256xf32> to vector<16x256xf32>
    %132 = arith.mulf %129, %131 : vector<16x256xf32>
    %c8_101 = arith.constant 8 : index
    %c0_102 = arith.constant 0 : index
    %c0_103 = arith.constant 0 : index
    %133 = vector.load %arg5[%c8_101, %c0_102, %c0_103] : memref<27x16x16xf32, #tpu.memory_space<vmem>>, vector<1x16x16xf32>
    %134 = vector.shape_cast %133 : vector<1x16x16xf32> to vector<16x16xf32>
    %cst_104 = arith.constant dense<0.000000e+00> : vector<16x256xf32>
    %135 = tpu.matmul %134, %132, %cst_104 {dimension_numbers = #tpu.dot_dimension_numbers<[1], [0], [0], [1], [0, 0, 1, 1], [], []>} : vector<16x16xf32>, vector<16x256xf32>, vector<16x256xf32> -> vector<16x256xf32>
    %136 = arith.addf %128, %135 : vector<16x256xf32>
    %137 = arith.addf %136, %67 : vector<16x256xf32>
    %cst_105 = arith.constant 0.000000e+00 : f32
    %138 = vector.broadcast %cst_105 : f32 to vector<16x256xf32>
    %139 = arith.maximumf %137, %138 : vector<16x256xf32>
    %c17_i32_106 = arith.constant 17 : i32
    %140 = tpu.dynamic_rotate %139 by %c17_i32_106 dim 1 : vector<16x256xf32>, i32 -> vector<16x256xf32>
    %c0_107 = arith.constant 0 : index
    %c0_108 = arith.constant 0 : index
    %141 = vector.load %arg2[%c0_107, %c0_108] : memref<9x256xf32, #tpu.memory_space<vmem>>, vector<1x256xf32>
    %142 = vector.broadcast %141 : vector<1x256xf32> to vector<16x256xf32>
    %143 = arith.mulf %140, %142 : vector<16x256xf32>
    %c9 = arith.constant 9 : index
    %c0_109 = arith.constant 0 : index
    %c0_110 = arith.constant 0 : index
    %144 = vector.load %arg5[%c9, %c0_109, %c0_110] : memref<27x16x16xf32, #tpu.memory_space<vmem>>, vector<1x16x16xf32>
    %145 = vector.shape_cast %144 : vector<1x16x16xf32> to vector<16x16xf32>
    %cst_111 = arith.constant dense<0.000000e+00> : vector<16x256xf32>
    %146 = tpu.matmul %145, %143, %cst_111 {dimension_numbers = #tpu.dot_dimension_numbers<[1], [0], [0], [1], [0, 0, 1, 1], [], []>} : vector<16x16xf32>, vector<16x256xf32>, vector<16x256xf32> -> vector<16x256xf32>
    %c16_i32_112 = arith.constant 16 : i32
    %147 = tpu.dynamic_rotate %139 by %c16_i32_112 dim 1 : vector<16x256xf32>, i32 -> vector<16x256xf32>
    %c1_113 = arith.constant 1 : index
    %c0_114 = arith.constant 0 : index
    %148 = vector.load %arg2[%c1_113, %c0_114] : memref<9x256xf32, #tpu.memory_space<vmem>>, vector<1x256xf32>
    %149 = vector.broadcast %148 : vector<1x256xf32> to vector<16x256xf32>
    %150 = arith.mulf %147, %149 : vector<16x256xf32>
    %c10 = arith.constant 10 : index
    %c0_115 = arith.constant 0 : index
    %c0_116 = arith.constant 0 : index
    %151 = vector.load %arg5[%c10, %c0_115, %c0_116] : memref<27x16x16xf32, #tpu.memory_space<vmem>>, vector<1x16x16xf32>
    %152 = vector.shape_cast %151 : vector<1x16x16xf32> to vector<16x16xf32>
    %cst_117 = arith.constant dense<0.000000e+00> : vector<16x256xf32>
    %153 = tpu.matmul %152, %150, %cst_117 {dimension_numbers = #tpu.dot_dimension_numbers<[1], [0], [0], [1], [0, 0, 1, 1], [], []>} : vector<16x16xf32>, vector<16x256xf32>, vector<16x256xf32> -> vector<16x256xf32>
    %154 = arith.addf %146, %153 : vector<16x256xf32>
    %c15_i32_118 = arith.constant 15 : i32
    %155 = tpu.dynamic_rotate %139 by %c15_i32_118 dim 1 : vector<16x256xf32>, i32 -> vector<16x256xf32>
    %c2_119 = arith.constant 2 : index
    %c0_120 = arith.constant 0 : index
    %156 = vector.load %arg2[%c2_119, %c0_120] : memref<9x256xf32, #tpu.memory_space<vmem>>, vector<1x256xf32>
    %157 = vector.broadcast %156 : vector<1x256xf32> to vector<16x256xf32>
    %158 = arith.mulf %155, %157 : vector<16x256xf32>
    %c11 = arith.constant 11 : index
    %c0_121 = arith.constant 0 : index
    %c0_122 = arith.constant 0 : index
    %159 = vector.load %arg5[%c11, %c0_121, %c0_122] : memref<27x16x16xf32, #tpu.memory_space<vmem>>, vector<1x16x16xf32>
    %160 = vector.shape_cast %159 : vector<1x16x16xf32> to vector<16x16xf32>
    %cst_123 = arith.constant dense<0.000000e+00> : vector<16x256xf32>
    %161 = tpu.matmul %160, %158, %cst_123 {dimension_numbers = #tpu.dot_dimension_numbers<[1], [0], [0], [1], [0, 0, 1, 1], [], []>} : vector<16x16xf32>, vector<16x256xf32>, vector<16x256xf32> -> vector<16x256xf32>
    %162 = arith.addf %154, %161 : vector<16x256xf32>
    %c1_i32_124 = arith.constant 1 : i32
    %163 = tpu.dynamic_rotate %139 by %c1_i32_124 dim 1 : vector<16x256xf32>, i32 -> vector<16x256xf32>
    %c3_125 = arith.constant 3 : index
    %c0_126 = arith.constant 0 : index
    %164 = vector.load %arg2[%c3_125, %c0_126] : memref<9x256xf32, #tpu.memory_space<vmem>>, vector<1x256xf32>
    %165 = vector.broadcast %164 : vector<1x256xf32> to vector<16x256xf32>
    %166 = arith.mulf %163, %165 : vector<16x256xf32>
    %c12 = arith.constant 12 : index
    %c0_127 = arith.constant 0 : index
    %c0_128 = arith.constant 0 : index
    %167 = vector.load %arg5[%c12, %c0_127, %c0_128] : memref<27x16x16xf32, #tpu.memory_space<vmem>>, vector<1x16x16xf32>
    %168 = vector.shape_cast %167 : vector<1x16x16xf32> to vector<16x16xf32>
    %cst_129 = arith.constant dense<0.000000e+00> : vector<16x256xf32>
    %169 = tpu.matmul %168, %166, %cst_129 {dimension_numbers = #tpu.dot_dimension_numbers<[1], [0], [0], [1], [0, 0, 1, 1], [], []>} : vector<16x16xf32>, vector<16x256xf32>, vector<16x256xf32> -> vector<16x256xf32>
    %170 = arith.addf %162, %169 : vector<16x256xf32>
    %c13 = arith.constant 13 : index
    %c0_130 = arith.constant 0 : index
    %c0_131 = arith.constant 0 : index
    %171 = vector.load %arg5[%c13, %c0_130, %c0_131] : memref<27x16x16xf32, #tpu.memory_space<vmem>>, vector<1x16x16xf32>
    %172 = vector.shape_cast %171 : vector<1x16x16xf32> to vector<16x16xf32>
    %cst_132 = arith.constant dense<0.000000e+00> : vector<16x256xf32>
    %173 = tpu.matmul %172, %139, %cst_132 {dimension_numbers = #tpu.dot_dimension_numbers<[1], [0], [0], [1], [0, 0, 1, 1], [], []>} : vector<16x16xf32>, vector<16x256xf32>, vector<16x256xf32> -> vector<16x256xf32>
    %174 = arith.addf %170, %173 : vector<16x256xf32>
    %c255_i32_133 = arith.constant 255 : i32
    %175 = tpu.dynamic_rotate %139 by %c255_i32_133 dim 1 : vector<16x256xf32>, i32 -> vector<16x256xf32>
    %c5_134 = arith.constant 5 : index
    %c0_135 = arith.constant 0 : index
    %176 = vector.load %arg2[%c5_134, %c0_135] : memref<9x256xf32, #tpu.memory_space<vmem>>, vector<1x256xf32>
    %177 = vector.broadcast %176 : vector<1x256xf32> to vector<16x256xf32>
    %178 = arith.mulf %175, %177 : vector<16x256xf32>
    %c14 = arith.constant 14 : index
    %c0_136 = arith.constant 0 : index
    %c0_137 = arith.constant 0 : index
    %179 = vector.load %arg5[%c14, %c0_136, %c0_137] : memref<27x16x16xf32, #tpu.memory_space<vmem>>, vector<1x16x16xf32>
    %180 = vector.shape_cast %179 : vector<1x16x16xf32> to vector<16x16xf32>
    %cst_138 = arith.constant dense<0.000000e+00> : vector<16x256xf32>
    %181 = tpu.matmul %180, %178, %cst_138 {dimension_numbers = #tpu.dot_dimension_numbers<[1], [0], [0], [1], [0, 0, 1, 1], [], []>} : vector<16x16xf32>, vector<16x256xf32>, vector<16x256xf32> -> vector<16x256xf32>
    %182 = arith.addf %174, %181 : vector<16x256xf32>
    %c241_i32_139 = arith.constant 241 : i32
    %183 = tpu.dynamic_rotate %139 by %c241_i32_139 dim 1 : vector<16x256xf32>, i32 -> vector<16x256xf32>
    %c6_140 = arith.constant 6 : index
    %c0_141 = arith.constant 0 : index
    %184 = vector.load %arg2[%c6_140, %c0_141] : memref<9x256xf32, #tpu.memory_space<vmem>>, vector<1x256xf32>
    %185 = vector.broadcast %184 : vector<1x256xf32> to vector<16x256xf32>
    %186 = arith.mulf %183, %185 : vector<16x256xf32>
    %c15 = arith.constant 15 : index
    %c0_142 = arith.constant 0 : index
    %c0_143 = arith.constant 0 : index
    %187 = vector.load %arg5[%c15, %c0_142, %c0_143] : memref<27x16x16xf32, #tpu.memory_space<vmem>>, vector<1x16x16xf32>
    %188 = vector.shape_cast %187 : vector<1x16x16xf32> to vector<16x16xf32>
    %cst_144 = arith.constant dense<0.000000e+00> : vector<16x256xf32>
    %189 = tpu.matmul %188, %186, %cst_144 {dimension_numbers = #tpu.dot_dimension_numbers<[1], [0], [0], [1], [0, 0, 1, 1], [], []>} : vector<16x16xf32>, vector<16x256xf32>, vector<16x256xf32> -> vector<16x256xf32>
    %190 = arith.addf %182, %189 : vector<16x256xf32>
    %c240_i32_145 = arith.constant 240 : i32
    %191 = tpu.dynamic_rotate %139 by %c240_i32_145 dim 1 : vector<16x256xf32>, i32 -> vector<16x256xf32>
    %c7_146 = arith.constant 7 : index
    %c0_147 = arith.constant 0 : index
    %192 = vector.load %arg2[%c7_146, %c0_147] : memref<9x256xf32, #tpu.memory_space<vmem>>, vector<1x256xf32>
    %193 = vector.broadcast %192 : vector<1x256xf32> to vector<16x256xf32>
    %194 = arith.mulf %191, %193 : vector<16x256xf32>
    %c16 = arith.constant 16 : index
    %c0_148 = arith.constant 0 : index
    %c0_149 = arith.constant 0 : index
    %195 = vector.load %arg5[%c16, %c0_148, %c0_149] : memref<27x16x16xf32, #tpu.memory_space<vmem>>, vector<1x16x16xf32>
    %196 = vector.shape_cast %195 : vector<1x16x16xf32> to vector<16x16xf32>
    %cst_150 = arith.constant dense<0.000000e+00> : vector<16x256xf32>
    %197 = tpu.matmul %196, %194, %cst_150 {dimension_numbers = #tpu.dot_dimension_numbers<[1], [0], [0], [1], [0, 0, 1, 1], [], []>} : vector<16x16xf32>, vector<16x256xf32>, vector<16x256xf32> -> vector<16x256xf32>
    %198 = arith.addf %190, %197 : vector<16x256xf32>
    %c239_i32_151 = arith.constant 239 : i32
    %199 = tpu.dynamic_rotate %139 by %c239_i32_151 dim 1 : vector<16x256xf32>, i32 -> vector<16x256xf32>
    %c8_152 = arith.constant 8 : index
    %c0_153 = arith.constant 0 : index
    %200 = vector.load %arg2[%c8_152, %c0_153] : memref<9x256xf32, #tpu.memory_space<vmem>>, vector<1x256xf32>
    %201 = vector.broadcast %200 : vector<1x256xf32> to vector<16x256xf32>
    %202 = arith.mulf %199, %201 : vector<16x256xf32>
    %c17 = arith.constant 17 : index
    %c0_154 = arith.constant 0 : index
    %c0_155 = arith.constant 0 : index
    %203 = vector.load %arg5[%c17, %c0_154, %c0_155] : memref<27x16x16xf32, #tpu.memory_space<vmem>>, vector<1x16x16xf32>
    %204 = vector.shape_cast %203 : vector<1x16x16xf32> to vector<16x16xf32>
    %cst_156 = arith.constant dense<0.000000e+00> : vector<16x256xf32>
    %205 = tpu.matmul %204, %202, %cst_156 {dimension_numbers = #tpu.dot_dimension_numbers<[1], [0], [0], [1], [0, 0, 1, 1], [], []>} : vector<16x16xf32>, vector<16x256xf32>, vector<16x256xf32> -> vector<16x256xf32>
    %206 = arith.addf %198, %205 : vector<16x256xf32>
    %207 = arith.addf %206, %136 : vector<16x256xf32>
    %cst_157 = arith.constant 0.000000e+00 : f32
    %208 = vector.broadcast %cst_157 : f32 to vector<16x256xf32>
    %209 = arith.maximumf %207, %208 : vector<16x256xf32>
    %c17_i32_158 = arith.constant 17 : i32
    %210 = tpu.dynamic_rotate %209 by %c17_i32_158 dim 1 : vector<16x256xf32>, i32 -> vector<16x256xf32>
    %c0_159 = arith.constant 0 : index
    %c0_160 = arith.constant 0 : index
    %211 = vector.load %arg2[%c0_159, %c0_160] : memref<9x256xf32, #tpu.memory_space<vmem>>, vector<1x256xf32>
    %212 = vector.broadcast %211 : vector<1x256xf32> to vector<16x256xf32>
    %213 = arith.mulf %210, %212 : vector<16x256xf32>
    %c18 = arith.constant 18 : index
    %c0_161 = arith.constant 0 : index
    %c0_162 = arith.constant 0 : index
    %214 = vector.load %arg5[%c18, %c0_161, %c0_162] : memref<27x16x16xf32, #tpu.memory_space<vmem>>, vector<1x16x16xf32>
    %215 = vector.shape_cast %214 : vector<1x16x16xf32> to vector<16x16xf32>
    %cst_163 = arith.constant dense<0.000000e+00> : vector<16x256xf32>
    %216 = tpu.matmul %215, %213, %cst_163 {dimension_numbers = #tpu.dot_dimension_numbers<[1], [0], [0], [1], [0, 0, 1, 1], [], []>} : vector<16x16xf32>, vector<16x256xf32>, vector<16x256xf32> -> vector<16x256xf32>
    %c16_i32_164 = arith.constant 16 : i32
    %217 = tpu.dynamic_rotate %209 by %c16_i32_164 dim 1 : vector<16x256xf32>, i32 -> vector<16x256xf32>
    %c1_165 = arith.constant 1 : index
    %c0_166 = arith.constant 0 : index
    %218 = vector.load %arg2[%c1_165, %c0_166] : memref<9x256xf32, #tpu.memory_space<vmem>>, vector<1x256xf32>
    %219 = vector.broadcast %218 : vector<1x256xf32> to vector<16x256xf32>
    %220 = arith.mulf %217, %219 : vector<16x256xf32>
    %c19 = arith.constant 19 : index
    %c0_167 = arith.constant 0 : index
    %c0_168 = arith.constant 0 : index
    %221 = vector.load %arg5[%c19, %c0_167, %c0_168] : memref<27x16x16xf32, #tpu.memory_space<vmem>>, vector<1x16x16xf32>
    %222 = vector.shape_cast %221 : vector<1x16x16xf32> to vector<16x16xf32>
    %cst_169 = arith.constant dense<0.000000e+00> : vector<16x256xf32>
    %223 = tpu.matmul %222, %220, %cst_169 {dimension_numbers = #tpu.dot_dimension_numbers<[1], [0], [0], [1], [0, 0, 1, 1], [], []>} : vector<16x16xf32>, vector<16x256xf32>, vector<16x256xf32> -> vector<16x256xf32>
    %224 = arith.addf %216, %223 : vector<16x256xf32>
    %c15_i32_170 = arith.constant 15 : i32
    %225 = tpu.dynamic_rotate %209 by %c15_i32_170 dim 1 : vector<16x256xf32>, i32 -> vector<16x256xf32>
    %c2_171 = arith.constant 2 : index
    %c0_172 = arith.constant 0 : index
    %226 = vector.load %arg2[%c2_171, %c0_172] : memref<9x256xf32, #tpu.memory_space<vmem>>, vector<1x256xf32>
    %227 = vector.broadcast %226 : vector<1x256xf32> to vector<16x256xf32>
    %228 = arith.mulf %225, %227 : vector<16x256xf32>
    %c20 = arith.constant 20 : index
    %c0_173 = arith.constant 0 : index
    %c0_174 = arith.constant 0 : index
    %229 = vector.load %arg5[%c20, %c0_173, %c0_174] : memref<27x16x16xf32, #tpu.memory_space<vmem>>, vector<1x16x16xf32>
    %230 = vector.shape_cast %229 : vector<1x16x16xf32> to vector<16x16xf32>
    %cst_175 = arith.constant dense<0.000000e+00> : vector<16x256xf32>
    %231 = tpu.matmul %230, %228, %cst_175 {dimension_numbers = #tpu.dot_dimension_numbers<[1], [0], [0], [1], [0, 0, 1, 1], [], []>} : vector<16x16xf32>, vector<16x256xf32>, vector<16x256xf32> -> vector<16x256xf32>
    %232 = arith.addf %224, %231 : vector<16x256xf32>
    %c1_i32_176 = arith.constant 1 : i32
    %233 = tpu.dynamic_rotate %209 by %c1_i32_176 dim 1 : vector<16x256xf32>, i32 -> vector<16x256xf32>
    %c3_177 = arith.constant 3 : index
    %c0_178 = arith.constant 0 : index
    %234 = vector.load %arg2[%c3_177, %c0_178] : memref<9x256xf32, #tpu.memory_space<vmem>>, vector<1x256xf32>
    %235 = vector.broadcast %234 : vector<1x256xf32> to vector<16x256xf32>
    %236 = arith.mulf %233, %235 : vector<16x256xf32>
    %c21 = arith.constant 21 : index
    %c0_179 = arith.constant 0 : index
    %c0_180 = arith.constant 0 : index
    %237 = vector.load %arg5[%c21, %c0_179, %c0_180] : memref<27x16x16xf32, #tpu.memory_space<vmem>>, vector<1x16x16xf32>
    %238 = vector.shape_cast %237 : vector<1x16x16xf32> to vector<16x16xf32>
    %cst_181 = arith.constant dense<0.000000e+00> : vector<16x256xf32>
    %239 = tpu.matmul %238, %236, %cst_181 {dimension_numbers = #tpu.dot_dimension_numbers<[1], [0], [0], [1], [0, 0, 1, 1], [], []>} : vector<16x16xf32>, vector<16x256xf32>, vector<16x256xf32> -> vector<16x256xf32>
    %240 = arith.addf %232, %239 : vector<16x256xf32>
    %c22 = arith.constant 22 : index
    %c0_182 = arith.constant 0 : index
    %c0_183 = arith.constant 0 : index
    %241 = vector.load %arg5[%c22, %c0_182, %c0_183] : memref<27x16x16xf32, #tpu.memory_space<vmem>>, vector<1x16x16xf32>
    %242 = vector.shape_cast %241 : vector<1x16x16xf32> to vector<16x16xf32>
    %cst_184 = arith.constant dense<0.000000e+00> : vector<16x256xf32>
    %243 = tpu.matmul %242, %209, %cst_184 {dimension_numbers = #tpu.dot_dimension_numbers<[1], [0], [0], [1], [0, 0, 1, 1], [], []>} : vector<16x16xf32>, vector<16x256xf32>, vector<16x256xf32> -> vector<16x256xf32>
    %244 = arith.addf %240, %243 : vector<16x256xf32>
    %c255_i32_185 = arith.constant 255 : i32
    %245 = tpu.dynamic_rotate %209 by %c255_i32_185 dim 1 : vector<16x256xf32>, i32 -> vector<16x256xf32>
    %c5_186 = arith.constant 5 : index
    %c0_187 = arith.constant 0 : index
    %246 = vector.load %arg2[%c5_186, %c0_187] : memref<9x256xf32, #tpu.memory_space<vmem>>, vector<1x256xf32>
    %247 = vector.broadcast %246 : vector<1x256xf32> to vector<16x256xf32>
    %248 = arith.mulf %245, %247 : vector<16x256xf32>
    %c23 = arith.constant 23 : index
    %c0_188 = arith.constant 0 : index
    %c0_189 = arith.constant 0 : index
    %249 = vector.load %arg5[%c23, %c0_188, %c0_189] : memref<27x16x16xf32, #tpu.memory_space<vmem>>, vector<1x16x16xf32>
    %250 = vector.shape_cast %249 : vector<1x16x16xf32> to vector<16x16xf32>
    %cst_190 = arith.constant dense<0.000000e+00> : vector<16x256xf32>
    %251 = tpu.matmul %250, %248, %cst_190 {dimension_numbers = #tpu.dot_dimension_numbers<[1], [0], [0], [1], [0, 0, 1, 1], [], []>} : vector<16x16xf32>, vector<16x256xf32>, vector<16x256xf32> -> vector<16x256xf32>
    %252 = arith.addf %244, %251 : vector<16x256xf32>
    %c241_i32_191 = arith.constant 241 : i32
    %253 = tpu.dynamic_rotate %209 by %c241_i32_191 dim 1 : vector<16x256xf32>, i32 -> vector<16x256xf32>
    %c6_192 = arith.constant 6 : index
    %c0_193 = arith.constant 0 : index
    %254 = vector.load %arg2[%c6_192, %c0_193] : memref<9x256xf32, #tpu.memory_space<vmem>>, vector<1x256xf32>
    %255 = vector.broadcast %254 : vector<1x256xf32> to vector<16x256xf32>
    %256 = arith.mulf %253, %255 : vector<16x256xf32>
    %c24 = arith.constant 24 : index
    %c0_194 = arith.constant 0 : index
    %c0_195 = arith.constant 0 : index
    %257 = vector.load %arg5[%c24, %c0_194, %c0_195] : memref<27x16x16xf32, #tpu.memory_space<vmem>>, vector<1x16x16xf32>
    %258 = vector.shape_cast %257 : vector<1x16x16xf32> to vector<16x16xf32>
    %cst_196 = arith.constant dense<0.000000e+00> : vector<16x256xf32>
    %259 = tpu.matmul %258, %256, %cst_196 {dimension_numbers = #tpu.dot_dimension_numbers<[1], [0], [0], [1], [0, 0, 1, 1], [], []>} : vector<16x16xf32>, vector<16x256xf32>, vector<16x256xf32> -> vector<16x256xf32>
    %260 = arith.addf %252, %259 : vector<16x256xf32>
    %c240_i32_197 = arith.constant 240 : i32
    %261 = tpu.dynamic_rotate %209 by %c240_i32_197 dim 1 : vector<16x256xf32>, i32 -> vector<16x256xf32>
    %c7_198 = arith.constant 7 : index
    %c0_199 = arith.constant 0 : index
    %262 = vector.load %arg2[%c7_198, %c0_199] : memref<9x256xf32, #tpu.memory_space<vmem>>, vector<1x256xf32>
    %263 = vector.broadcast %262 : vector<1x256xf32> to vector<16x256xf32>
    %264 = arith.mulf %261, %263 : vector<16x256xf32>
    %c25 = arith.constant 25 : index
    %c0_200 = arith.constant 0 : index
    %c0_201 = arith.constant 0 : index
    %265 = vector.load %arg5[%c25, %c0_200, %c0_201] : memref<27x16x16xf32, #tpu.memory_space<vmem>>, vector<1x16x16xf32>
    %266 = vector.shape_cast %265 : vector<1x16x16xf32> to vector<16x16xf32>
    %cst_202 = arith.constant dense<0.000000e+00> : vector<16x256xf32>
    %267 = tpu.matmul %266, %264, %cst_202 {dimension_numbers = #tpu.dot_dimension_numbers<[1], [0], [0], [1], [0, 0, 1, 1], [], []>} : vector<16x16xf32>, vector<16x256xf32>, vector<16x256xf32> -> vector<16x256xf32>
    %268 = arith.addf %260, %267 : vector<16x256xf32>
    %c239_i32_203 = arith.constant 239 : i32
    %269 = tpu.dynamic_rotate %209 by %c239_i32_203 dim 1 : vector<16x256xf32>, i32 -> vector<16x256xf32>
    %c8_204 = arith.constant 8 : index
    %c0_205 = arith.constant 0 : index
    %270 = vector.load %arg2[%c8_204, %c0_205] : memref<9x256xf32, #tpu.memory_space<vmem>>, vector<1x256xf32>
    %271 = vector.broadcast %270 : vector<1x256xf32> to vector<16x256xf32>
    %272 = arith.mulf %269, %271 : vector<16x256xf32>
    %c26 = arith.constant 26 : index
    %c0_206 = arith.constant 0 : index
    %c0_207 = arith.constant 0 : index
    %273 = vector.load %arg5[%c26, %c0_206, %c0_207] : memref<27x16x16xf32, #tpu.memory_space<vmem>>, vector<1x16x16xf32>
    %274 = vector.shape_cast %273 : vector<1x16x16xf32> to vector<16x16xf32>
    %cst_208 = arith.constant dense<0.000000e+00> : vector<16x256xf32>
    %275 = tpu.matmul %274, %272, %cst_208 {dimension_numbers = #tpu.dot_dimension_numbers<[1], [0], [0], [1], [0, 0, 1, 1], [], []>} : vector<16x16xf32>, vector<16x256xf32>, vector<16x256xf32> -> vector<16x256xf32>
    %276 = arith.addf %268, %275 : vector<16x256xf32>
    %277 = arith.addf %276, %206 : vector<16x256xf32>
    %cst_209 = arith.constant 0.000000e+00 : f32
    %278 = vector.broadcast %cst_209 : f32 to vector<16x256xf32>
    %279 = arith.maximumf %277, %278 : vector<16x256xf32>
    %c0_210 = arith.constant 0 : index
    %c0_211 = arith.constant 0 : index
    %280 = vector.load %arg3[%c0_210, %c0_211] : memref<1x256xf32, #tpu.memory_space<vmem>>, vector<1x256xf32>
    %cst_212 = arith.constant dense<0.000000e+00> : vector<16x1xf32>
    %281 = tpu.matmul %279, %280, %cst_212 {dimension_numbers = #tpu.dot_dimension_numbers<[1], [1], [0], [0], [0, 0, 1, 0], [], []>} : vector<16x256xf32>, vector<1x256xf32>, vector<16x1xf32> -> vector<16x1xf32>
    %c0_213 = arith.constant 0 : index
    %c0_214 = arith.constant 0 : index
    %c0_215 = arith.constant 0 : index
    %282 = vector.load %arg6[%c0_213, %c0_214, %c0_215] : memref<1x16x1xf32, #tpu.memory_space<vmem>>, vector<1x16x1xf32>
    %283 = vector.shape_cast %282 : vector<1x16x1xf32> to vector<16x1xf32>
    %284 = vector.shape_cast %281 : vector<16x1xf32> to vector<1x16x1xf32>
    tpu.vector_store %arg6[%c0_213, %c0_214, %c0_215], %284 {strides = array<i32>} : memref<1x16x1xf32, #tpu.memory_space<vmem>>, vector<1x16x1xf32>,
    return
  }
  func.func @transform_0(%arg0: i32) -> (i32, i32) {
    %c0_i32 = arith.constant 0 : i32
    %c0_i32_0 = arith.constant 0 : i32
    return %c0_i32, %arg0 : i32, i32
  }
  func.func @transform_1(%arg0: i32) -> (i32, i32) {
    %c0_i32 = arith.constant 0 : i32
    %c0_i32_0 = arith.constant 0 : i32
    %c0_i32_1 = arith.constant 0 : i32
    return %c0_i32, %c0_i32_0 : i32, i32
  }
  func.func @transform_2(%arg0: i32) -> (i32, i32) {
    %c0_i32 = arith.constant 0 : i32
    %c0_i32_0 = arith.constant 0 : i32
    %c0_i32_1 = arith.constant 0 : i32
    return %c0_i32, %c0_i32_0 : i32, i32
  }
  func.func @transform_3(%arg0: i32) -> (i32, i32, i32) {
    %c0_i32 = arith.constant 0 : i32
    %c0_i32_0 = arith.constant 0 : i32
    %c0_i32_1 = arith.constant 0 : i32
    %c0_i32_2 = arith.constant 0 : i32
    return %c0_i32, %c0_i32_0, %c0_i32_1 : i32, i32, i32
  }
  func.func @transform_4(%arg0: i32) -> (i32, i32, i32) {
    %c0_i32 = arith.constant 0 : i32
    %c0_i32_0 = arith.constant 0 : i32
    %c0_i32_1 = arith.constant 0 : i32
    %c0_i32_2 = arith.constant 0 : i32
    return %c0_i32, %c0_i32_0, %c0_i32_1 : i32, i32, i32
  }
  func.func @transform_5(%arg0: i32) -> (i32, i32, i32) {
    %c0_i32 = arith.constant 0 : i32
    %c0_i32_0 = arith.constant 0 : i32
    %c0_i32_1 = arith.constant 0 : i32
    return %arg0, %c0_i32, %c0_i32_0 : i32, i32, i32
  }
}

</mosaic_0001>

<llo_original>
// kernel: tpu_custom_call.1
$region0: #{tpu_custom_call.1}
  #allocation0 [shape = 'u32[]', space=smem, size = 0x4, offset = 0x4, fixed_abs, tag = 'smem constant byte address 0x4 - core index']
  #allocation1 [shape = 'u32[72,128]{1,0:T(1,128)}', space=vmem, size = 0x9000, scoped, tag = 'internal scratch']
  %s0 = inlined_call_operand.vmem [shape: f32[8,512], index: 0, kind: input, shape index: {}]
  %s1 = inlined_call_operand.vmem [shape: f32[9,256], index: 1, kind: input, shape index: {}]
  %s2 = inlined_call_operand.vmem [shape: f32[1,256], index: 2, kind: input, shape index: {}]
  %s3 = inlined_call_operand.vmem [shape: f32[9,16,8], index: 3, kind: input, shape index: {}]
  %s4 = inlined_call_operand.vmem [shape: f32[27,16,16], index: 4, kind: input, shape index: {}]
  %s5 = inlined_call_operand.vmem [shape: f32[2,16,1], index: 5, kind: output, shape index: {}]
  %s6 = sld [smem:[#allocation0]]
  $region53: #{tpu_custom_call.1} parent=0
    _
  %s8 = ssub.s32 1, %s6
  %s9 = scalar_select 0, %s8, %s6
  loop: start=0, step=1, limit=4
  $region2: #{tpu_custom_call.1} parent=0 // loop_pre_header
    _
  $region3: #{tpu_custom_call.1} parent=0 // loop_header
    %s11 = sphi 0, %s15
    %p12 = scmp.ge.s32.totalorder %s11, 4
    %s21 = sphi 0, %s23
    %s24 = sphi 0, %s21
    %s25 = sphi 0, %s24
    %s41 = sphi 0, %s25
    %s45 = sphi 0, %s45
    %s47 = sphi 0, %s45
    %s48 = sphi 0, %s47
    %s62 = sphi 0, %s48
    %s66 = sphi 0, %s66
    %s68 = sphi 0, %s66
    %s69 = sphi 0, %s68
    %s83 = sphi 0, %s69
    %s87 = sphi 0, %s87
    %s89 = sphi 0, %s87
    %s90 = sphi 0, %s89
    %s104 = sphi 0, %s90
    %s108 = sphi 0, %s108
    %s110 = sphi 0, %s108
    %s111 = sphi 0, %s110
    %s125 = sphi 0, %s111
    %s131 = sphi 0, %s133
    %s134 = sphi 0, %s131
    %s135 = sphi 0, %s134
    %s151 = sphi 0, %s135
  $region4: #{tpu_custom_call.1} parent=0 // loop_header_branch
    %14 = sbr.rel (%p12) target = $region8
  $region5: #{tpu_custom_call.1} parent=0 // loop_body
    %s16 = ssub.s32 %s11, 1
    %s17 = ssub.s32 %s11, 2
    %s18 = sadd.s32 %s11, 1
    %s19 = ssub.s32 %s11, %s18
    %p20 = scmp.eq.s32.totalorder %s19, 0
    %s22 = sadd.s32 %s21, 1
    %s23 = scalar_select %p20, %s21, %s22
    %p26 = pneg %p20
    %p27 = scmp.eq.s32.totalorder %s11, 1
    %p28 = por %p26, %p27
    %p29 = scmp.ne.s32.totalorder %s21, %s24
    %p30 = scmp.eq.s32.totalorder %s11, 0
    %p31 = por %p29, %p30
    %p32 = scmp.ne.s32.totalorder %s21, %s24
    %p33 = scmp.eq.s32.totalorder %s16, 1
    %p34 = por %p32, %p33
    %p35 = scmp.ne.s32.totalorder %s24, %s25
    %p36 = scmp.eq.s32.totalorder %s16, 0
    %p37 = por %p35, %p36
    %p38 = scmp.ne.s32.totalorder %s24, %s25
    %p39 = scmp.eq.s32.totalorder %s17, 1
    %p40 = por %p38, %p39
    %p42 = scmp.ne.s32.totalorder %s25, %s41
    %p43 = scmp.eq.s32.totalorder %s17, 0
    %p44 = por %p42, %p43
    %s46 = sadd.s32 %s45, 1
    %p49 = scmp.eq.s32.totalorder %s11, 1
    %p50 = scmp.ne.s32.totalorder %s45, %s47
    %p51 = scmp.eq.s32.totalorder %s11, 0
    %p52 = por %p50, %p51
    %p53 = scmp.ne.s32.totalorder %s45, %s47
    %p54 = scmp.eq.s32.totalorder %s16, 1
    %p55 = por %p53, %p54
    %p56 = scmp.ne.s32.totalorder %s47, %s48
    %p57 = scmp.eq.s32.totalorder %s16, 0
    %p58 = por %p56, %p57
    %p59 = scmp.ne.s32.totalorder %s47, %s48
    %p60 = scmp.eq.s32.totalorder %s17, 1
    %p61 = por %p59, %p60
    %p63 = scmp.ne.s32.totalorder %s48, %s62
    %p64 = scmp.eq.s32.totalorder %s17, 0
    %p65 = por %p63, %p64
    %s67 = sadd.s32 %s66, 1
    %p70 = scmp.eq.s32.totalorder %s11, 1
    %p71 = scmp.ne.s32.totalorder %s66, %s68
    %p72 = scmp.eq.s32.totalorder %s11, 0
    %p73 = por %p71, %p72
    %p74 = scmp.ne.s32.totalorder %s66, %s68
    %p75 = scmp.eq.s32.totalorder %s16, 1
    %p76 = por %p74, %p75
    %p77 = scmp.ne.s32.totalorder %s68, %s69
    %p78 = scmp.eq.s32.totalorder %s16, 0
    %p79 = por %p77, %p78
    %p80 = scmp.ne.s32.totalorder %s68, %s69
    %p81 = scmp.eq.s32.totalorder %s17, 1
    %p82 = por %p80, %p81
    %p84 = scmp.ne.s32.totalorder %s69, %s83
    %p85 = scmp.eq.s32.totalorder %s17, 0
    %p86 = por %p84, %p85
    %s88 = sadd.s32 %s87, 1
    %p91 = scmp.eq.s32.totalorder %s11, 1
    %p92 = scmp.ne.s32.totalorder %s87, %s89
    %p93 = scmp.eq.s32.totalorder %s11, 0
    %p94 = por %p92, %p93
    %p95 = scmp.ne.s32.totalorder %s87, %s89
    %p96 = scmp.eq.s32.totalorder %s16, 1
    %p97 = por %p95, %p96
    %p98 = scmp.ne.s32.totalorder %s89, %s90
    %p99 = scmp.eq.s32.totalorder %s16, 0
    %p100 = por %p98, %p99
    %p101 = scmp.ne.s32.totalorder %s89, %s90
    %p102 = scmp.eq.s32.totalorder %s17, 1
    %p103 = por %p101, %p102
    %p105 = scmp.ne.s32.totalorder %s90, %s104
    %p106 = scmp.eq.s32.totalorder %s17, 0
    %p107 = por %p105, %p106
    %s109 = sadd.s32 %s108, 1
    %p112 = scmp.eq.s32.totalorder %s11, 1
    %p113 = scmp.ne.s32.totalorder %s108, %s110
    %p114 = scmp.eq.s32.totalorder %s11, 0
    %p115 = por %p113, %p114
    %p116 = scmp.ne.s32.totalorder %s108, %s110
    %p117 = scmp.eq.s32.totalorder %s16, 1
    %p118 = por %p116, %p117
    %p119 = scmp.ne.s32.totalorder %s110, %s111
    %p120 = scmp.eq.s32.totalorder %s16, 0
    %p121 = por %p119, %p120
    %p122 = scmp.ne.s32.totalorder %s110, %s111
    %p123 = scmp.eq.s32.totalorder %s17, 1
    %p124 = por %p122, %p123
    %p126 = scmp.ne.s32.totalorder %s111, %s125
    %p127 = scmp.eq.s32.totalorder %s17, 0
    %p128 = por %p126, %p127
    %s129 = ssub.s32 %s11, %s18
    %p130 = scmp.eq.s32.totalorder %s129, 0
    %s132 = sadd.s32 %s131, 1
    %s133 = scalar_select %p130, %s131, %s132
    %p136 = pneg %p130
    %p137 = scmp.eq.s32.totalorder %s11, 1
    %p138 = por %p136, %p137
    %p139 = scmp.ne.s32.totalorder %s131, %s134
    %p140 = scmp.eq.s32.totalorder %s11, 0
    %p141 = por %p139, %p140
    %p142 = scmp.ne.s32.totalorder %s131, %s134
    %p143 = scmp.eq.s32.totalorder %s16, 1
    %p144 = por %p142, %p143
    %p145 = scmp.ne.s32.totalorder %s134, %s135
    %p146 = scmp.eq.s32.totalorder %s16, 0
    %p147 = por %p145, %p146
    %p148 = scmp.ne.s32.totalorder %s134, %s135
    %p149 = scmp.eq.s32.totalorder %s17, 1
    %p150 = por %p148, %p149
    %p152 = scmp.ne.s32.totalorder %s135, %s151
    %p153 = scmp.eq.s32.totalorder %s17, 0
    %p154 = por %p152, %p153
    %p155 = scmp.le.s32.totalorder 1, %s11
    %p156 = scmp.lt.s32.totalorder %s11, 3
    %p157 = pnand %p155, %p156
    %p158 = pneg %p157
    // Predicated region
    $region9: #{tpu_custom_call.1} parent=5 // pred_check
      _
    $region10: #{tpu_custom_call.1} parent=5 // pred_check_branch
      %160 = sbr.rel (%p157) target = $region12
    $region11: #{tpu_custom_call.1} parent=5 // pred_region
      %s161 = ssub.s32 %s11, 1
      // Predicated region
      $region13: #{tpu_custom_call.1} parent=11 // pred_check
        %p162 = pneg %p58
      $region14: #{tpu_custom_call.1} parent=11 // pred_check_branch
        %164 = sbr.rel (%p162) target = $region16
      $region15: #{tpu_custom_call.1} parent=11 // pred_region
        _
      $region16: #{tpu_custom_call.1} parent=11 // pred_fallthru
        _
      // Predicated region
      $region17: #{tpu_custom_call.1} parent=11 // pred_check
        %p165 = pneg %p79
      $region18: #{tpu_custom_call.1} parent=11 // pred_check_branch
        %167 = sbr.rel (%p165) target = $region20
      $region19: #{tpu_custom_call.1} parent=11 // pred_region
        _
      $region20: #{tpu_custom_call.1} parent=11 // pred_fallthru
        _
      // Predicated region
      $region21: #{tpu_custom_call.1} parent=11 // pred_check
        %p168 = pneg %p100
      $region22: #{tpu_custom_call.1} parent=11 // pred_check_branch
        %170 = sbr.rel (%p168) target = $region24
      $region23: #{tpu_custom_call.1} parent=11 // pred_region
        _
      $region24: #{tpu_custom_call.1} parent=11 // pred_fallthru
        _
      // Predicated region
      $region25: #{tpu_custom_call.1} parent=11 // pred_check
        %p171 = pneg %p121
      $region26: #{tpu_custom_call.1} parent=11 // pred_check_branch
        %173 = sbr.rel (%p171) target = $region28
      $region27: #{tpu_custom_call.1} parent=11 // pred_region
        _
      $region28: #{tpu_custom_call.1} parent=11 // pred_fallthru
        _
    $region12: #{tpu_custom_call.1} parent=5 // pred_fallthru
      _
    %p174 = scmp.lt.s32.totalorder %s11, 2
    // Predicated region
    $region29: #{tpu_custom_call.1} parent=5 // pred_check
      %p175 = pneg %p174
    $region30: #{tpu_custom_call.1} parent=5 // pred_check_branch
      %177 = sbr.rel (%p175) target = $region32
    $region31: #{tpu_custom_call.1} parent=5 // pred_region
      // Predicated region
      $region33: #{tpu_custom_call.1} parent=31 // pred_check
        %p178 = pneg %p31
      $region34: #{tpu_custom_call.1} parent=31 // pred_check_branch
        %180 = sbr.rel (%p178) target = $region36
      $region35: #{tpu_custom_call.1} parent=31 // pred_region
        %s181 = smul.u32 2, %s11
        %p182 = scmp.lt.s32.totalorder %s181, 3
        %s183 = scalar_select %p182, %s181, 3
        %s184 = smul.addr %s183, 8
        %s185 = scalar_lea.vmem %s0, %s184
        %s186 = smul.u32 2, %s11
      $region36: #{tpu_custom_call.1} parent=31 // pred_fallthru
        _
    $region32: #{tpu_custom_call.1} parent=5 // pred_fallthru
      _
    %p187 = scmp.le.s32.totalorder 1, %s11
    %p188 = scmp.lt.s32.totalorder %s11, 3
    %p189 = pnand %p187, %p188
    %p190 = pneg %p189
    // Predicated region
    $region37: #{tpu_custom_call.1} parent=5 // pred_check
      _
    $region38: #{tpu_custom_call.1} parent=5 // pred_check_branch
      %192 = sbr.rel (%p189) target = $region40
    $region39: #{tpu_custom_call.1} parent=5 // pred_region
      %s193 = ssub.s32 %s11, 1
      %s194 = smul.u32 2, %s16
      %p195 = scmp.lt.s32.totalorder %s194, 3
      %s196 = scalar_select %p195, %s194, 3
      %s197 = smul.addr %s196, 8
      %s198 = scalar_lea.vmem %s0, %s197
      %p199 = pneg %p37
      %p200 = pneg %p34
      %p201 = pneg %p58
      %p202 = pneg %p55
      %p203 = pneg %p79
      %p204 = pneg %p76
      %p205 = pneg %p100
      %p206 = pneg %p97
      %p207 = pneg %p121
      %p208 = pneg %p118
      %p209 = pneg %p147
      %p210 = pneg %p144
      %p211 = scmp.lt.s32.totalorder %s16, 1
      %s212 = scalar_select %p211, %s16, 1
      %s213 = smul.addr %s212, 2
      %s214 = smul.addr %s213, 8
      %s215 = scalar_lea.vmem %s5, %s214
      %s216 = smul.u32 2, %s16
      %p217 = scmp.lt.s32.totalorder %s216, 3
      %s218 = scalar_select %p217, %s216, 3
      %s219 = smul.addr %s218, 8
      %s220 = scalar_lea.vmem %s0, %s219
      %s221 = smul.u32 2, %s16
      %p222 = scmp.lt.s32.totalorder %s16, 1
      %s223 = scalar_select %p222, %s16, 1
      %s224 = smul.addr %s223, 2
      %s225 = smul.addr %s224, 8
      %s226 = scalar_lea.vmem %s5, %s225
      %v227 = vld [vmem:[%s220] sm:$0xff]
      %v228 = vld [vmem:[%s220 + $0x8] sm:$0xff]
      %229 = vrot.lane.b32.xlu0 %v227, 17
      %v230 = vpop.permute.xlu0 %229
      %231 = vrot.lane.b32.xlu0 %v228, 17
      %v232 = vpop.permute.xlu0 %231
      %v233 = vlaneseq
      %v234 = vand.u32 %v233, 127
      %vm235 = vcmp.lt.s32.totalorder %v234, 17
      %v236 = vsel %vm235, %v230, %v232
      %v237 = vsel %vm235, %v232, %v230
      %v238 = vld [vmem:[%s1] ss:$8 sm:$0x3]
      %v240 = vperm.slane %v238, 0
      %v241 = vperm.slane %v238, 1
      %v244 = vmul.f32 %v237, %v240
      %v245 = vmul.f32 %v236, %v241
      %v246 = vld [vmem:[%s3] sm:$0xff]
      %v247 = vld [vmem:[%s3 + $0x8] sm:$0xff]
      %248 = vrot.lane.b32.xlu0 %v227, 16
      %v249 = vpop.permute.xlu0 %248
      %250 = vrot.lane.b32.xlu0 %v228, 16
      %v251 = vpop.permute.xlu0 %250
      %vm252 = vcmp.lt.s32.totalorder %v234, 16
      %v253 = vsel %vm252, %v249, %v251
      %v254 = vsel %vm252, %v251, %v249
      %s255 = scalar_lea.vmem %s1, 1
      %v256 = vld [vmem:[%s255] ss:$8 sm:$0x3]
      %v258 = vperm.slane %v256, 0
      %v259 = vperm.slane %v256, 1
      %v262 = vmul.f32 %v254, %v258
      %v263 = vmul.f32 %v253, %v259
      %s264 = scalar_lea.vmem %s3, 16
      %v265 = vld [vmem:[%s264] sm:$0xff]
      %v266 = vld [vmem:[%s264 + $0x8] sm:$0xff]
      %vm267 = vcmask 64512
      %v269 = vsel %vm267, %v265, 0
      %v272 = vsel %vm267, %v266, 0
      %274 = vmatpush.msra.mxu0 0.0
      %275 = vmatpush.msra.mxu0 0.0
      %276 = vmatpush.msra.mxu0 0.0
      %277 = vmatpush.msra.mxu0 0.0
      %278 = vmatpush.msra.mxu0 0.0
      %279 = vmatpush.msra.mxu0 0.0
      %280 = vmatpush.msra.mxu0 0.0
      %281 = vmatpush.msra.mxu0 0.0
      %282 = vmatpush.msra.mxu0 0.0
      %283 = vmatpush.msra.mxu0 0.0
      %284 = vmatpush.msra.mxu0 0.0
      %285 = vmatpush.msra.mxu0 0.0
      %286 = vmatpush.msra.mxu0 0.0
      %287 = vmatpush.msra.mxu0 0.0
      %288 = vmatpush.msra.mxu0 0.0
      %289 = vmatpush.msra.mxu0 %v262
      %290 = vmatmul.f32.gmra.mxu0 %v269
      %v291 = vpop.f32.mrf.mxu0
      %v292 = vadd.f32 0.0, %v291
      %293 = vmatmul.f32.gmra.mxu0 %v272
      %v294 = vpop.f32.mrf.mxu0
      %v295 = vadd.f32 0.0, %v294
      %296 = vdwg.mxu0
      %297 = vmatpush.msra.mxu0 0.0
      %298 = vmatpush.msra.mxu0 0.0
      %299 = vmatpush.msra.mxu0 0.0
      %300 = vmatpush.msra.mxu0 0.0
      %301 = vmatpush.msra.mxu0 0.0
      %302 = vmatpush.msra.mxu0 0.0
      %303 = vmatpush.msra.mxu0 0.0
      %304 = vmatpush.msra.mxu0 0.0
      %305 = vmatpush.msra.mxu0 0.0
      %306 = vmatpush.msra.mxu0 0.0
      %307 = vmatpush.msra.mxu0 0.0
      %308 = vmatpush.msra.mxu0 0.0
      %309 = vmatpush.msra.mxu0 0.0
      %310 = vmatpush.msra.mxu0 0.0
      %311 = vmatpush.msra.mxu0 0.0
      %312 = vmatpush.msra.mxu0 %v263
      %313 = vmatmul.f32.gmra.mxu0 %v269
      %v314 = vpop.f32.mrf.mxu0
      %v315 = vadd.f32 0.0, %v314
      %316 = vmatmul.f32.gmra.mxu0 %v272
      %v317 = vpop.f32.mrf.mxu0
      %v318 = vadd.f32 0.0, %v317
      %319 = vdwg.mxu0
      %v321 = vsel %vm267, %v246, 0
      %v324 = vsel %vm267, %v247, 0
      %326 = vmatpush.msra.mxu0 0.0
      %327 = vmatpush.msra.mxu0 0.0
      %328 = vmatpush.msra.mxu0 0.0
      %329 = vmatpush.msra.mxu0 0.0
      %330 = vmatpush.msra.mxu0 0.0
      %331 = vmatpush.msra.mxu0 0.0
      %332 = vmatpush.msra.mxu0 0.0
      %333 = vmatpush.msra.mxu0 0.0
      %334 = vmatpush.msra.mxu0 0.0
      %335 = vmatpush.msra.mxu0 0.0
      %336 = vmatpush.msra.mxu0 0.0
      %337 = vmatpush.msra.mxu0 0.0
      %338 = vmatpush.msra.mxu0 0.0
      %339 = vmatpush.msra.mxu0 0.0
      %340 = vmatpush.msra.mxu0 0.0
      %341 = vmatpush.msra.mxu0 %v244
      %342 = vmatmul.f32.gmra.mxu0 %v321
      %v343 = vpop.f32.mrf.mxu0
      %v344 = vadd.f32 %v292, %v343
      %345 = vmatmul.f32.gmra.mxu0 %v324
      %v346 = vpop.f32.mrf.mxu0
      %v347 = vadd.f32 %v295, %v346
      %348 = vdwg.mxu0
      %349 = vmatpush.msra.mxu0 0.0
      %350 = vmatpush.msra.mxu0 0.0
      %351 = vmatpush.msra.mxu0 0.0
      %352 = vmatpush.msra.mxu0 0.0
      %353 = vmatpush.msra.mxu0 0.0
      %354 = vmatpush.msra.mxu0 0.0
      %355 = vmatpush.msra.mxu0 0.0
      %356 = vmatpush.msra.mxu0 0.0
      %357 = vmatpush.msra.mxu0 0.0
      %358 = vmatpush.msra.mxu0 0.0
      %359 = vmatpush.msra.mxu0 0.0
      %360 = vmatpush.msra.mxu0 0.0
      %361 = vmatpush.msra.mxu0 0.0
      %362 = vmatpush.msra.mxu0 0.0
      %363 = vmatpush.msra.mxu0 0.0
      %364 = vmatpush.msra.mxu0 %v245
      %365 = vmatmul.f32.gmra.mxu0 %v321
      %v366 = vpop.f32.mrf.mxu0
      %v367 = vadd.f32 %v315, %v366
      %368 = vmatmul.f32.gmra.mxu0 %v324
      %v369 = vpop.f32.mrf.mxu0
      %v370 = vadd.f32 %v318, %v369
      %371 = vdwg.mxu0
      %372 = vrot.lane.b32.xlu0 %v227, 15
      %v373 = vpop.permute.xlu0 %372
      %374 = vrot.lane.b32.xlu0 %v228, 15
      %v375 = vpop.permute.xlu0 %374
      %vm376 = vcmp.lt.s32.totalorder %v234, 15
      %v377 = vsel %vm376, %v373, %v375
      %v378 = vsel %vm376, %v375, %v373
      %s379 = scalar_lea.vmem %s1, 2
      %v380 = vld [vmem:[%s379] ss:$8 sm:$0x3]
      %v382 = vperm.slane %v380, 0
      %v383 = vperm.slane %v380, 1
      %v386 = vmul.f32 %v378, %v382
      %v387 = vmul.f32 %v377, %v383
      %s388 = scalar_lea.vmem %s3, 32
      %v389 = vld [vmem:[%s388] sm:$0xff]
      %v390 = vld [vmem:[%s388 + $0x8] sm:$0xff]
      %v392 = vsel %vm267, %v389, 0
      %v395 = vsel %vm267, %v390, 0
      %397 = vmatpush.msra.mxu0 0.0
      %398 = vmatpush.msra.mxu0 0.0
      %399 = vmatpush.msra.mxu0 0.0
      %400 = vmatpush.msra.mxu0 0.0
      %401 = vmatpush.msra.mxu0 0.0
      %402 = vmatpush.msra.mxu0 0.0
      %403 = vmatpush.msra.mxu0 0.0
      %404 = vmatpush.msra.mxu0 0.0
      %405 = vmatpush.msra.mxu0 0.0
      %406 = vmatpush.msra.mxu0 0.0
      %407 = vmatpush.msra.mxu0 0.0
      %408 = vmatpush.msra.mxu0 0.0
      %409 = vmatpush.msra.mxu0 0.0
      %410 = vmatpush.msra.mxu0 0.0
      %411 = vmatpush.msra.mxu0 0.0
      %412 = vmatpush.msra.mxu0 %v386
      %413 = vmatmul.f32.gmra.mxu0 %v392
      %v414 = vpop.f32.mrf.mxu0
      %v415 = vadd.f32 0.0, %v414
      %416 = vmatmul.f32.gmra.mxu0 %v395
      %v417 = vpop.f32.mrf.mxu0
      %v418 = vadd.f32 0.0, %v417
      %419 = vdwg.mxu0
      %420 = vmatpush.msra.mxu0 0.0
      %421 = vmatpush.msra.mxu0 0.0
      %422 = vmatpush.msra.mxu0 0.0
      %423 = vmatpush.msra.mxu0 0.0
      %424 = vmatpush.msra.mxu0 0.0
      %425 = vmatpush.msra.mxu0 0.0
      %426 = vmatpush.msra.mxu0 0.0
      %427 = vmatpush.msra.mxu0 0.0
      %428 = vmatpush.msra.mxu0 0.0
      %429 = vmatpush.msra.mxu0 0.0
      %430 = vmatpush.msra.mxu0 0.0
      %431 = vmatpush.msra.mxu0 0.0
      %432 = vmatpush.msra.mxu0 0.0
      %433 = vmatpush.msra.mxu0 0.0
      %434 = vmatpush.msra.mxu0 0.0
      %435 = vmatpush.msra.mxu0 %v387
      %436 = vmatmul.f32.gmra.mxu0 %v392
      %v437 = vpop.f32.mrf.mxu0
      %v438 = vadd.f32 0.0, %v437
      %439 = vmatmul.f32.gmra.mxu0 %v395
      %v440 = vpop.f32.mrf.mxu0
      %v441 = vadd.f32 0.0, %v440
      %442 = vdwg.mxu0
      %v443 = vadd.f32 %v344, %v415
      %v444 = vadd.f32 %v367, %v438
      %v445 = vadd.f32 %v347, %v418
      %v446 = vadd.f32 %v370, %v441
      %447 = vrot.lane.b32.xlu0 %v227, 1
      %v448 = vpop.permute.xlu0 %447
      %449 = vrot.lane.b32.xlu0 %v228, 1
      %v450 = vpop.permute.xlu0 %449
      %vm451 = vcmp.lt.s32.totalorder %v234, 1
      %v452 = vsel %vm451, %v448, %v450
      %v453 = vsel %vm451, %v450, %v448
      %s454 = scalar_lea.vmem %s1, 3
      %v455 = vld [vmem:[%s454] ss:$8 sm:$0x3]
      %v457 = vperm.slane %v455, 0
      %v458 = vperm.slane %v455, 1
      %v461 = vmul.f32 %v453, %v457
      %v462 = vmul.f32 %v452, %v458
      %s463 = scalar_lea.vmem %s3, 48
      %v464 = vld [vmem:[%s463] sm:$0xff]
      %v465 = vld [vmem:[%s463 + $0x8] sm:$0xff]
      %v467 = vsel %vm267, %v464, 0
      %v470 = vsel %vm267, %v465, 0
      %472 = vmatpush.msra.mxu0 0.0
      %473 = vmatpush.msra.mxu0 0.0
      %474 = vmatpush.msra.mxu0 0.0
      %475 = vmatpush.msra.mxu0 0.0
      %476 = vmatpush.msra.mxu0 0.0
      %477 = vmatpush.msra.mxu0 0.0
      %478 = vmatpush.msra.mxu0 0.0
      %479 = vmatpush.msra.mxu0 0.0
      %480 = vmatpush.msra.mxu0 0.0
      %481 = vmatpush.msra.mxu0 0.0
      %482 = vmatpush.msra.mxu0 0.0
      %483 = vmatpush.msra.mxu0 0.0
      %484 = vmatpush.msra.mxu0 0.0
      %485 = vmatpush.msra.mxu0 0.0
      %486 = vmatpush.msra.mxu0 0.0
      %487 = vmatpush.msra.mxu0 %v461
      %488 = vmatmul.f32.gmra.mxu0 %v467
      %v489 = vpop.f32.mrf.mxu0
      %v490 = vadd.f32 0.0, %v489
      %491 = vmatmul.f32.gmra.mxu0 %v470
      %v492 = vpop.f32.mrf.mxu0
      %v493 = vadd.f32 0.0, %v492
      %494 = vdwg.mxu0
      %495 = vmatpush.msra.mxu0 0.0
      %496 = vmatpush.msra.mxu0 0.0
      %497 = vmatpush.msra.mxu0 0.0
      %498 = vmatpush.msra.mxu0 0.0
      %499 = vmatpush.msra.mxu0 0.0
      %500 = vmatpush.msra.mxu0 0.0
      %501 = vmatpush.msra.mxu0 0.0
      %502 = vmatpush.msra.mxu0 0.0
      %503 = vmatpush.msra.mxu0 0.0
      %504 = vmatpush.msra.mxu0 0.0
      %505 = vmatpush.msra.mxu0 0.0
      %506 = vmatpush.msra.mxu0 0.0
      %507 = vmatpush.msra.mxu0 0.0
      %508 = vmatpush.msra.mxu0 0.0
      %509 = vmatpush.msra.mxu0 0.0
      %510 = vmatpush.msra.mxu0 %v462
      %511 = vmatmul.f32.gmra.mxu0 %v467
      %v512 = vpop.f32.mrf.mxu0
      %v513 = vadd.f32 0.0, %v512
      %514 = vmatmul.f32.gmra.mxu0 %v470
      %v515 = vpop.f32.mrf.mxu0
      %v516 = vadd.f32 0.0, %v515
      %517 = vdwg.mxu0
      %v518 = vadd.f32 %v443, %v490
      %v519 = vadd.f32 %v444, %v513
      %v520 = vadd.f32 %v445, %v493
      %v521 = vadd.f32 %v446, %v516
      %s522 = scalar_lea.vmem %s3, 64
      %v523 = vld [vmem:[%s522] sm:$0xff]
      %v524 = vld [vmem:[%s522 + $0x8] sm:$0xff]
      %v526 = vsel %vm267, %v523, 0
      %v529 = vsel %vm267, %v524, 0
      %531 = vmatpush.msra.mxu0 0.0
      %532 = vmatpush.msra.mxu0 0.0
      %533 = vmatpush.msra.mxu0 0.0
      %534 = vmatpush.msra.mxu0 0.0
      %535 = vmatpush.msra.mxu0 0.0
      %536 = vmatpush.msra.mxu0 0.0
      %537 = vmatpush.msra.mxu0 0.0
      %538 = vmatpush.msra.mxu0 0.0
      %539 = vmatpush.msra.mxu0 0.0
      %540 = vmatpush.msra.mxu0 0.0
      %541 = vmatpush.msra.mxu0 0.0
      %542 = vmatpush.msra.mxu0 0.0
      %543 = vmatpush.msra.mxu0 0.0
      %544 = vmatpush.msra.mxu0 0.0
      %545 = vmatpush.msra.mxu0 0.0
      %546 = vmatpush.msra.mxu0 %v227
      %547 = vmatmul.f32.gmra.mxu0 %v526
      %v548 = vpop.f32.mrf.mxu0
      %v549 = vadd.f32 0.0, %v548
      %550 = vmatmul.f32.gmra.mxu0 %v529
      %v551 = vpop.f32.mrf.mxu0
      %v552 = vadd.f32 0.0, %v551
      %553 = vdwg.mxu0
      %554 = vmatpush.msra.mxu0 0.0
      %555 = vmatpush.msra.mxu0 0.0
      %556 = vmatpush.msra.mxu0 0.0
      %557 = vmatpush.msra.mxu0 0.0
      %558 = vmatpush.msra.mxu0 0.0
      %559 = vmatpush.msra.mxu0 0.0
      %560 = vmatpush.msra.mxu0 0.0
      %561 = vmatpush.msra.mxu0 0.0
      %562 = vmatpush.msra.mxu0 0.0
      %563 = vmatpush.msra.mxu0 0.0
      %564 = vmatpush.msra.mxu0 0.0
      %565 = vmatpush.msra.mxu0 0.0
      %566 = vmatpush.msra.mxu0 0.0
      %567 = vmatpush.msra.mxu0 0.0
      %568 = vmatpush.msra.mxu0 0.0
      %569 = vmatpush.msra.mxu0 %v228
      %570 = vmatmul.f32.gmra.mxu0 %v526
      %v571 = vpop.f32.mrf.mxu0
      %v572 = vadd.f32 0.0, %v571
      %573 = vmatmul.f32.gmra.mxu0 %v529
      %v574 = vpop.f32.mrf.mxu0
      %v575 = vadd.f32 0.0, %v574
      %576 = vdwg.mxu0
      %v577 = vadd.f32 %v518, %v549
      %v578 = vadd.f32 %v519, %v572
      %v579 = vadd.f32 %v520, %v552
      %v580 = vadd.f32 %v521, %v575
      %581 = vrot.lane.b32.xlu0 %v227, 127
      %v582 = vpop.permute.xlu0 %581
      %583 = vrot.lane.b32.xlu0 %v228, 127
      %v584 = vpop.permute.xlu0 %583
      %vm585 = vcmp.lt.s32.totalorder %v234, 127
      %v586 = vsel %vm585, %v582, %v584
      %v587 = vsel %vm585, %v584, %v582
      %s588 = scalar_lea.vmem %s1, 5
      %v589 = vld [vmem:[%s588] ss:$8 sm:$0x3]
      %v591 = vperm.slane %v589, 0
      %v592 = vperm.slane %v589, 1
      %v595 = vmul.f32 %v586, %v591
      %v596 = vmul.f32 %v587, %v592
      %s597 = scalar_lea.vmem %s3, 80
      %v598 = vld [vmem:[%s597] sm:$0xff]
      %v599 = vld [vmem:[%s597 + $0x8] sm:$0xff]
      %v601 = vsel %vm267, %v598, 0
      %v604 = vsel %vm267, %v599, 0
      %606 = vmatpush.msra.mxu0 0.0
      %607 = vmatpush.msra.mxu0 0.0
      %608 = vmatpush.msra.mxu0 0.0
      %609 = vmatpush.msra.mxu0 0.0
      %610 = vmatpush.msra.mxu0 0.0
      %611 = vmatpush.msra.mxu0 0.0
      %612 = vmatpush.msra.mxu0 0.0
      %613 = vmatpush.msra.mxu0 0.0
      %614 = vmatpush.msra.mxu0 0.0
      %615 = vmatpush.msra.mxu0 0.0
      %616 = vmatpush.msra.mxu0 0.0
      %617 = vmatpush.msra.mxu0 0.0
      %618 = vmatpush.msra.mxu0 0.0
      %619 = vmatpush.msra.mxu0 0.0
      %620 = vmatpush.msra.mxu0 0.0
      %621 = vmatpush.msra.mxu0 %v595
      %622 = vmatmul.f32.gmra.mxu0 %v601
      %v623 = vpop.f32.mrf.mxu0
      %v624 = vadd.f32 0.0, %v623
      %625 = vmatmul.f32.gmra.mxu0 %v604
      %v626 = vpop.f32.mrf.mxu0
      %v627 = vadd.f32 0.0, %v626
      %628 = vdwg.mxu0
      %629 = vmatpush.msra.mxu0 0.0
      %630 = vmatpush.msra.mxu0 0.0
      %631 = vmatpush.msra.mxu0 0.0
      %632 = vmatpush.msra.mxu0 0.0
      %633 = vmatpush.msra.mxu0 0.0
      %634 = vmatpush.msra.mxu0 0.0
      %635 = vmatpush.msra.mxu0 0.0
      %636 = vmatpush.msra.mxu0 0.0
      %637 = vmatpush.msra.mxu0 0.0
      %638 = vmatpush.msra.mxu0 0.0
      %639 = vmatpush.msra.mxu0 0.0
      %640 = vmatpush.msra.mxu0 0.0
      %641 = vmatpush.msra.mxu0 0.0
      %642 = vmatpush.msra.mxu0 0.0
      %643 = vmatpush.msra.mxu0 0.0
      %644 = vmatpush.msra.mxu0 %v596
      %645 = vmatmul.f32.gmra.mxu0 %v601
      %v646 = vpop.f32.mrf.mxu0
      %v647 = vadd.f32 0.0, %v646
      %648 = vmatmul.f32.gmra.mxu0 %v604
      %v649 = vpop.f32.mrf.mxu0
      %v650 = vadd.f32 0.0, %v649
      %651 = vdwg.mxu0
      %v652 = vadd.f32 %v577, %v624
      %v653 = vadd.f32 %v578, %v647
      %v654 = vadd.f32 %v579, %v627
      %v655 = vadd.f32 %v580, %v650
      %656 = vrot.lane.b32.xlu0 %v227, 113
      %v657 = vpop.permute.xlu0 %656
      %658 = vrot.lane.b32.xlu0 %v228, 113
      %v659 = vpop.permute.xlu0 %658
      %vm660 = vcmp.lt.s32.totalorder %v234, 113
      %v661 = vsel %vm660, %v657, %v659
      %v662 = vsel %vm660, %v659, %v657
      %s663 = scalar_lea.vmem %s1, 6
      %v664 = vld [vmem:[%s663] ss:$8 sm:$0x3]
      %v666 = vperm.slane %v664, 0
      %v667 = vperm.slane %v664, 1
      %v670 = vmul.f32 %v661, %v666
      %v671 = vmul.f32 %v662, %v667
      %s672 = scalar_lea.vmem %s3, 96
      %v673 = vld [vmem:[%s672] sm:$0xff]
      %v674 = vld [vmem:[%s672 + $0x8] sm:$0xff]
      %v676 = vsel %vm267, %v673, 0
      %v679 = vsel %vm267, %v674, 0
      %681 = vmatpush.msra.mxu0 0.0
      %682 = vmatpush.msra.mxu0 0.0
      %683 = vmatpush.msra.mxu0 0.0
      %684 = vmatpush.msra.mxu0 0.0
      %685 = vmatpush.msra.mxu0 0.0
      %686 = vmatpush.msra.mxu0 0.0
      %687 = vmatpush.msra.mxu0 0.0
      %688 = vmatpush.msra.mxu0 0.0
      %689 = vmatpush.msra.mxu0 0.0
      %690 = vmatpush.msra.mxu0 0.0
      %691 = vmatpush.msra.mxu0 0.0
      %692 = vmatpush.msra.mxu0 0.0
      %693 = vmatpush.msra.mxu0 0.0
      %694 = vmatpush.msra.mxu0 0.0
      %695 = vmatpush.msra.mxu0 0.0
      %696 = vmatpush.msra.mxu0 %v670
      %697 = vmatmul.f32.gmra.mxu0 %v676
      %v698 = vpop.f32.mrf.mxu0
      %v699 = vadd.f32 0.0, %v698
      %700 = vmatmul.f32.gmra.mxu0 %v679
      %v701 = vpop.f32.mrf.mxu0
      %v702 = vadd.f32 0.0, %v701
      %703 = vdwg.mxu0
      %704 = vmatpush.msra.mxu0 0.0
      %705 = vmatpush.msra.mxu0 0.0
      %706 = vmatpush.msra.mxu0 0.0
      %707 = vmatpush.msra.mxu0 0.0
      %708 = vmatpush.msra.mxu0 0.0
      %709 = vmatpush.msra.mxu0 0.0
      %710 = vmatpush.msra.mxu0 0.0
      %711 = vmatpush.msra.mxu0 0.0
      %712 = vmatpush.msra.mxu0 0.0
      %713 = vmatpush.msra.mxu0 0.0
      %714 = vmatpush.msra.mxu0 0.0
      %715 = vmatpush.msra.mxu0 0.0
      %716 = vmatpush.msra.mxu0 0.0
      %717 = vmatpush.msra.mxu0 0.0
      %718 = vmatpush.msra.mxu0 0.0
      %719 = vmatpush.msra.mxu0 %v671
      %720 = vmatmul.f32.gmra.mxu0 %v676
      %v721 = vpop.f32.mrf.mxu0
      %v722 = vadd.f32 0.0, %v721
      %723 = vmatmul.f32.gmra.mxu0 %v679
      %v724 = vpop.f32.mrf.mxu0
      %v725 = vadd.f32 0.0, %v724
      %726 = vdwg.mxu0
      %v727 = vadd.f32 %v652, %v699
      %v728 = vadd.f32 %v653, %v722
      %v729 = vadd.f32 %v654, %v702
      %v730 = vadd.f32 %v655, %v725
      %731 = vrot.lane.b32.xlu0 %v227, 112
      %v732 = vpop.permute.xlu0 %731
      %733 = vrot.lane.b32.xlu0 %v228, 112
      %v734 = vpop.permute.xlu0 %733
      %vm735 = vcmp.lt.s32.totalorder %v234, 112
      %v736 = vsel %vm735, %v732, %v734
      %v737 = vsel %vm735, %v734, %v732
      %s738 = scalar_lea.vmem %s1, 7
      %v739 = vld [vmem:[%s738] ss:$8 sm:$0x3]
      %v741 = vperm.slane %v739, 0
      %v742 = vperm.slane %v739, 1
      %v745 = vmul.f32 %v736, %v741
      %v746 = vmul.f32 %v737, %v742
      %s747 = scalar_lea.vmem %s3, 112
      %v748 = vld [vmem:[%s747] sm:$0xff]
      %v749 = vld [vmem:[%s747 + $0x8] sm:$0xff]
      %v751 = vsel %vm267, %v748, 0
      %v754 = vsel %vm267, %v749, 0
      %756 = vmatpush.msra.mxu0 0.0
      %757 = vmatpush.msra.mxu0 0.0
      %758 = vmatpush.msra.mxu0 0.0
      %759 = vmatpush.msra.mxu0 0.0
      %760 = vmatpush.msra.mxu0 0.0
      %761 = vmatpush.msra.mxu0 0.0
      %762 = vmatpush.msra.mxu0 0.0
      %763 = vmatpush.msra.mxu0 0.0
      %764 = vmatpush.msra.mxu0 0.0
      %765 = vmatpush.msra.mxu0 0.0
      %766 = vmatpush.msra.mxu0 0.0
      %767 = vmatpush.msra.mxu0 0.0
      %768 = vmatpush.msra.mxu0 0.0
      %769 = vmatpush.msra.mxu0 0.0
      %770 = vmatpush.msra.mxu0 0.0
      %771 = vmatpush.msra.mxu0 %v745
      %772 = vmatmul.f32.gmra.mxu0 %v751
      %v773 = vpop.f32.mrf.mxu0
      %v774 = vadd.f32 0.0, %v773
      %775 = vmatmul.f32.gmra.mxu0 %v754
      %v776 = vpop.f32.mrf.mxu0
      %v777 = vadd.f32 0.0, %v776
      %778 = vdwg.mxu0
      %779 = vmatpush.msra.mxu0 0.0
      %780 = vmatpush.msra.mxu0 0.0
      %781 = vmatpush.msra.mxu0 0.0
      %782 = vmatpush.msra.mxu0 0.0
      %783 = vmatpush.msra.mxu0 0.0
      %784 = vmatpush.msra.mxu0 0.0
      %785 = vmatpush.msra.mxu0 0.0
      %786 = vmatpush.msra.mxu0 0.0
      %787 = vmatpush.msra.mxu0 0.0
      %788 = vmatpush.msra.mxu0 0.0
      %789 = vmatpush.msra.mxu0 0.0
      %790 = vmatpush.msra.mxu0 0.0
      %791 = vmatpush.msra.mxu0 0.0
      %792 = vmatpush.msra.mxu0 0.0
      %793 = vmatpush.msra.mxu0 0.0
      %794 = vmatpush.msra.mxu0 %v746
      %795 = vmatmul.f32.gmra.mxu0 %v751
      %v796 = vpop.f32.mrf.mxu0
      %v797 = vadd.f32 0.0, %v796
      %798 = vmatmul.f32.gmra.mxu0 %v754
      %v799 = vpop.f32.mrf.mxu0
      %v800 = vadd.f32 0.0, %v799
      %801 = vdwg.mxu0
      %v802 = vadd.f32 %v727, %v774
      %v803 = vadd.f32 %v728, %v797
      %v804 = vadd.f32 %v729, %v777
      %v805 = vadd.f32 %v730, %v800
      %806 = vrot.lane.b32.xlu0 %v227, 111
      %v807 = vpop.permute.xlu0 %806
      %808 = vrot.lane.b32.xlu0 %v228, 111
      %v809 = vpop.permute.xlu0 %808
      %vm810 = vcmp.lt.s32.totalorder %v234, 111
      %v811 = vsel %vm810, %v807, %v809
      %v812 = vsel %vm810, %v809, %v807
      %s813 = scalar_lea.vmem %s1, 16
      %v814 = vld [vmem:[%s813] ss:$8 sm:$0x3]
      %v816 = vperm.slane %v814, 0
      %v817 = vperm.slane %v814, 1
      %v820 = vmul.f32 %v811, %v816
      %v821 = vmul.f32 %v812, %v817
      %s822 = scalar_lea.vmem %s3, 128
      %v823 = vld [vmem:[%s822] sm:$0xff]
      %v824 = vld [vmem:[%s822 + $0x8] sm:$0xff]
      %v826 = vsel %vm267, %v823, 0
      %v829 = vsel %vm267, %v824, 0
      %831 = vmatpush.msra.mxu0 0.0
      %832 = vmatpush.msra.mxu0 0.0
      %833 = vmatpush.msra.mxu0 0.0
      %834 = vmatpush.msra.mxu0 0.0
      %835 = vmatpush.msra.mxu0 0.0
      %836 = vmatpush.msra.mxu0 0.0
      %837 = vmatpush.msra.mxu0 0.0
      %838 = vmatpush.msra.mxu0 0.0
      %839 = vmatpush.msra.mxu0 0.0
      %840 = vmatpush.msra.mxu0 0.0
      %841 = vmatpush.msra.mxu0 0.0
      %842 = vmatpush.msra.mxu0 0.0
      %843 = vmatpush.msra.mxu0 0.0
      %844 = vmatpush.msra.mxu0 0.0
      %845 = vmatpush.msra.mxu0 0.0
      %846 = vmatpush.msra.mxu0 %v820
      %847 = vmatmul.f32.gmra.mxu0 %v826
      %v848 = vpop.f32.mrf.mxu0
      %v849 = vadd.f32 0.0, %v848
      %850 = vmatmul.f32.gmra.mxu0 %v829
      %v851 = vpop.f32.mrf.mxu0
      %v852 = vadd.f32 0.0, %v851
      %853 = vdwg.mxu0
      %854 = vmatpush.msra.mxu0 0.0
      %855 = vmatpush.msra.mxu0 0.0
      %856 = vmatpush.msra.mxu0 0.0
      %857 = vmatpush.msra.mxu0 0.0
      %858 = vmatpush.msra.mxu0 0.0
      %859 = vmatpush.msra.mxu0 0.0
      %860 = vmatpush.msra.mxu0 0.0
      %861 = vmatpush.msra.mxu0 0.0
      %862 = vmatpush.msra.mxu0 0.0
      %863 = vmatpush.msra.mxu0 0.0
      %864 = vmatpush.msra.mxu0 0.0
      %865 = vmatpush.msra.mxu0 0.0
      %866 = vmatpush.msra.mxu0 0.0
      %867 = vmatpush.msra.mxu0 0.0
      %868 = vmatpush.msra.mxu0 0.0
      %869 = vmatpush.msra.mxu0 %v821
      %870 = vmatmul.f32.gmra.mxu0 %v826
      %v871 = vpop.f32.mrf.mxu0
      %v872 = vadd.f32 0.0, %v871
      %873 = vmatmul.f32.gmra.mxu0 %v829
      %v874 = vpop.f32.mrf.mxu0
      %v875 = vadd.f32 0.0, %v874
      %876 = vdwg.mxu0
      %v877 = vadd.f32 %v802, %v849
      %v878 = vadd.f32 %v803, %v872
      %v879 = vadd.f32 %v804, %v852
      %v880 = vadd.f32 %v805, %v875
      %v881 = vmax.f32 %v877, 0.0
      %v882 = vmax.f32 %v878, 0.0
      %v883 = vmax.f32 %v879, 0.0
      %v884 = vmax.f32 %v880, 0.0
      %885 = vrot.lane.b32.xlu0 %v881, 17
      %v886 = vpop.permute.xlu0 %885
      %887 = vrot.lane.b32.xlu0 %v883, 17
      %v888 = vpop.permute.xlu0 %887
      %889 = vrot.lane.b32.xlu0 %v882, 17
      %v890 = vpop.permute.xlu0 %889
      %891 = vrot.lane.b32.xlu0 %v884, 17
      %v892 = vpop.permute.xlu0 %891
      %v893 = vsel %vm235, %v886, %v890
      %v894 = vsel %vm235, %v888, %v892
      %v895 = vsel %vm235, %v890, %v886
      %v896 = vsel %vm235, %v892, %v888
      %v897 = vmul.f32 %v895, %v240
      %v898 = vmul.f32 %v893, %v241
      %v899 = vmul.f32 %v896, %v240
      %v900 = vmul.f32 %v894, %v241
      %v901 = vld [vmem:[%s4] sm:$0xff]
      %v902 = vld [vmem:[%s4 + $0x8] sm:$0xff]
      %903 = vrot.lane.b32.xlu0 %v881, 16
      %v904 = vpop.permute.xlu0 %903
      %905 = vrot.lane.b32.xlu0 %v883, 16
      %v906 = vpop.permute.xlu0 %905
      %907 = vrot.lane.b32.xlu0 %v882, 16
      %v908 = vpop.permute.xlu0 %907
      %909 = vrot.lane.b32.xlu0 %v884, 16
      %v910 = vpop.permute.xlu0 %909
      %v911 = vsel %vm252, %v904, %v908
      %v912 = vsel %vm252, %v906, %v910
      %v913 = vsel %vm252, %v908, %v904
      %v914 = vsel %vm252, %v910, %v906
      %v915 = vmul.f32 %v913, %v258
      %v916 = vmul.f32 %v911, %v259
      %v917 = vmul.f32 %v914, %v258
      %v918 = vmul.f32 %v912, %v259
      %s919 = scalar_lea.vmem %s4, 16
      %v920 = vld [vmem:[%s919] sm:$0xff]
      %v921 = vld [vmem:[%s919 + $0x8] sm:$0xff]
      %vm922 = vcmask 130048
      %v924 = vsel %vm922, %v920, 0
      %v927 = vsel %vm922, %v921, 0
      %929 = vmatpush.msra.mxu0 0.0
      %930 = vmatpush.msra.mxu0 0.0
      %931 = vmatpush.msra.mxu0 0.0
      %932 = vmatpush.msra.mxu0 0.0
      %933 = vmatpush.msra.mxu0 0.0
      %934 = vmatpush.msra.mxu0 0.0
      %935 = vmatpush.msra.mxu0 0.0
      %936 = vmatpush.msra.mxu0 0.0
      %937 = vmatpush.msra.mxu0 0.0
      %938 = vmatpush.msra.mxu0 0.0
      %939 = vmatpush.msra.mxu0 0.0
      %940 = vmatpush.msra.mxu0 0.0
      %941 = vmatpush.msra.mxu0 0.0
      %942 = vmatpush.msra.mxu0 0.0
      %943 = vmatpush.msra.mxu0 %v917
      %944 = vmatpush.msra.mxu0 %v915
      %945 = vmatmul.f32.gmra.mxu0 %v924
      %v946 = vpop.f32.mrf.mxu0
      %v947 = vadd.f32 0.0, %v946
      %948 = vmatmul.f32.gmra.mxu0 %v927
      %v949 = vpop.f32.mrf.mxu0
      %v950 = vadd.f32 0.0, %v949
      %951 = vdwg.mxu0
      %952 = vmatpush.msra.mxu0 0.0
      %953 = vmatpush.msra.mxu0 0.0
      %954 = vmatpush.msra.mxu0 0.0
      %955 = vmatpush.msra.mxu0 0.0
      %956 = vmatpush.msra.mxu0 0.0
      %957 = vmatpush.msra.mxu0 0.0
      %958 = vmatpush.msra.mxu0 0.0
      %959 = vmatpush.msra.mxu0 0.0
      %960 = vmatpush.msra.mxu0 0.0
      %961 = vmatpush.msra.mxu0 0.0
      %962 = vmatpush.msra.mxu0 0.0
      %963 = vmatpush.msra.mxu0 0.0
      %964 = vmatpush.msra.mxu0 0.0
      %965 = vmatpush.msra.mxu0 0.0
      %966 = vmatpush.msra.mxu0 %v918
      %967 = vmatpush.msra.mxu0 %v916
      %968 = vmatmul.f32.gmra.mxu0 %v924
      %v969 = vpop.f32.mrf.mxu0
      %v970 = vadd.f32 0.0, %v969
      %971 = vmatmul.f32.gmra.mxu0 %v927
      %v972 = vpop.f32.mrf.mxu0
      %v973 = vadd.f32 0.0, %v972
      %974 = vdwg.mxu0
      %v976 = vsel %vm922, %v901, 0
      %v979 = vsel %vm922, %v902, 0
      %981 = vmatpush.msra.mxu0 0.0
      %982 = vmatpush.msra.mxu0 0.0
      %983 = vmatpush.msra.mxu0 0.0
      %984 = vmatpush.msra.mxu0 0.0
      %985 = vmatpush.msra.mxu0 0.0
      %986 = vmatpush.msra.mxu0 0.0
      %987 = vmatpush.msra.mxu0 0.0
      %988 = vmatpush.msra.mxu0 0.0
      %989 = vmatpush.msra.mxu0 0.0
      %990 = vmatpush.msra.mxu0 0.0
      %991 = vmatpush.msra.mxu0 0.0
      %992 = vmatpush.msra.mxu0 0.0
      %993 = vmatpush.msra.mxu0 0.0
      %994 = vmatpush.msra.mxu0 0.0
      %995 = vmatpush.msra.mxu0 %v899
      %996 = vmatpush.msra.mxu0 %v897
      %997 = vmatmul.f32.gmra.mxu0 %v976
      %v998 = vpop.f32.mrf.mxu0
      %v999 = vadd.f32 %v947, %v998
      %1000 = vmatmul.f32.gmra.mxu0 %v979
      %v1001 = vpop.f32.mrf.mxu0
      %v1002 = vadd.f32 %v950, %v1001
      %1003 = vdwg.mxu0
      %1004 = vmatpush.msra.mxu0 0.0
      %1005 = vmatpush.msra.mxu0 0.0
      %1006 = vmatpush.msra.mxu0 0.0
      %1007 = vmatpush.msra.mxu0 0.0
      %1008 = vmatpush.msra.mxu0 0.0
      %1009 = vmatpush.msra.mxu0 0.0
      %1010 = vmatpush.msra.mxu0 0.0
      %1011 = vmatpush.msra.mxu0 0.0
      %1012 = vmatpush.msra.mxu0 0.0
      %1013 = vmatpush.msra.mxu0 0.0
      %1014 = vmatpush.msra.mxu0 0.0
      %1015 = vmatpush.msra.mxu0 0.0
      %1016 = vmatpush.msra.mxu0 0.0
      %1017 = vmatpush.msra.mxu0 0.0
      %1018 = vmatpush.msra.mxu0 %v900
      %1019 = vmatpush.msra.mxu0 %v898
      %1020 = vmatmul.f32.gmra.mxu0 %v976
      %v1021 = vpop.f32.mrf.mxu0
      %v1022 = vadd.f32 %v970, %v1021
      %1023 = vmatmul.f32.gmra.mxu0 %v979
      %v1024 = vpop.f32.mrf.mxu0
      %v1025 = vadd.f32 %v973, %v1024
      %1026 = vdwg.mxu0
      %1027 = vrot.lane.b32.xlu0 %v881, 15
      %v1028 = vpop.permute.xlu0 %1027
      %1029 = vrot.lane.b32.xlu0 %v883, 15
      %v1030 = vpop.permute.xlu0 %1029
      %1031 = vrot.lane.b32.xlu0 %v882, 15
      %v1032 = vpop.permute.xlu0 %1031
      %1033 = vrot.lane.b32.xlu0 %v884, 15
      %v1034 = vpop.permute.xlu0 %1033
      %v1035 = vsel %vm376, %v1028, %v1032
      %v1036 = vsel %vm376, %v1030, %v1034
      %v1037 = vsel %vm376, %v1032, %v1028
      %v1038 = vsel %vm376, %v1034, %v1030
      %v1039 = vmul.f32 %v1037, %v382
      %v1040 = vmul.f32 %v1035, %v383
      %v1041 = vmul.f32 %v1038, %v382
      %v1042 = vmul.f32 %v1036, %v383
      %s1043 = scalar_lea.vmem %s4, 32
      %v1044 = vld [vmem:[%s1043] sm:$0xff]
      %v1045 = vld [vmem:[%s1043 + $0x8] sm:$0xff]
      %v1047 = vsel %vm922, %v1044, 0
      %v1050 = vsel %vm922, %v1045, 0
      %1052 = vmatpush.msra.mxu0 0.0
      %1053 = vmatpush.msra.mxu0 0.0
      %1054 = vmatpush.msra.mxu0 0.0
      %1055 = vmatpush.msra.mxu0 0.0
      %1056 = vmatpush.msra.mxu0 0.0
      %1057 = vmatpush.msra.mxu0 0.0
      %1058 = vmatpush.msra.mxu0 0.0
      %1059 = vmatpush.msra.mxu0 0.0
      %1060 = vmatpush.msra.mxu0 0.0
      %1061 = vmatpush.msra.mxu0 0.0
      %1062 = vmatpush.msra.mxu0 0.0
      %1063 = vmatpush.msra.mxu0 0.0
      %1064 = vmatpush.msra.mxu0 0.0
      %1065 = vmatpush.msra.mxu0 0.0
      %1066 = vmatpush.msra.mxu0 %v1041
      %1067 = vmatpush.msra.mxu0 %v1039
      %1068 = vmatmul.f32.gmra.mxu0 %v1047
      %v1069 = vpop.f32.mrf.mxu0
      %v1070 = vadd.f32 0.0, %v1069
      %1071 = vmatmul.f32.gmra.mxu0 %v1050
      %v1072 = vpop.f32.mrf.mxu0
      %v1073 = vadd.f32 0.0, %v1072
      %1074 = vdwg.mxu0
      %1075 = vmatpush.msra.mxu0 0.0
      %1076 = vmatpush.msra.mxu0 0.0
      %1077 = vmatpush.msra.mxu0 0.0
      %1078 = vmatpush.msra.mxu0 0.0
      %1079 = vmatpush.msra.mxu0 0.0
      %1080 = vmatpush.msra.mxu0 0.0
      %1081 = vmatpush.msra.mxu0 0.0
      %1082 = vmatpush.msra.mxu0 0.0
      %1083 = vmatpush.msra.mxu0 0.0
      %1084 = vmatpush.msra.mxu0 0.0
      %1085 = vmatpush.msra.mxu0 0.0
      %1086 = vmatpush.msra.mxu0 0.0
      %1087 = vmatpush.msra.mxu0 0.0
      %1088 = vmatpush.msra.mxu0 0.0
      %1089 = vmatpush.msra.mxu0 %v1042
      %1090 = vmatpush.msra.mxu0 %v1040
      %1091 = vmatmul.f32.gmra.mxu0 %v1047
      %v1092 = vpop.f32.mrf.mxu0
      %v1093 = vadd.f32 0.0, %v1092
      %1094 = vmatmul.f32.gmra.mxu0 %v1050
      %v1095 = vpop.f32.mrf.mxu0
      %v1096 = vadd.f32 0.0, %v1095
      %1097 = vdwg.mxu0
      %v1098 = vadd.f32 %v999, %v1070
      %v1099 = vadd.f32 %v1022, %v1093
      %v1100 = vadd.f32 %v1002, %v1073
      %v1101 = vadd.f32 %v1025, %v1096
      %1102 = vrot.lane.b32.xlu0 %v881, 1
      %v1103 = vpop.permute.xlu0 %1102
      %1104 = vrot.lane.b32.xlu0 %v883, 1
      %v1105 = vpop.permute.xlu0 %1104
      %1106 = vrot.lane.b32.xlu0 %v882, 1
      %v1107 = vpop.permute.xlu0 %1106
      %1108 = vrot.lane.b32.xlu0 %v884, 1
      %v1109 = vpop.permute.xlu0 %1108
      %v1110 = vsel %vm451, %v1103, %v1107
      %v1111 = vsel %vm451, %v1105, %v1109
      %v1112 = vsel %vm451, %v1107, %v1103
      %v1113 = vsel %vm451, %v1109, %v1105
      %v1114 = vmul.f32 %v1112, %v457
      %v1115 = vmul.f32 %v1110, %v458
      %v1116 = vmul.f32 %v1113, %v457
      %v1117 = vmul.f32 %v1111, %v458
      %s1118 = scalar_lea.vmem %s4, 48
      %v1119 = vld [vmem:[%s1118] sm:$0xff]
      %v1120 = vld [vmem:[%s1118 + $0x8] sm:$0xff]
      %v1122 = vsel %vm922, %v1119, 0
      %v1125 = vsel %vm922, %v1120, 0
      %1127 = vmatpush.msra.mxu0 0.0
      %1128 = vmatpush.msra.mxu0 0.0
      %1129 = vmatpush.msra.mxu0 0.0
      %1130 = vmatpush.msra.mxu0 0.0
      %1131 = vmatpush.msra.mxu0 0.0
      %1132 = vmatpush.msra.mxu0 0.0
      %1133 = vmatpush.msra.mxu0 0.0
      %1134 = vmatpush.msra.mxu0 0.0
      %1135 = vmatpush.msra.mxu0 0.0
      %1136 = vmatpush.msra.mxu0 0.0
      %1137 = vmatpush.msra.mxu0 0.0
      %1138 = vmatpush.msra.mxu0 0.0
      %1139 = vmatpush.msra.mxu0 0.0
      %1140 = vmatpush.msra.mxu0 0.0
      %1141 = vmatpush.msra.mxu0 %v1116
      %1142 = vmatpush.msra.mxu0 %v1114
      %1143 = vmatmul.f32.gmra.mxu0 %v1122
      %v1144 = vpop.f32.mrf.mxu0
      %v1145 = vadd.f32 0.0, %v1144
      %1146 = vmatmul.f32.gmra.mxu0 %v1125
      %v1147 = vpop.f32.mrf.mxu0
      %v1148 = vadd.f32 0.0, %v1147
      %1149 = vdwg.mxu0
      %1150 = vmatpush.msra.mxu0 0.0
      %1151 = vmatpush.msra.mxu0 0.0
      %1152 = vmatpush.msra.mxu0 0.0
      %1153 = vmatpush.msra.mxu0 0.0
      %1154 = vmatpush.msra.mxu0 0.0
      %1155 = vmatpush.msra.mxu0 0.0
      %1156 = vmatpush.msra.mxu0 0.0
      %1157 = vmatpush.msra.mxu0 0.0
      %1158 = vmatpush.msra.mxu0 0.0
      %1159 = vmatpush.msra.mxu0 0.0
      %1160 = vmatpush.msra.mxu0 0.0
      %1161 = vmatpush.msra.mxu0 0.0
      %1162 = vmatpush.msra.mxu0 0.0
      %1163 = vmatpush.msra.mxu0 0.0
      %1164 = vmatpush.msra.mxu0 %v1117
      %1165 = vmatpush.msra.mxu0 %v1115
      %1166 = vmatmul.f32.gmra.mxu0 %v1122
      %v1167 = vpop.f32.mrf.mxu0
      %v1168 = vadd.f32 0.0, %v1167
      %1169 = vmatmul.f32.gmra.mxu0 %v1125
      %v1170 = vpop.f32.mrf.mxu0
      %v1171 = vadd.f32 0.0, %v1170
      %1172 = vdwg.mxu0
      %v1173 = vadd.f32 %v1098, %v1145
      %v1174 = vadd.f32 %v1099, %v1168
      %v1175 = vadd.f32 %v1100, %v1148
      %v1176 = vadd.f32 %v1101, %v1171
      %s1177 = scalar_lea.vmem %s4, 64
      %v1178 = vld [vmem:[%s1177] sm:$0xff]
      %v1179 = vld [vmem:[%s1177 + $0x8] sm:$0xff]
      %v1181 = vsel %vm922, %v1178, 0
      %v1184 = vsel %vm922, %v1179, 0
      %1186 = vmatpush.msra.mxu0 0.0
      %1187 = vmatpush.msra.mxu0 0.0
      %1188 = vmatpush.msra.mxu0 0.0
      %1189 = vmatpush.msra.mxu0 0.0
      %1190 = vmatpush.msra.mxu0 0.0
      %1191 = vmatpush.msra.mxu0 0.0
      %1192 = vmatpush.msra.mxu0 0.0
      %1193 = vmatpush.msra.mxu0 0.0
      %1194 = vmatpush.msra.mxu0 0.0
      %1195 = vmatpush.msra.mxu0 0.0
      %1196 = vmatpush.msra.mxu0 0.0
      %1197 = vmatpush.msra.mxu0 0.0
      %1198 = vmatpush.msra.mxu0 0.0
      %1199 = vmatpush.msra.mxu0 0.0
      %1200 = vmatpush.msra.mxu0 %v883
      %1201 = vmatpush.msra.mxu0 %v881
      %1202 = vmatmul.f32.gmra.mxu0 %v1181
      %v1203 = vpop.f32.mrf.mxu0
      %v1204 = vadd.f32 0.0, %v1203
      %1205 = vmatmul.f32.gmra.mxu0 %v1184
      %v1206 = vpop.f32.mrf.mxu0
      %v1207 = vadd.f32 0.0, %v1206
      %1208 = vdwg.mxu0
      %1209 = vmatpush.msra.mxu0 0.0
      %1210 = vmatpush.msra.mxu0 0.0
      %1211 = vmatpush.msra.mxu0 0.0
      %1212 = vmatpush.msra.mxu0 0.0
      %1213 = vmatpush.msra.mxu0 0.0
      %1214 = vmatpush.msra.mxu0 0.0
      %1215 = vmatpush.msra.mxu0 0.0
      %1216 = vmatpush.msra.mxu0 0.0
      %1217 = vmatpush.msra.mxu0 0.0
      %1218 = vmatpush.msra.mxu0 0.0
      %1219 = vmatpush.msra.mxu0 0.0
      %1220 = vmatpush.msra.mxu0 0.0
      %1221 = vmatpush.msra.mxu0 0.0
      %1222 = vmatpush.msra.mxu0 0.0
      %1223 = vmatpush.msra.mxu0 %v884
      %1224 = vmatpush.msra.mxu0 %v882
      %1225 = vmatmul.f32.gmra.mxu0 %v1181
      %v1226 = vpop.f32.mrf.mxu0
      %v1227 = vadd.f32 0.0, %v1226
      %1228 = vmatmul.f32.gmra.mxu0 %v1184
      %v1229 = vpop.f32.mrf.mxu0
      %v1230 = vadd.f32 0.0, %v1229
      %1231 = vdwg.mxu0
      %v1232 = vadd.f32 %v1173, %v1204
      %v1233 = vadd.f32 %v1174, %v1227
      %v1234 = vadd.f32 %v1175, %v1207
      %v1235 = vadd.f32 %v1176, %v1230
      %1236 = vrot.lane.b32.xlu0 %v881, 127
      %v1237 = vpop.permute.xlu0 %1236
      %1238 = vrot.lane.b32.xlu0 %v883, 127
      %v1239 = vpop.permute.xlu0 %1238
      %1240 = vrot.lane.b32.xlu0 %v882, 127
      %v1241 = vpop.permute.xlu0 %1240
      %1242 = vrot.lane.b32.xlu0 %v884, 127
      %v1243 = vpop.permute.xlu0 %1242
      %v1244 = vsel %vm585, %v1237, %v1241
      %v1245 = vsel %vm585, %v1239, %v1243
      %v1246 = vsel %vm585, %v1241, %v1237
      %v1247 = vsel %vm585, %v1243, %v1239
      %v1248 = vmul.f32 %v1244, %v591
      %v1249 = vmul.f32 %v1246, %v592
      %v1250 = vmul.f32 %v1245, %v591
      %v1251 = vmul.f32 %v1247, %v592
      %s1252 = scalar_lea.vmem %s4, 80
      %v1253 = vld [vmem:[%s1252] sm:$0xff]
      %v1254 = vld [vmem:[%s1252 + $0x8] sm:$0xff]
      %v1256 = vsel %vm922, %v1253, 0
      %v1259 = vsel %vm922, %v1254, 0
      %1261 = vmatpush.msra.mxu0 0.0
      %1262 = vmatpush.msra.mxu0 0.0
      %1263 = vmatpush.msra.mxu0 0.0
      %1264 = vmatpush.msra.mxu0 0.0
      %1265 = vmatpush.msra.mxu0 0.0
      %1266 = vmatpush.msra.mxu0 0.0
      %1267 = vmatpush.msra.mxu0 0.0
      %1268 = vmatpush.msra.mxu0 0.0
      %1269 = vmatpush.msra.mxu0 0.0
      %1270 = vmatpush.msra.mxu0 0.0
      %1271 = vmatpush.msra.mxu0 0.0
      %1272 = vmatpush.msra.mxu0 0.0
      %1273 = vmatpush.msra.mxu0 0.0
      %1274 = vmatpush.msra.mxu0 0.0
      %1275 = vmatpush.msra.mxu0 %v1250
      %1276 = vmatpush.msra.mxu0 %v1248
      %1277 = vmatmul.f32.gmra.mxu0 %v1256
      %v1278 = vpop.f32.mrf.mxu0
      %v1279 = vadd.f32 0.0, %v1278
      %1280 = vmatmul.f32.gmra.mxu0 %v1259
      %v1281 = vpop.f32.mrf.mxu0
      %v1282 = vadd.f32 0.0, %v1281
      %1283 = vdwg.mxu0
      %1284 = vmatpush.msra.mxu0 0.0
      %1285 = vmatpush.msra.mxu0 0.0
      %1286 = vmatpush.msra.mxu0 0.0
      %1287 = vmatpush.msra.mxu0 0.0
      %1288 = vmatpush.msra.mxu0 0.0
      %1289 = vmatpush.msra.mxu0 0.0
      %1290 = vmatpush.msra.mxu0 0.0
      %1291 = vmatpush.msra.mxu0 0.0
      %1292 = vmatpush.msra.mxu0 0.0
      %1293 = vmatpush.msra.mxu0 0.0
      %1294 = vmatpush.msra.mxu0 0.0
      %1295 = vmatpush.msra.mxu0 0.0
      %1296 = vmatpush.msra.mxu0 0.0
      %1297 = vmatpush.msra.mxu0 0.0
      %1298 = vmatpush.msra.mxu0 %v1251
      %1299 = vmatpush.msra.mxu0 %v1249
      %1300 = vmatmul.f32.gmra.mxu0 %v1256
      %v1301 = vpop.f32.mrf.mxu0
      %v1302 = vadd.f32 0.0, %v1301
      %1303 = vmatmul.f32.gmra.mxu0 %v1259
      %v1304 = vpop.f32.mrf.mxu0
      %v1305 = vadd.f32 0.0, %v1304
      %1306 = vdwg.mxu0
      %v1307 = vadd.f32 %v1232, %v1279
      %v1308 = vadd.f32 %v1233, %v1302
      %v1309 = vadd.f32 %v1234, %v1282
      %v1310 = vadd.f32 %v1235, %v1305
      %1311 = vrot.lane.b32.xlu0 %v881, 113
      %v1312 = vpop.permute.xlu0 %1311
      %1313 = vrot.lane.b32.xlu0 %v883, 113
      %v1314 = vpop.permute.xlu0 %1313
      %1315 = vrot.lane.b32.xlu0 %v882, 113
      %v1316 = vpop.permute.xlu0 %1315
      %1317 = vrot.lane.b32.xlu0 %v884, 113
      %v1318 = vpop.permute.xlu0 %1317
      %v1319 = vsel %vm660, %v1312, %v1316
      %v1320 = vsel %vm660, %v1314, %v1318
      %v1321 = vsel %vm660, %v1316, %v1312
      %v1322 = vsel %vm660, %v1318, %v1314
      %v1323 = vmul.f32 %v1319, %v666
      %v1324 = vmul.f32 %v1321, %v667
      %v1325 = vmul.f32 %v1320, %v666
      %v1326 = vmul.f32 %v1322, %v667
      %s1327 = scalar_lea.vmem %s4, 96
      %v1328 = vld [vmem:[%s1327] sm:$0xff]
      %v1329 = vld [vmem:[%s1327 + $0x8] sm:$0xff]
      %v1331 = vsel %vm922, %v1328, 0
      %v1334 = vsel %vm922, %v1329, 0
      %1336 = vmatpush.msra.mxu0 0.0
      %1337 = vmatpush.msra.mxu0 0.0
      %1338 = vmatpush.msra.mxu0 0.0
      %1339 = vmatpush.msra.mxu0 0.0
      %1340 = vmatpush.msra.mxu0 0.0
      %1341 = vmatpush.msra.mxu0 0.0
      %1342 = vmatpush.msra.mxu0 0.0
      %1343 = vmatpush.msra.mxu0 0.0
      %1344 = vmatpush.msra.mxu0 0.0
      %1345 = vmatpush.msra.mxu0 0.0
      %1346 = vmatpush.msra.mxu0 0.0
      %1347 = vmatpush.msra.mxu0 0.0
      %1348 = vmatpush.msra.mxu0 0.0
      %1349 = vmatpush.msra.mxu0 0.0
      %1350 = vmatpush.msra.mxu0 %v1325
      %1351 = vmatpush.msra.mxu0 %v1323
      %1352 = vmatmul.f32.gmra.mxu0 %v1331
      %v1353 = vpop.f32.mrf.mxu0
      %v1354 = vadd.f32 0.0, %v1353
      %1355 = vmatmul.f32.gmra.mxu0 %v1334
      %v1356 = vpop.f32.mrf.mxu0
      %v1357 = vadd.f32 0.0, %v1356
      %1358 = vdwg.mxu0
      %1359 = vmatpush.msra.mxu0 0.0
      %1360 = vmatpush.msra.mxu0 0.0
      %1361 = vmatpush.msra.mxu0 0.0
      %1362 = vmatpush.msra.mxu0 0.0
      %1363 = vmatpush.msra.mxu0 0.0
      %1364 = vmatpush.msra.mxu0 0.0
      %1365 = vmatpush.msra.mxu0 0.0
      %1366 = vmatpush.msra.mxu0 0.0
      %1367 = vmatpush.msra.mxu0 0.0
      %1368 = vmatpush.msra.mxu0 0.0
      %1369 = vmatpush.msra.mxu0 0.0
      %1370 = vmatpush.msra.mxu0 0.0
      %1371 = vmatpush.msra.mxu0 0.0
      %1372 = vmatpush.msra.mxu0 0.0
      %1373 = vmatpush.msra.mxu0 %v1326
      %1374 = vmatpush.msra.mxu0 %v1324
      %1375 = vmatmul.f32.gmra.mxu0 %v1331
      %v1376 = vpop.f32.mrf.mxu0
      %v1377 = vadd.f32 0.0, %v1376
      %1378 = vmatmul.f32.gmra.mxu0 %v1334
      %v1379 = vpop.f32.mrf.mxu0
      %v1380 = vadd.f32 0.0, %v1379
      %1381 = vdwg.mxu0
      %v1382 = vadd.f32 %v1307, %v1354
      %v1383 = vadd.f32 %v1308, %v1377
      %v1384 = vadd.f32 %v1309, %v1357
      %v1385 = vadd.f32 %v1310, %v1380
      %1386 = vrot.lane.b32.xlu0 %v881, 112
      %v1387 = vpop.permute.xlu0 %1386
      %1388 = vrot.lane.b32.xlu0 %v883, 112
      %v1389 = vpop.permute.xlu0 %1388
      %1390 = vrot.lane.b32.xlu0 %v882, 112
      %v1391 = vpop.permute.xlu0 %1390
      %1392 = vrot.lane.b32.xlu0 %v884, 112
      %v1393 = vpop.permute.xlu0 %1392
      %v1394 = vsel %vm735, %v1387, %v1391
      %v1395 = vsel %vm735, %v1389, %v1393
      %v1396 = vsel %vm735, %v1391, %v1387
      %v1397 = vsel %vm735, %v1393, %v1389
      %v1398 = vmul.f32 %v1394, %v741
      %v1399 = vmul.f32 %v1396, %v742
      %v1400 = vmul.f32 %v1395, %v741
      %v1401 = vmul.f32 %v1397, %v742
      %s1402 = scalar_lea.vmem %s4, 112
      %v1403 = vld [vmem:[%s1402] sm:$0xff]
      %v1404 = vld [vmem:[%s1402 + $0x8] sm:$0xff]
      %v1406 = vsel %vm922, %v1403, 0
      %v1409 = vsel %vm922, %v1404, 0
      %1411 = vmatpush.msra.mxu0 0.0
      %1412 = vmatpush.msra.mxu0 0.0
      %1413 = vmatpush.msra.mxu0 0.0
      %1414 = vmatpush.msra.mxu0 0.0
      %1415 = vmatpush.msra.mxu0 0.0
      %1416 = vmatpush.msra.mxu0 0.0
      %1417 = vmatpush.msra.mxu0 0.0
      %1418 = vmatpush.msra.mxu0 0.0
      %1419 = vmatpush.msra.mxu0 0.0
      %1420 = vmatpush.msra.mxu0 0.0
      %1421 = vmatpush.msra.mxu0 0.0
      %1422 = vmatpush.msra.mxu0 0.0
      %1423 = vmatpush.msra.mxu0 0.0
      %1424 = vmatpush.msra.mxu0 0.0
      %1425 = vmatpush.msra.mxu0 %v1400
      %1426 = vmatpush.msra.mxu0 %v1398
      %1427 = vmatmul.f32.gmra.mxu0 %v1406
      %v1428 = vpop.f32.mrf.mxu0
      %v1429 = vadd.f32 0.0, %v1428
      %1430 = vmatmul.f32.gmra.mxu0 %v1409
      %v1431 = vpop.f32.mrf.mxu0
      %v1432 = vadd.f32 0.0, %v1431
      %1433 = vdwg.mxu0
      %1434 = vmatpush.msra.mxu0 0.0
      %1435 = vmatpush.msra.mxu0 0.0
      %1436 = vmatpush.msra.mxu0 0.0
      %1437 = vmatpush.msra.mxu0 0.0
      %1438 = vmatpush.msra.mxu0 0.0
      %1439 = vmatpush.msra.mxu0 0.0
      %1440 = vmatpush.msra.mxu0 0.0
      %1441 = vmatpush.msra.mxu0 0.0
      %1442 = vmatpush.msra.mxu0 0.0
      %1443 = vmatpush.msra.mxu0 0.0
      %1444 = vmatpush.msra.mxu0 0.0
      %1445 = vmatpush.msra.mxu0 0.0
      %1446 = vmatpush.msra.mxu0 0.0
      %1447 = vmatpush.msra.mxu0 0.0
      %1448 = vmatpush.msra.mxu0 %v1401
      %1449 = vmatpush.msra.mxu0 %v1399
      %1450 = vmatmul.f32.gmra.mxu0 %v1406
      %v1451 = vpop.f32.mrf.mxu0
      %v1452 = vadd.f32 0.0, %v1451
      %1453 = vmatmul.f32.gmra.mxu0 %v1409
      %v1454 = vpop.f32.mrf.mxu0
      %v1455 = vadd.f32 0.0, %v1454
      %1456 = vdwg.mxu0
      %v1457 = vadd.f32 %v1382, %v1429
      %v1458 = vadd.f32 %v1383, %v1452
      %v1459 = vadd.f32 %v1384, %v1432
      %v1460 = vadd.f32 %v1385, %v1455
      %1461 = vrot.lane.b32.xlu0 %v881, 111
      %v1462 = vpop.permute.xlu0 %1461
      %1463 = vrot.lane.b32.xlu0 %v883, 111
      %v1464 = vpop.permute.xlu0 %1463
      %1465 = vrot.lane.b32.xlu0 %v882, 111
      %v1466 = vpop.permute.xlu0 %1465
      %1467 = vrot.lane.b32.xlu0 %v884, 111
      %v1468 = vpop.permute.xlu0 %1467
      %v1469 = vsel %vm810, %v1462, %v1466
      %v1470 = vsel %vm810, %v1464, %v1468
      %v1471 = vsel %vm810, %v1466, %v1462
      %v1472 = vsel %vm810, %v1468, %v1464
      %v1473 = vmul.f32 %v1469, %v816
      %v1474 = vmul.f32 %v1471, %v817
      %v1475 = vmul.f32 %v1470, %v816
      %v1476 = vmul.f32 %v1472, %v817
      %s1477 = scalar_lea.vmem %s4, 128
      %v1478 = vld [vmem:[%s1477] sm:$0xff]
      %v1479 = vld [vmem:[%s1477 + $0x8] sm:$0xff]
      %v1481 = vsel %vm922, %v1478, 0
      %v1484 = vsel %vm922, %v1479, 0
      %1486 = vmatpush.msra.mxu0 0.0
      %1487 = vmatpush.msra.mxu0 0.0
      %1488 = vmatpush.msra.mxu0 0.0
      %1489 = vmatpush.msra.mxu0 0.0
      %1490 = vmatpush.msra.mxu0 0.0
      %1491 = vmatpush.msra.mxu0 0.0
      %1492 = vmatpush.msra.mxu0 0.0
      %1493 = vmatpush.msra.mxu0 0.0
      %1494 = vmatpush.msra.mxu0 0.0
      %1495 = vmatpush.msra.mxu0 0.0
      %1496 = vmatpush.msra.mxu0 0.0
      %1497 = vmatpush.msra.mxu0 0.0
      %1498 = vmatpush.msra.mxu0 0.0
      %1499 = vmatpush.msra.mxu0 0.0
      %1500 = vmatpush.msra.mxu0 %v1475
      %1501 = vmatpush.msra.mxu0 %v1473
      %1502 = vmatmul.f32.gmra.mxu0 %v1481
      %v1503 = vpop.f32.mrf.mxu0
      %v1504 = vadd.f32 0.0, %v1503
      %1505 = vmatmul.f32.gmra.mxu0 %v1484
      %v1506 = vpop.f32.mrf.mxu0
      %v1507 = vadd.f32 0.0, %v1506
      %1508 = vdwg.mxu0
      %1509 = vmatpush.msra.mxu0 0.0
      %1510 = vmatpush.msra.mxu0 0.0
      %1511 = vmatpush.msra.mxu0 0.0
      %1512 = vmatpush.msra.mxu0 0.0
      %1513 = vmatpush.msra.mxu0 0.0
      %1514 = vmatpush.msra.mxu0 0.0
      %1515 = vmatpush.msra.mxu0 0.0
      %1516 = vmatpush.msra.mxu0 0.0
      %1517 = vmatpush.msra.mxu0 0.0
      %1518 = vmatpush.msra.mxu0 0.0
      %1519 = vmatpush.msra.mxu0 0.0
      %1520 = vmatpush.msra.mxu0 0.0
      %1521 = vmatpush.msra.mxu0 0.0
      %1522 = vmatpush.msra.mxu0 0.0
      %1523 = vmatpush.msra.mxu0 %v1476
      %1524 = vmatpush.msra.mxu0 %v1474
      %1525 = vmatmul.f32.gmra.mxu0 %v1481
      %v1526 = vpop.f32.mrf.mxu0
      %v1527 = vadd.f32 0.0, %v1526
      %1528 = vmatmul.f32.gmra.mxu0 %v1484
      %v1529 = vpop.f32.mrf.mxu0
      %v1530 = vadd.f32 0.0, %v1529
      %1531 = vdwg.mxu0
      %v1532 = vadd.f32 %v1457, %v1504
      %v1533 = vadd.f32 %v1458, %v1527
      %v1534 = vadd.f32 %v1459, %v1507
      %v1535 = vadd.f32 %v1460, %v1530
      %v1536 = vadd.f32 %v1532, %v877
      %v1537 = vadd.f32 %v1533, %v878
      %v1538 = vadd.f32 %v1534, %v879
      %v1539 = vadd.f32 %v1535, %v880
      %v1540 = vmax.f32 %v1536, 0.0
      %v1541 = vmax.f32 %v1537, 0.0
      %v1542 = vmax.f32 %v1538, 0.0
      %v1543 = vmax.f32 %v1539, 0.0
      %1544 = vrot.lane.b32.xlu0 %v1540, 17
      %v1545 = vpop.permute.xlu0 %1544
      %1546 = vrot.lane.b32.xlu0 %v1542, 17
      %v1547 = vpop.permute.xlu0 %1546
      %1548 = vrot.lane.b32.xlu0 %v1541, 17
      %v1549 = vpop.permute.xlu0 %1548
      %1550 = vrot.lane.b32.xlu0 %v1543, 17
      %v1551 = vpop.permute.xlu0 %1550
      %v1552 = vsel %vm235, %v1545, %v1549
      %v1553 = vsel %vm235, %v1547, %v1551
      %v1554 = vsel %vm235, %v1549, %v1545
      %v1555 = vsel %vm235, %v1551, %v1547
      %v1556 = vmul.f32 %v1554, %v240
      %v1557 = vmul.f32 %v1552, %v241
      %v1558 = vmul.f32 %v1555, %v240
      %v1559 = vmul.f32 %v1553, %v241
      %s1560 = scalar_lea.vmem %s4, 144
      %v1561 = vld [vmem:[%s1560] sm:$0xff]
      %v1562 = vld [vmem:[%s1560 + $0x8] sm:$0xff]
      %1563 = vrot.lane.b32.xlu0 %v1540, 16
      %v1564 = vpop.permute.xlu0 %1563
      %1565 = vrot.lane.b32.xlu0 %v1542, 16
      %v1566 = vpop.permute.xlu0 %1565
      %1567 = vrot.lane.b32.xlu0 %v1541, 16
      %v1568 = vpop.permute.xlu0 %1567
      %1569 = vrot.lane.b32.xlu0 %v1543, 16
      %v1570 = vpop.permute.xlu0 %1569
      %v1571 = vsel %vm252, %v1564, %v1568
      %v1572 = vsel %vm252, %v1566, %v1570
      %v1573 = vsel %vm252, %v1568, %v1564
      %v1574 = vsel %vm252, %v1570, %v1566
      %v1575 = vmul.f32 %v1573, %v258
      %v1576 = vmul.f32 %v1571, %v259
      %v1577 = vmul.f32 %v1574, %v258
      %v1578 = vmul.f32 %v1572, %v259
      %s1579 = scalar_lea.vmem %s4, 160
      %v1580 = vld [vmem:[%s1579] sm:$0xff]
      %v1581 = vld [vmem:[%s1579 + $0x8] sm:$0xff]
      %v1583 = vsel %vm922, %v1580, 0
      %v1586 = vsel %vm922, %v1581, 0
      %1588 = vmatpush.msra.mxu0 0.0
      %1589 = vmatpush.msra.mxu0 0.0
      %1590 = vmatpush.msra.mxu0 0.0
      %1591 = vmatpush.msra.mxu0 0.0
      %1592 = vmatpush.msra.mxu0 0.0
      %1593 = vmatpush.msra.mxu0 0.0
      %1594 = vmatpush.msra.mxu0 0.0
      %1595 = vmatpush.msra.mxu0 0.0
      %1596 = vmatpush.msra.mxu0 0.0
      %1597 = vmatpush.msra.mxu0 0.0
      %1598 = vmatpush.msra.mxu0 0.0
      %1599 = vmatpush.msra.mxu0 0.0
      %1600 = vmatpush.msra.mxu0 0.0
      %1601 = vmatpush.msra.mxu0 0.0
      %1602 = vmatpush.msra.mxu0 %v1577
      %1603 = vmatpush.msra.mxu0 %v1575
      %1604 = vmatmul.f32.gmra.mxu0 %v1583
      %v1605 = vpop.f32.mrf.mxu0
      %v1606 = vadd.f32 0.0, %v1605
      %1607 = vmatmul.f32.gmra.mxu0 %v1586
      %v1608 = vpop.f32.mrf.mxu0
      %v1609 = vadd.f32 0.0, %v1608
      %1610 = vdwg.mxu0
      %1611 = vmatpush.msra.mxu0 0.0
      %1612 = vmatpush.msra.mxu0 0.0
      %1613 = vmatpush.msra.mxu0 0.0
      %1614 = vmatpush.msra.mxu0 0.0
      %1615 = vmatpush.msra.mxu0 0.0
      %1616 = vmatpush.msra.mxu0 0.0
      %1617 = vmatpush.msra.mxu0 0.0
      %1618 = vmatpush.msra.mxu0 0.0
      %1619 = vmatpush.msra.mxu0 0.0
      %1620 = vmatpush.msra.mxu0 0.0
      %1621 = vmatpush.msra.mxu0 0.0
      %1622 = vmatpush.msra.mxu0 0.0
      %1623 = vmatpush.msra.mxu0 0.0
      %1624 = vmatpush.msra.mxu0 0.0
      %1625 = vmatpush.msra.mxu0 %v1578
      %1626 = vmatpush.msra.mxu0 %v1576
      %1627 = vmatmul.f32.gmra.mxu0 %v1583
      %v1628 = vpop.f32.mrf.mxu0
      %v1629 = vadd.f32 0.0, %v1628
      %1630 = vmatmul.f32.gmra.mxu0 %v1586
      %v1631 = vpop.f32.mrf.mxu0
      %v1632 = vadd.f32 0.0, %v1631
      %1633 = vdwg.mxu0
      %v1635 = vsel %vm922, %v1561, 0
      %v1638 = vsel %vm922, %v1562, 0
      %1640 = vmatpush.msra.mxu0 0.0
      %1641 = vmatpush.msra.mxu0 0.0
      %1642 = vmatpush.msra.mxu0 0.0
      %1643 = vmatpush.msra.mxu0 0.0
      %1644 = vmatpush.msra.mxu0 0.0
      %1645 = vmatpush.msra.mxu0 0.0
      %1646 = vmatpush.msra.mxu0 0.0
      %1647 = vmatpush.msra.mxu0 0.0
      %1648 = vmatpush.msra.mxu0 0.0
      %1649 = vmatpush.msra.mxu0 0.0
      %1650 = vmatpush.msra.mxu0 0.0
      %1651 = vmatpush.msra.mxu0 0.0
      %1652 = vmatpush.msra.mxu0 0.0
      %1653 = vmatpush.msra.mxu0 0.0
      %1654 = vmatpush.msra.mxu0 %v1558
      %1655 = vmatpush.msra.mxu0 %v1556
      %1656 = vmatmul.f32.gmra.mxu0 %v1635
      %v1657 = vpop.f32.mrf.mxu0
      %v1658 = vadd.f32 %v1606, %v1657
      %1659 = vmatmul.f32.gmra.mxu0 %v1638
      %v1660 = vpop.f32.mrf.mxu0
      %v1661 = vadd.f32 %v1609, %v1660
      %1662 = vdwg.mxu0
      %1663 = vmatpush.msra.mxu0 0.0
      %1664 = vmatpush.msra.mxu0 0.0
      %1665 = vmatpush.msra.mxu0 0.0
      %1666 = vmatpush.msra.mxu0 0.0
      %1667 = vmatpush.msra.mxu0 0.0
      %1668 = vmatpush.msra.mxu0 0.0
      %1669 = vmatpush.msra.mxu0 0.0
      %1670 = vmatpush.msra.mxu0 0.0
      %1671 = vmatpush.msra.mxu0 0.0
      %1672 = vmatpush.msra.mxu0 0.0
      %1673 = vmatpush.msra.mxu0 0.0
      %1674 = vmatpush.msra.mxu0 0.0
      %1675 = vmatpush.msra.mxu0 0.0
      %1676 = vmatpush.msra.mxu0 0.0
      %1677 = vmatpush.msra.mxu0 %v1559
      %1678 = vmatpush.msra.mxu0 %v1557
      %1679 = vmatmul.f32.gmra.mxu0 %v1635
      %v1680 = vpop.f32.mrf.mxu0
      %v1681 = vadd.f32 %v1629, %v1680
      %1682 = vmatmul.f32.gmra.mxu0 %v1638
      %v1683 = vpop.f32.mrf.mxu0
      %v1684 = vadd.f32 %v1632, %v1683
      %1685 = vdwg.mxu0
      %1686 = vrot.lane.b32.xlu0 %v1540, 15
      %v1687 = vpop.permute.xlu0 %1686
      %1688 = vrot.lane.b32.xlu0 %v1542, 15
      %v1689 = vpop.permute.xlu0 %1688
      %1690 = vrot.lane.b32.xlu0 %v1541, 15
      %v1691 = vpop.permute.xlu0 %1690
      %1692 = vrot.lane.b32.xlu0 %v1543, 15
      %v1693 = vpop.permute.xlu0 %1692
      %v1694 = vsel %vm376, %v1687, %v1691
      %v1695 = vsel %vm376, %v1689, %v1693
      %v1696 = vsel %vm376, %v1691, %v1687
      %v1697 = vsel %vm376, %v1693, %v1689
      %v1698 = vmul.f32 %v1696, %v382
      %v1699 = vmul.f32 %v1694, %v383
      %v1700 = vmul.f32 %v1697, %v382
      %v1701 = vmul.f32 %v1695, %v383
      %s1702 = scalar_lea.vmem %s4, 176
      %v1703 = vld [vmem:[%s1702] sm:$0xff]
      %v1704 = vld [vmem:[%s1702 + $0x8] sm:$0xff]
      %v1706 = vsel %vm922, %v1703, 0
      %v1709 = vsel %vm922, %v1704, 0
      %1711 = vmatpush.msra.mxu0 0.0
      %1712 = vmatpush.msra.mxu0 0.0
      %1713 = vmatpush.msra.mxu0 0.0
      %1714 = vmatpush.msra.mxu0 0.0
      %1715 = vmatpush.msra.mxu0 0.0
      %1716 = vmatpush.msra.mxu0 0.0
      %1717 = vmatpush.msra.mxu0 0.0
      %1718 = vmatpush.msra.mxu0 0.0
      %1719 = vmatpush.msra.mxu0 0.0
      %1720 = vmatpush.msra.mxu0 0.0
      %1721 = vmatpush.msra.mxu0 0.0
      %1722 = vmatpush.msra.mxu0 0.0
      %1723 = vmatpush.msra.mxu0 0.0
      %1724 = vmatpush.msra.mxu0 0.0
      %1725 = vmatpush.msra.mxu0 %v1700
      %1726 = vmatpush.msra.mxu0 %v1698
      %1727 = vmatmul.f32.gmra.mxu0 %v1706
      %v1728 = vpop.f32.mrf.mxu0
      %v1729 = vadd.f32 0.0, %v1728
      %1730 = vmatmul.f32.gmra.mxu0 %v1709
      %v1731 = vpop.f32.mrf.mxu0
      %v1732 = vadd.f32 0.0, %v1731
      %1733 = vdwg.mxu0
      %1734 = vmatpush.msra.mxu0 0.0
      %1735 = vmatpush.msra.mxu0 0.0
      %1736 = vmatpush.msra.mxu0 0.0
      %1737 = vmatpush.msra.mxu0 0.0
      %1738 = vmatpush.msra.mxu0 0.0
      %1739 = vmatpush.msra.mxu0 0.0
      %1740 = vmatpush.msra.mxu0 0.0
      %1741 = vmatpush.msra.mxu0 0.0
      %1742 = vmatpush.msra.mxu0 0.0
      %1743 = vmatpush.msra.mxu0 0.0
      %1744 = vmatpush.msra.mxu0 0.0
      %1745 = vmatpush.msra.mxu0 0.0
      %1746 = vmatpush.msra.mxu0 0.0
      %1747 = vmatpush.msra.mxu0 0.0
      %1748 = vmatpush.msra.mxu0 %v1701
      %1749 = vmatpush.msra.mxu0 %v1699
      %1750 = vmatmul.f32.gmra.mxu0 %v1706
      %v1751 = vpop.f32.mrf.mxu0
      %v1752 = vadd.f32 0.0, %v1751
      %1753 = vmatmul.f32.gmra.mxu0 %v1709
      %v1754 = vpop.f32.mrf.mxu0
      %v1755 = vadd.f32 0.0, %v1754
      %1756 = vdwg.mxu0
      %v1757 = vadd.f32 %v1658, %v1729
      %v1758 = vadd.f32 %v1681, %v1752
      %v1759 = vadd.f32 %v1661, %v1732
      %v1760 = vadd.f32 %v1684, %v1755
      %1761 = vrot.lane.b32.xlu0 %v1540, 1
      %v1762 = vpop.permute.xlu0 %1761
      %1763 = vrot.lane.b32.xlu0 %v1542, 1
      %v1764 = vpop.permute.xlu0 %1763
      %1765 = vrot.lane.b32.xlu0 %v1541, 1
      %v1766 = vpop.permute.xlu0 %1765
      %1767 = vrot.lane.b32.xlu0 %v1543, 1
      %v1768 = vpop.permute.xlu0 %1767
      %v1769 = vsel %vm451, %v1762, %v1766
      %v1770 = vsel %vm451, %v1764, %v1768
      %v1771 = vsel %vm451, %v1766, %v1762
      %v1772 = vsel %vm451, %v1768, %v1764
      %v1773 = vmul.f32 %v1771, %v457
      %v1774 = vmul.f32 %v1769, %v458
      %v1775 = vmul.f32 %v1772, %v457
      %v1776 = vmul.f32 %v1770, %v458
      %s1777 = scalar_lea.vmem %s4, 192
      %v1778 = vld [vmem:[%s1777] sm:$0xff]
      %v1779 = vld [vmem:[%s1777 + $0x8] sm:$0xff]
      %v1781 = vsel %vm922, %v1778, 0
      %v1784 = vsel %vm922, %v1779, 0
      %1786 = vmatpush.msra.mxu0 0.0
      %1787 = vmatpush.msra.mxu0 0.0
      %1788 = vmatpush.msra.mxu0 0.0
      %1789 = vmatpush.msra.mxu0 0.0
      %1790 = vmatpush.msra.mxu0 0.0
      %1791 = vmatpush.msra.mxu0 0.0
      %1792 = vmatpush.msra.mxu0 0.0
      %1793 = vmatpush.msra.mxu0 0.0
      %1794 = vmatpush.msra.mxu0 0.0
      %1795 = vmatpush.msra.mxu0 0.0
      %1796 = vmatpush.msra.mxu0 0.0
      %1797 = vmatpush.msra.mxu0 0.0
      %1798 = vmatpush.msra.mxu0 0.0
      %1799 = vmatpush.msra.mxu0 0.0
      %1800 = vmatpush.msra.mxu0 %v1775
      %1801 = vmatpush.msra.mxu0 %v1773
      %1802 = vmatmul.f32.gmra.mxu0 %v1781
      %v1803 = vpop.f32.mrf.mxu0
      %v1804 = vadd.f32 0.0, %v1803
      %1805 = vmatmul.f32.gmra.mxu0 %v1784
      %v1806 = vpop.f32.mrf.mxu0
      %v1807 = vadd.f32 0.0, %v1806
      %1808 = vdwg.mxu0
      %1809 = vmatpush.msra.mxu0 0.0
      %1810 = vmatpush.msra.mxu0 0.0
      %1811 = vmatpush.msra.mxu0 0.0
      %1812 = vmatpush.msra.mxu0 0.0
      %1813 = vmatpush.msra.mxu0 0.0
      %1814 = vmatpush.msra.mxu0 0.0
      %1815 = vmatpush.msra.mxu0 0.0
      %1816 = vmatpush.msra.mxu0 0.0
      %1817 = vmatpush.msra.mxu0 0.0
      %1818 = vmatpush.msra.mxu0 0.0
      %1819 = vmatpush.msra.mxu0 0.0
      %1820 = vmatpush.msra.mxu0 0.0
      %1821 = vmatpush.msra.mxu0 0.0
      %1822 = vmatpush.msra.mxu0 0.0
      %1823 = vmatpush.msra.mxu0 %v1776
      %1824 = vmatpush.msra.mxu0 %v1774
      %1825 = vmatmul.f32.gmra.mxu0 %v1781
      %v1826 = vpop.f32.mrf.mxu0
      %v1827 = vadd.f32 0.0, %v1826
      %1828 = vmatmul.f32.gmra.mxu0 %v1784
      %v1829 = vpop.f32.mrf.mxu0
      %v1830 = vadd.f32 0.0, %v1829
      %1831 = vdwg.mxu0
      %v1832 = vadd.f32 %v1757, %v1804
      %v1833 = vadd.f32 %v1758, %v1827
      %v1834 = vadd.f32 %v1759, %v1807
      %v1835 = vadd.f32 %v1760, %v1830
      %s1836 = scalar_lea.vmem %s4, 208
      %v1837 = vld [vmem:[%s1836] sm:$0xff]
      %v1838 = vld [vmem:[%s1836 + $0x8] sm:$0xff]
      %v1840 = vsel %vm922, %v1837, 0
      %v1843 = vsel %vm922, %v1838, 0
      %1845 = vmatpush.msra.mxu0 0.0
      %1846 = vmatpush.msra.mxu0 0.0
      %1847 = vmatpush.msra.mxu0 0.0
      %1848 = vmatpush.msra.mxu0 0.0
      %1849 = vmatpush.msra.mxu0 0.0
      %1850 = vmatpush.msra.mxu0 0.0
      %1851 = vmatpush.msra.mxu0 0.0
      %1852 = vmatpush.msra.mxu0 0.0
      %1853 = vmatpush.msra.mxu0 0.0
      %1854 = vmatpush.msra.mxu0 0.0
      %1855 = vmatpush.msra.mxu0 0.0
      %1856 = vmatpush.msra.mxu0 0.0
      %1857 = vmatpush.msra.mxu0 0.0
      %1858 = vmatpush.msra.mxu0 0.0
      %1859 = vmatpush.msra.mxu0 %v1542
      %1860 = vmatpush.msra.mxu0 %v1540
      %1861 = vmatmul.f32.gmra.mxu0 %v1840
      %v1862 = vpop.f32.mrf.mxu0
      %v1863 = vadd.f32 0.0, %v1862
      %1864 = vmatmul.f32.gmra.mxu0 %v1843
      %v1865 = vpop.f32.mrf.mxu0
      %v1866 = vadd.f32 0.0, %v1865
      %1867 = vdwg.mxu0
      %1868 = vmatpush.msra.mxu0 0.0
      %1869 = vmatpush.msra.mxu0 0.0
      %1870 = vmatpush.msra.mxu0 0.0
      %1871 = vmatpush.msra.mxu0 0.0
      %1872 = vmatpush.msra.mxu0 0.0
      %1873 = vmatpush.msra.mxu0 0.0
      %1874 = vmatpush.msra.mxu0 0.0
      %1875 = vmatpush.msra.mxu0 0.0
      %1876 = vmatpush.msra.mxu0 0.0
      %1877 = vmatpush.msra.mxu0 0.0
      %1878 = vmatpush.msra.mxu0 0.0
      %1879 = vmatpush.msra.mxu0 0.0
      %1880 = vmatpush.msra.mxu0 0.0
      %1881 = vmatpush.msra.mxu0 0.0
      %1882 = vmatpush.msra.mxu0 %v1543
      %1883 = vmatpush.msra.mxu0 %v1541
      %1884 = vmatmul.f32.gmra.mxu0 %v1840
      %v1885 = vpop.f32.mrf.mxu0
      %v1886 = vadd.f32 0.0, %v1885
      %1887 = vmatmul.f32.gmra.mxu0 %v1843
      %v1888 = vpop.f32.mrf.mxu0
      %v1889 = vadd.f32 0.0, %v1888
      %1890 = vdwg.mxu0
      %v1891 = vadd.f32 %v1832, %v1863
      %v1892 = vadd.f32 %v1833, %v1886
      %v1893 = vadd.f32 %v1834, %v1866
      %v1894 = vadd.f32 %v1835, %v1889
      %1895 = vrot.lane.b32.xlu0 %v1540, 127
      %v1896 = vpop.permute.xlu0 %1895
      %1897 = vrot.lane.b32.xlu0 %v1542, 127
      %v1898 = vpop.permute.xlu0 %1897
      %1899 = vrot.lane.b32.xlu0 %v1541, 127
      %v1900 = vpop.permute.xlu0 %1899
      %1901 = vrot.lane.b32.xlu0 %v1543, 127
      %v1902 = vpop.permute.xlu0 %1901
      %v1903 = vsel %vm585, %v1896, %v1900
      %v1904 = vsel %vm585, %v1898, %v1902
      %v1905 = vsel %vm585, %v1900, %v1896
      %v1906 = vsel %vm585, %v1902, %v1898
      %v1907 = vmul.f32 %v1903, %v591
      %v1908 = vmul.f32 %v1905, %v592
      %v1909 = vmul.f32 %v1904, %v591
      %v1910 = vmul.f32 %v1906, %v592
      %s1911 = scalar_lea.vmem %s4, 224
      %v1912 = vld [vmem:[%s1911] sm:$0xff]
      %v1913 = vld [vmem:[%s1911 + $0x8] sm:$0xff]
      %v1915 = vsel %vm922, %v1912, 0
      %v1918 = vsel %vm922, %v1913, 0
      %1920 = vmatpush.msra.mxu0 0.0
      %1921 = vmatpush.msra.mxu0 0.0
      %1922 = vmatpush.msra.mxu0 0.0
      %1923 = vmatpush.msra.mxu0 0.0
      %1924 = vmatpush.msra.mxu0 0.0
      %1925 = vmatpush.msra.mxu0 0.0
      %1926 = vmatpush.msra.mxu0 0.0
      %1927 = vmatpush.msra.mxu0 0.0
      %1928 = vmatpush.msra.mxu0 0.0
      %1929 = vmatpush.msra.mxu0 0.0
      %1930 = vmatpush.msra.mxu0 0.0
      %1931 = vmatpush.msra.mxu0 0.0
      %1932 = vmatpush.msra.mxu0 0.0
      %1933 = vmatpush.msra.mxu0 0.0
      %1934 = vmatpush.msra.mxu0 %v1909
      %1935 = vmatpush.msra.mxu0 %v1907
      %1936 = vmatmul.f32.gmra.mxu0 %v1915
      %v1937 = vpop.f32.mrf.mxu0
      %v1938 = vadd.f32 0.0, %v1937
      %1939 = vmatmul.f32.gmra.mxu0 %v1918
      %v1940 = vpop.f32.mrf.mxu0
      %v1941 = vadd.f32 0.0, %v1940
      %1942 = vdwg.mxu0
      %1943 = vmatpush.msra.mxu0 0.0
      %1944 = vmatpush.msra.mxu0 0.0
      %1945 = vmatpush.msra.mxu0 0.0
      %1946 = vmatpush.msra.mxu0 0.0
      %1947 = vmatpush.msra.mxu0 0.0
      %1948 = vmatpush.msra.mxu0 0.0
      %1949 = vmatpush.msra.mxu0 0.0
      %1950 = vmatpush.msra.mxu0 0.0
      %1951 = vmatpush.msra.mxu0 0.0
      %1952 = vmatpush.msra.mxu0 0.0
      %1953 = vmatpush.msra.mxu0 0.0
      %1954 = vmatpush.msra.mxu0 0.0
      %1955 = vmatpush.msra.mxu0 0.0
      %1956 = vmatpush.msra.mxu0 0.0
      %1957 = vmatpush.msra.mxu0 %v1910
      %1958 = vmatpush.msra.mxu0 %v1908
      %1959 = vmatmul.f32.gmra.mxu0 %v1915
      %v1960 = vpop.f32.mrf.mxu0
      %v1961 = vadd.f32 0.0, %v1960
      %1962 = vmatmul.f32.gmra.mxu0 %v1918
      %v1963 = vpop.f32.mrf.mxu0
      %v1964 = vadd.f32 0.0, %v1963
      %1965 = vdwg.mxu0
      %v1966 = vadd.f32 %v1891, %v1938
      %v1967 = vadd.f32 %v1892, %v1961
      %v1968 = vadd.f32 %v1893, %v1941
      %v1969 = vadd.f32 %v1894, %v1964
      %1970 = vrot.lane.b32.xlu0 %v1540, 113
      %v1971 = vpop.permute.xlu0 %1970
      %1972 = vrot.lane.b32.xlu0 %v1542, 113
      %v1973 = vpop.permute.xlu0 %1972
      %1974 = vrot.lane.b32.xlu0 %v1541, 113
      %v1975 = vpop.permute.xlu0 %1974
      %1976 = vrot.lane.b32.xlu0 %v1543, 113
      %v1977 = vpop.permute.xlu0 %1976
      %v1978 = vsel %vm660, %v1971, %v1975
      %v1979 = vsel %vm660, %v1973, %v1977
      %v1980 = vsel %vm660, %v1975, %v1971
      %v1981 = vsel %vm660, %v1977, %v1973
      %v1982 = vmul.f32 %v1978, %v666
      %v1983 = vmul.f32 %v1980, %v667
      %v1984 = vmul.f32 %v1979, %v666
      %v1985 = vmul.f32 %v1981, %v667
      %s1986 = scalar_lea.vmem %s4, 240
      %v1987 = vld [vmem:[%s1986] sm:$0xff]
      %v1988 = vld [vmem:[%s1986 + $0x8] sm:$0xff]
      %v1990 = vsel %vm922, %v1987, 0
      %v1993 = vsel %vm922, %v1988, 0
      %1995 = vmatpush.msra.mxu0 0.0
      %1996 = vmatpush.msra.mxu0 0.0
      %1997 = vmatpush.msra.mxu0 0.0
      %1998 = vmatpush.msra.mxu0 0.0
      %1999 = vmatpush.msra.mxu0 0.0
      %2000 = vmatpush.msra.mxu0 0.0
      %2001 = vmatpush.msra.mxu0 0.0
      %2002 = vmatpush.msra.mxu0 0.0
      %2003 = vmatpush.msra.mxu0 0.0
      %2004 = vmatpush.msra.mxu0 0.0
      %2005 = vmatpush.msra.mxu0 0.0
      %2006 = vmatpush.msra.mxu0 0.0
      %2007 = vmatpush.msra.mxu0 0.0
      %2008 = vmatpush.msra.mxu0 0.0
      %2009 = vmatpush.msra.mxu0 %v1984
      %2010 = vmatpush.msra.mxu0 %v1982
      %2011 = vmatmul.f32.gmra.mxu0 %v1990
      %v2012 = vpop.f32.mrf.mxu0
      %v2013 = vadd.f32 0.0, %v2012
      %2014 = vmatmul.f32.gmra.mxu0 %v1993
      %v2015 = vpop.f32.mrf.mxu0
      %v2016 = vadd.f32 0.0, %v2015
      %2017 = vdwg.mxu0
      %2018 = vmatpush.msra.mxu0 0.0
      %2019 = vmatpush.msra.mxu0 0.0
      %2020 = vmatpush.msra.mxu0 0.0
      %2021 = vmatpush.msra.mxu0 0.0
      %2022 = vmatpush.msra.mxu0 0.0
      %2023 = vmatpush.msra.mxu0 0.0
      %2024 = vmatpush.msra.mxu0 0.0
      %2025 = vmatpush.msra.mxu0 0.0
      %2026 = vmatpush.msra.mxu0 0.0
      %2027 = vmatpush.msra.mxu0 0.0
      %2028 = vmatpush.msra.mxu0 0.0
      %2029 = vmatpush.msra.mxu0 0.0
      %2030 = vmatpush.msra.mxu0 0.0
      %2031 = vmatpush.msra.mxu0 0.0
      %2032 = vmatpush.msra.mxu0 %v1985
      %2033 = vmatpush.msra.mxu0 %v1983
      %2034 = vmatmul.f32.gmra.mxu0 %v1990
      %v2035 = vpop.f32.mrf.mxu0
      %v2036 = vadd.f32 0.0, %v2035
      %2037 = vmatmul.f32.gmra.mxu0 %v1993
      %v2038 = vpop.f32.mrf.mxu0
      %v2039 = vadd.f32 0.0, %v2038
      %2040 = vdwg.mxu0
      %v2041 = vadd.f32 %v1966, %v2013
      %v2042 = vadd.f32 %v1967, %v2036
      %v2043 = vadd.f32 %v1968, %v2016
      %v2044 = vadd.f32 %v1969, %v2039
      %2045 = vrot.lane.b32.xlu0 %v1540, 112
      %v2046 = vpop.permute.xlu0 %2045
      %2047 = vrot.lane.b32.xlu0 %v1542, 112
      %v2048 = vpop.permute.xlu0 %2047
      %2049 = vrot.lane.b32.xlu0 %v1541, 112
      %v2050 = vpop.permute.xlu0 %2049
      %2051 = vrot.lane.b32.xlu0 %v1543, 112
      %v2052 = vpop.permute.xlu0 %2051
      %v2053 = vsel %vm735, %v2046, %v2050
      %v2054 = vsel %vm735, %v2048, %v2052
      %v2055 = vsel %vm735, %v2050, %v2046
      %v2056 = vsel %vm735, %v2052, %v2048
      %v2057 = vmul.f32 %v2053, %v741
      %v2058 = vmul.f32 %v2055, %v742
      %v2059 = vmul.f32 %v2054, %v741
      %v2060 = vmul.f32 %v2056, %v742
      %s2061 = scalar_lea.vmem %s4, 256
      %v2062 = vld [vmem:[%s2061] sm:$0xff]
      %v2063 = vld [vmem:[%s2061 + $0x8] sm:$0xff]
      %v2065 = vsel %vm922, %v2062, 0
      %v2068 = vsel %vm922, %v2063, 0
      %2070 = vmatpush.msra.mxu0 0.0
      %2071 = vmatpush.msra.mxu0 0.0
      %2072 = vmatpush.msra.mxu0 0.0
      %2073 = vmatpush.msra.mxu0 0.0
      %2074 = vmatpush.msra.mxu0 0.0
      %2075 = vmatpush.msra.mxu0 0.0
      %2076 = vmatpush.msra.mxu0 0.0
      %2077 = vmatpush.msra.mxu0 0.0
      %2078 = vmatpush.msra.mxu0 0.0
      %2079 = vmatpush.msra.mxu0 0.0
      %2080 = vmatpush.msra.mxu0 0.0
      %2081 = vmatpush.msra.mxu0 0.0
      %2082 = vmatpush.msra.mxu0 0.0
      %2083 = vmatpush.msra.mxu0 0.0
      %2084 = vmatpush.msra.mxu0 %v2059
      %2085 = vmatpush.msra.mxu0 %v2057
      %2086 = vmatmul.f32.gmra.mxu0 %v2065
      %v2087 = vpop.f32.mrf.mxu0
      %v2088 = vadd.f32 0.0, %v2087
      %2089 = vmatmul.f32.gmra.mxu0 %v2068
      %v2090 = vpop.f32.mrf.mxu0
      %v2091 = vadd.f32 0.0, %v2090
      %2092 = vdwg.mxu0
      %2093 = vmatpush.msra.mxu0 0.0
      %2094 = vmatpush.msra.mxu0 0.0
      %2095 = vmatpush.msra.mxu0 0.0
      %2096 = vmatpush.msra.mxu0 0.0
      %2097 = vmatpush.msra.mxu0 0.0
      %2098 = vmatpush.msra.mxu0 0.0
      %2099 = vmatpush.msra.mxu0 0.0
      %2100 = vmatpush.msra.mxu0 0.0
      %2101 = vmatpush.msra.mxu0 0.0
      %2102 = vmatpush.msra.mxu0 0.0
      %2103 = vmatpush.msra.mxu0 0.0
      %2104 = vmatpush.msra.mxu0 0.0
      %2105 = vmatpush.msra.mxu0 0.0
      %2106 = vmatpush.msra.mxu0 0.0
      %2107 = vmatpush.msra.mxu0 %v2060
      %2108 = vmatpush.msra.mxu0 %v2058
      %2109 = vmatmul.f32.gmra.mxu0 %v2065
      %v2110 = vpop.f32.mrf.mxu0
      %v2111 = vadd.f32 0.0, %v2110
      %2112 = vmatmul.f32.gmra.mxu0 %v2068
      %v2113 = vpop.f32.mrf.mxu0
      %v2114 = vadd.f32 0.0, %v2113
      %2115 = vdwg.mxu0
      %v2116 = vadd.f32 %v2041, %v2088
      %v2117 = vadd.f32 %v2042, %v2111
      %v2118 = vadd.f32 %v2043, %v2091
      %v2119 = vadd.f32 %v2044, %v2114
      %2120 = vrot.lane.b32.xlu0 %v1540, 111
      %v2121 = vpop.permute.xlu0 %2120
      %2122 = vrot.lane.b32.xlu0 %v1542, 111
      %v2123 = vpop.permute.xlu0 %2122
      %2124 = vrot.lane.b32.xlu0 %v1541, 111
      %v2125 = vpop.permute.xlu0 %2124
      %2126 = vrot.lane.b32.xlu0 %v1543, 111
      %v2127 = vpop.permute.xlu0 %2126
      %v2128 = vsel %vm810, %v2121, %v2125
      %v2129 = vsel %vm810, %v2123, %v2127
      %v2130 = vsel %vm810, %v2125, %v2121
      %v2131 = vsel %vm810, %v2127, %v2123
      %v2132 = vmul.f32 %v2128, %v816
      %v2133 = vmul.f32 %v2130, %v817
      %v2134 = vmul.f32 %v2129, %v816
      %v2135 = vmul.f32 %v2131, %v817
      %s2136 = scalar_lea.vmem %s4, 272
      %v2137 = vld [vmem:[%s2136] sm:$0xff]
      %v2138 = vld [vmem:[%s2136 + $0x8] sm:$0xff]
      %v2140 = vsel %vm922, %v2137, 0
      %v2143 = vsel %vm922, %v2138, 0
      %2145 = vmatpush.msra.mxu0 0.0
      %2146 = vmatpush.msra.mxu0 0.0
      %2147 = vmatpush.msra.mxu0 0.0
      %2148 = vmatpush.msra.mxu0 0.0
      %2149 = vmatpush.msra.mxu0 0.0
      %2150 = vmatpush.msra.mxu0 0.0
      %2151 = vmatpush.msra.mxu0 0.0
      %2152 = vmatpush.msra.mxu0 0.0
      %2153 = vmatpush.msra.mxu0 0.0
      %2154 = vmatpush.msra.mxu0 0.0
      %2155 = vmatpush.msra.mxu0 0.0
      %2156 = vmatpush.msra.mxu0 0.0
      %2157 = vmatpush.msra.mxu0 0.0
      %2158 = vmatpush.msra.mxu0 0.0
      %2159 = vmatpush.msra.mxu0 %v2134
      %2160 = vmatpush.msra.mxu0 %v2132
      %2161 = vmatmul.f32.gmra.mxu0 %v2140
      %v2162 = vpop.f32.mrf.mxu0
      %v2163 = vadd.f32 0.0, %v2162
      %2164 = vmatmul.f32.gmra.mxu0 %v2143
      %v2165 = vpop.f32.mrf.mxu0
      %v2166 = vadd.f32 0.0, %v2165
      %2167 = vdwg.mxu0
      %2168 = vmatpush.msra.mxu0 0.0
      %2169 = vmatpush.msra.mxu0 0.0
      %2170 = vmatpush.msra.mxu0 0.0
      %2171 = vmatpush.msra.mxu0 0.0
      %2172 = vmatpush.msra.mxu0 0.0
      %2173 = vmatpush.msra.mxu0 0.0
      %2174 = vmatpush.msra.mxu0 0.0
      %2175 = vmatpush.msra.mxu0 0.0
      %2176 = vmatpush.msra.mxu0 0.0
      %2177 = vmatpush.msra.mxu0 0.0
      %2178 = vmatpush.msra.mxu0 0.0
      %2179 = vmatpush.msra.mxu0 0.0
      %2180 = vmatpush.msra.mxu0 0.0
      %2181 = vmatpush.msra.mxu0 0.0
      %2182 = vmatpush.msra.mxu0 %v2135
      %2183 = vmatpush.msra.mxu0 %v2133
      %2184 = vmatmul.f32.gmra.mxu0 %v2140
      %v2185 = vpop.f32.mrf.mxu0
      %v2186 = vadd.f32 0.0, %v2185
      %2187 = vmatmul.f32.gmra.mxu0 %v2143
      %v2188 = vpop.f32.mrf.mxu0
      %v2189 = vadd.f32 0.0, %v2188
      %2190 = vdwg.mxu0
      %v2191 = vadd.f32 %v2116, %v2163
      %v2192 = vadd.f32 %v2117, %v2186
      %v2193 = vadd.f32 %v2118, %v2166
      %v2194 = vadd.f32 %v2119, %v2189
      %v2195 = vadd.f32 %v2191, %v1532
      %v2196 = vadd.f32 %v2192, %v1533
      %v2197 = vadd.f32 %v2193, %v1534
      %v2198 = vadd.f32 %v2194, %v1535
      %v2199 = vmax.f32 %v2195, 0.0
      %v2200 = vmax.f32 %v2196, 0.0
      %v2201 = vmax.f32 %v2197, 0.0
      %v2202 = vmax.f32 %v2198, 0.0
      %2203 = vrot.lane.b32.xlu0 %v2199, 17
      %v2204 = vpop.permute.xlu0 %2203
      %2205 = vrot.lane.b32.xlu0 %v2201, 17
      %v2206 = vpop.permute.xlu0 %2205
      %2207 = vrot.lane.b32.xlu0 %v2200, 17
      %v2208 = vpop.permute.xlu0 %2207
      %2209 = vrot.lane.b32.xlu0 %v2202, 17
      %v2210 = vpop.permute.xlu0 %2209
      %v2211 = vsel %vm235, %v2204, %v2208
      %v2212 = vsel %vm235, %v2206, %v2210
      %v2213 = vsel %vm235, %v2208, %v2204
      %v2214 = vsel %vm235, %v2210, %v2206
      %v2215 = vmul.f32 %v2213, %v240
      %v2216 = vmul.f32 %v2211, %v241
      %v2217 = vmul.f32 %v2214, %v240
      %v2218 = vmul.f32 %v2212, %v241
      %s2219 = scalar_lea.vmem %s4, 288
      %v2220 = vld [vmem:[%s2219] sm:$0xff]
      %v2221 = vld [vmem:[%s2219 + $0x8] sm:$0xff]
      %2222 = vrot.lane.b32.xlu0 %v2199, 16
      %v2223 = vpop.permute.xlu0 %2222
      %2224 = vrot.lane.b32.xlu0 %v2201, 16
      %v2225 = vpop.permute.xlu0 %2224
      %2226 = vrot.lane.b32.xlu0 %v2200, 16
      %v2227 = vpop.permute.xlu0 %2226
      %2228 = vrot.lane.b32.xlu0 %v2202, 16
      %v2229 = vpop.permute.xlu0 %2228
      %v2230 = vsel %vm252, %v2223, %v2227
      %v2231 = vsel %vm252, %v2225, %v2229
      %v2232 = vsel %vm252, %v2227, %v2223
      %v2233 = vsel %vm252, %v2229, %v2225
      %v2234 = vmul.f32 %v2232, %v258
      %v2235 = vmul.f32 %v2230, %v259
      %v2236 = vmul.f32 %v2233, %v258
      %v2237 = vmul.f32 %v2231, %v259
      %s2238 = scalar_lea.vmem %s4, 304
      %v2239 = vld [vmem:[%s2238] sm:$0xff]
      %v2240 = vld [vmem:[%s2238 + $0x8] sm:$0xff]
      %v2242 = vsel %vm922, %v2239, 0
      %v2245 = vsel %vm922, %v2240, 0
      %2247 = vmatpush.msra.mxu0 0.0
      %2248 = vmatpush.msra.mxu0 0.0
      %2249 = vmatpush.msra.mxu0 0.0
      %2250 = vmatpush.msra.mxu0 0.0
      %2251 = vmatpush.msra.mxu0 0.0
      %2252 = vmatpush.msra.mxu0 0.0
      %2253 = vmatpush.msra.mxu0 0.0
      %2254 = vmatpush.msra.mxu0 0.0
      %2255 = vmatpush.msra.mxu0 0.0
      %2256 = vmatpush.msra.mxu0 0.0
      %2257 = vmatpush.msra.mxu0 0.0
      %2258 = vmatpush.msra.mxu0 0.0
      %2259 = vmatpush.msra.mxu0 0.0
      %2260 = vmatpush.msra.mxu0 0.0
      %2261 = vmatpush.msra.mxu0 %v2236
      %2262 = vmatpush.msra.mxu0 %v2234
      %2263 = vmatmul.f32.gmra.mxu0 %v2242
      %v2264 = vpop.f32.mrf.mxu0
      %v2265 = vadd.f32 0.0, %v2264
      %2266 = vmatmul.f32.gmra.mxu0 %v2245
      %v2267 = vpop.f32.mrf.mxu0
      %v2268 = vadd.f32 0.0, %v2267
      %2269 = vdwg.mxu0
      %2270 = vmatpush.msra.mxu0 0.0
      %2271 = vmatpush.msra.mxu0 0.0
      %2272 = vmatpush.msra.mxu0 0.0
      %2273 = vmatpush.msra.mxu0 0.0
      %2274 = vmatpush.msra.mxu0 0.0
      %2275 = vmatpush.msra.mxu0 0.0
      %2276 = vmatpush.msra.mxu0 0.0
      %2277 = vmatpush.msra.mxu0 0.0
      %2278 = vmatpush.msra.mxu0 0.0
      %2279 = vmatpush.msra.mxu0 0.0
      %2280 = vmatpush.msra.mxu0 0.0
      %2281 = vmatpush.msra.mxu0 0.0
      %2282 = vmatpush.msra.mxu0 0.0
      %2283 = vmatpush.msra.mxu0 0.0
      %2284 = vmatpush.msra.mxu0 %v2237
      %2285 = vmatpush.msra.mxu0 %v2235
      %2286 = vmatmul.f32.gmra.mxu0 %v2242
      %v2287 = vpop.f32.mrf.mxu0
      %v2288 = vadd.f32 0.0, %v2287
      %2289 = vmatmul.f32.gmra.mxu0 %v2245
      %v2290 = vpop.f32.mrf.mxu0
      %v2291 = vadd.f32 0.0, %v2290
      %2292 = vdwg.mxu0
      %v2294 = vsel %vm922, %v2220, 0
      %v2297 = vsel %vm922, %v2221, 0
      %2299 = vmatpush.msra.mxu0 0.0
      %2300 = vmatpush.msra.mxu0 0.0
      %2301 = vmatpush.msra.mxu0 0.0
      %2302 = vmatpush.msra.mxu0 0.0
      %2303 = vmatpush.msra.mxu0 0.0
      %2304 = vmatpush.msra.mxu0 0.0
      %2305 = vmatpush.msra.mxu0 0.0
      %2306 = vmatpush.msra.mxu0 0.0
      %2307 = vmatpush.msra.mxu0 0.0
      %2308 = vmatpush.msra.mxu0 0.0
      %2309 = vmatpush.msra.mxu0 0.0
      %2310 = vmatpush.msra.mxu0 0.0
      %2311 = vmatpush.msra.mxu0 0.0
      %2312 = vmatpush.msra.mxu0 0.0
      %2313 = vmatpush.msra.mxu0 %v2217
      %2314 = vmatpush.msra.mxu0 %v2215
      %2315 = vmatmul.f32.gmra.mxu0 %v2294
      %v2316 = vpop.f32.mrf.mxu0
      %v2317 = vadd.f32 %v2265, %v2316
      %2318 = vmatmul.f32.gmra.mxu0 %v2297
      %v2319 = vpop.f32.mrf.mxu0
      %v2320 = vadd.f32 %v2268, %v2319
      %2321 = vdwg.mxu0
      %2322 = vmatpush.msra.mxu0 0.0
      %2323 = vmatpush.msra.mxu0 0.0
      %2324 = vmatpush.msra.mxu0 0.0
      %2325 = vmatpush.msra.mxu0 0.0
      %2326 = vmatpush.msra.mxu0 0.0
      %2327 = vmatpush.msra.mxu0 0.0
      %2328 = vmatpush.msra.mxu0 0.0
      %2329 = vmatpush.msra.mxu0 0.0
      %2330 = vmatpush.msra.mxu0 0.0
      %2331 = vmatpush.msra.mxu0 0.0
      %2332 = vmatpush.msra.mxu0 0.0
      %2333 = vmatpush.msra.mxu0 0.0
      %2334 = vmatpush.msra.mxu0 0.0
      %2335 = vmatpush.msra.mxu0 0.0
      %2336 = vmatpush.msra.mxu0 %v2218
      %2337 = vmatpush.msra.mxu0 %v2216
      %2338 = vmatmul.f32.gmra.mxu0 %v2294
      %v2339 = vpop.f32.mrf.mxu0
      %v2340 = vadd.f32 %v2288, %v2339
      %2341 = vmatmul.f32.gmra.mxu0 %v2297
      %v2342 = vpop.f32.mrf.mxu0
      %v2343 = vadd.f32 %v2291, %v2342
      %2344 = vdwg.mxu0
      %2345 = vrot.lane.b32.xlu0 %v2199, 15
      %v2346 = vpop.permute.xlu0 %2345
      %2347 = vrot.lane.b32.xlu0 %v2201, 15
      %v2348 = vpop.permute.xlu0 %2347
      %2349 = vrot.lane.b32.xlu0 %v2200, 15
      %v2350 = vpop.permute.xlu0 %2349
      %2351 = vrot.lane.b32.xlu0 %v2202, 15
      %v2352 = vpop.permute.xlu0 %2351
      %v2353 = vsel %vm376, %v2346, %v2350
      %v2354 = vsel %vm376, %v2348, %v2352
      %v2355 = vsel %vm376, %v2350, %v2346
      %v2356 = vsel %vm376, %v2352, %v2348
      %v2357 = vmul.f32 %v2355, %v382
      %v2358 = vmul.f32 %v2353, %v383
      %v2359 = vmul.f32 %v2356, %v382
      %v2360 = vmul.f32 %v2354, %v383
      %s2361 = scalar_lea.vmem %s4, 320
      %v2362 = vld [vmem:[%s2361] sm:$0xff]
      %v2363 = vld [vmem:[%s2361 + $0x8] sm:$0xff]
      %v2365 = vsel %vm922, %v2362, 0
      %v2368 = vsel %vm922, %v2363, 0
      %2370 = vmatpush.msra.mxu0 0.0
      %2371 = vmatpush.msra.mxu0 0.0
      %2372 = vmatpush.msra.mxu0 0.0
      %2373 = vmatpush.msra.mxu0 0.0
      %2374 = vmatpush.msra.mxu0 0.0
      %2375 = vmatpush.msra.mxu0 0.0
      %2376 = vmatpush.msra.mxu0 0.0
      %2377 = vmatpush.msra.mxu0 0.0
      %2378 = vmatpush.msra.mxu0 0.0
      %2379 = vmatpush.msra.mxu0 0.0
      %2380 = vmatpush.msra.mxu0 0.0
      %2381 = vmatpush.msra.mxu0 0.0
      %2382 = vmatpush.msra.mxu0 0.0
      %2383 = vmatpush.msra.mxu0 0.0
      %2384 = vmatpush.msra.mxu0 %v2359
      %2385 = vmatpush.msra.mxu0 %v2357
      %2386 = vmatmul.f32.gmra.mxu0 %v2365
      %v2387 = vpop.f32.mrf.mxu0
      %v2388 = vadd.f32 0.0, %v2387
      %2389 = vmatmul.f32.gmra.mxu0 %v2368
      %v2390 = vpop.f32.mrf.mxu0
      %v2391 = vadd.f32 0.0, %v2390
      %2392 = vdwg.mxu0
      %2393 = vmatpush.msra.mxu0 0.0
      %2394 = vmatpush.msra.mxu0 0.0
      %2395 = vmatpush.msra.mxu0 0.0
      %2396 = vmatpush.msra.mxu0 0.0
      %2397 = vmatpush.msra.mxu0 0.0
      %2398 = vmatpush.msra.mxu0 0.0
      %2399 = vmatpush.msra.mxu0 0.0
      %2400 = vmatpush.msra.mxu0 0.0
      %2401 = vmatpush.msra.mxu0 0.0
      %2402 = vmatpush.msra.mxu0 0.0
      %2403 = vmatpush.msra.mxu0 0.0
      %2404 = vmatpush.msra.mxu0 0.0
      %2405 = vmatpush.msra.mxu0 0.0
      %2406 = vmatpush.msra.mxu0 0.0
      %2407 = vmatpush.msra.mxu0 %v2360
      %2408 = vmatpush.msra.mxu0 %v2358
      %2409 = vmatmul.f32.gmra.mxu0 %v2365
      %v2410 = vpop.f32.mrf.mxu0
      %v2411 = vadd.f32 0.0, %v2410
      %2412 = vmatmul.f32.gmra.mxu0 %v2368
      %v2413 = vpop.f32.mrf.mxu0
      %v2414 = vadd.f32 0.0, %v2413
      %2415 = vdwg.mxu0
      %v2416 = vadd.f32 %v2317, %v2388
      %v2417 = vadd.f32 %v2340, %v2411
      %v2418 = vadd.f32 %v2320, %v2391
      %v2419 = vadd.f32 %v2343, %v2414
      %2420 = vrot.lane.b32.xlu0 %v2199, 1
      %v2421 = vpop.permute.xlu0 %2420
      %2422 = vrot.lane.b32.xlu0 %v2201, 1
      %v2423 = vpop.permute.xlu0 %2422
      %2424 = vrot.lane.b32.xlu0 %v2200, 1
      %v2425 = vpop.permute.xlu0 %2424
      %2426 = vrot.lane.b32.xlu0 %v2202, 1
      %v2427 = vpop.permute.xlu0 %2426
      %v2428 = vsel %vm451, %v2421, %v2425
      %v2429 = vsel %vm451, %v2423, %v2427
      %v2430 = vsel %vm451, %v2425, %v2421
      %v2431 = vsel %vm451, %v2427, %v2423
      %v2432 = vmul.f32 %v2430, %v457
      %v2433 = vmul.f32 %v2428, %v458
      %v2434 = vmul.f32 %v2431, %v457
      %v2435 = vmul.f32 %v2429, %v458
      %s2436 = scalar_lea.vmem %s4, 336
      %v2437 = vld [vmem:[%s2436] sm:$0xff]
      %v2438 = vld [vmem:[%s2436 + $0x8] sm:$0xff]
      %v2440 = vsel %vm922, %v2437, 0
      %v2443 = vsel %vm922, %v2438, 0
      %2445 = vmatpush.msra.mxu0 0.0
      %2446 = vmatpush.msra.mxu0 0.0
      %2447 = vmatpush.msra.mxu0 0.0
      %2448 = vmatpush.msra.mxu0 0.0
      %2449 = vmatpush.msra.mxu0 0.0
      %2450 = vmatpush.msra.mxu0 0.0
      %2451 = vmatpush.msra.mxu0 0.0
      %2452 = vmatpush.msra.mxu0 0.0
      %2453 = vmatpush.msra.mxu0 0.0
      %2454 = vmatpush.msra.mxu0 0.0
      %2455 = vmatpush.msra.mxu0 0.0
      %2456 = vmatpush.msra.mxu0 0.0
      %2457 = vmatpush.msra.mxu0 0.0
      %2458 = vmatpush.msra.mxu0 0.0
      %2459 = vmatpush.msra.mxu0 %v2434
      %2460 = vmatpush.msra.mxu0 %v2432
      %2461 = vmatmul.f32.gmra.mxu0 %v2440
      %v2462 = vpop.f32.mrf.mxu0
      %v2463 = vadd.f32 0.0, %v2462
      %2464 = vmatmul.f32.gmra.mxu0 %v2443
      %v2465 = vpop.f32.mrf.mxu0
      %v2466 = vadd.f32 0.0, %v2465
      %2467 = vdwg.mxu0
      %2468 = vmatpush.msra.mxu0 0.0
      %2469 = vmatpush.msra.mxu0 0.0
      %2470 = vmatpush.msra.mxu0 0.0
      %2471 = vmatpush.msra.mxu0 0.0
      %2472 = vmatpush.msra.mxu0 0.0
      %2473 = vmatpush.msra.mxu0 0.0
      %2474 = vmatpush.msra.mxu0 0.0
      %2475 = vmatpush.msra.mxu0 0.0
      %2476 = vmatpush.msra.mxu0 0.0
      %2477 = vmatpush.msra.mxu0 0.0
      %2478 = vmatpush.msra.mxu0 0.0
      %2479 = vmatpush.msra.mxu0 0.0
      %2480 = vmatpush.msra.mxu0 0.0
      %2481 = vmatpush.msra.mxu0 0.0
      %2482 = vmatpush.msra.mxu0 %v2435
      %2483 = vmatpush.msra.mxu0 %v2433
      %2484 = vmatmul.f32.gmra.mxu0 %v2440
      %v2485 = vpop.f32.mrf.mxu0
      %v2486 = vadd.f32 0.0, %v2485
      %2487 = vmatmul.f32.gmra.mxu0 %v2443
      %v2488 = vpop.f32.mrf.mxu0
      %v2489 = vadd.f32 0.0, %v2488
      %2490 = vdwg.mxu0
      %v2491 = vadd.f32 %v2416, %v2463
      %v2492 = vadd.f32 %v2417, %v2486
      %v2493 = vadd.f32 %v2418, %v2466
      %v2494 = vadd.f32 %v2419, %v2489
      %s2495 = scalar_lea.vmem %s4, 352
      %v2496 = vld [vmem:[%s2495] sm:$0xff]
      %v2497 = vld [vmem:[%s2495 + $0x8] sm:$0xff]
      %v2499 = vsel %vm922, %v2496, 0
      %v2502 = vsel %vm922, %v2497, 0
      %2504 = vmatpush.msra.mxu0 0.0
      %2505 = vmatpush.msra.mxu0 0.0
      %2506 = vmatpush.msra.mxu0 0.0
      %2507 = vmatpush.msra.mxu0 0.0
      %2508 = vmatpush.msra.mxu0 0.0
      %2509 = vmatpush.msra.mxu0 0.0
      %2510 = vmatpush.msra.mxu0 0.0
      %2511 = vmatpush.msra.mxu0 0.0
      %2512 = vmatpush.msra.mxu0 0.0
      %2513 = vmatpush.msra.mxu0 0.0
      %2514 = vmatpush.msra.mxu0 0.0
      %2515 = vmatpush.msra.mxu0 0.0
      %2516 = vmatpush.msra.mxu0 0.0
      %2517 = vmatpush.msra.mxu0 0.0
      %2518 = vmatpush.msra.mxu0 %v2201
      %2519 = vmatpush.msra.mxu0 %v2199
      %2520 = vmatmul.f32.gmra.mxu0 %v2499
      %v2521 = vpop.f32.mrf.mxu0
      %v2522 = vadd.f32 0.0, %v2521
      %2523 = vmatmul.f32.gmra.mxu0 %v2502
      %v2524 = vpop.f32.mrf.mxu0
      %v2525 = vadd.f32 0.0, %v2524
      %2526 = vdwg.mxu0
      %2527 = vmatpush.msra.mxu0 0.0
      %2528 = vmatpush.msra.mxu0 0.0
      %2529 = vmatpush.msra.mxu0 0.0
      %2530 = vmatpush.msra.mxu0 0.0
      %2531 = vmatpush.msra.mxu0 0.0
      %2532 = vmatpush.msra.mxu0 0.0
      %2533 = vmatpush.msra.mxu0 0.0
      %2534 = vmatpush.msra.mxu0 0.0
      %2535 = vmatpush.msra.mxu0 0.0
      %2536 = vmatpush.msra.mxu0 0.0
      %2537 = vmatpush.msra.mxu0 0.0
      %2538 = vmatpush.msra.mxu0 0.0
      %2539 = vmatpush.msra.mxu0 0.0
      %2540 = vmatpush.msra.mxu0 0.0
      %2541 = vmatpush.msra.mxu0 %v2202
      %2542 = vmatpush.msra.mxu0 %v2200
      %2543 = vmatmul.f32.gmra.mxu0 %v2499
      %v2544 = vpop.f32.mrf.mxu0
      %v2545 = vadd.f32 0.0, %v2544
      %2546 = vmatmul.f32.gmra.mxu0 %v2502
      %v2547 = vpop.f32.mrf.mxu0
      %v2548 = vadd.f32 0.0, %v2547
      %2549 = vdwg.mxu0
      %v2550 = vadd.f32 %v2491, %v2522
      %v2551 = vadd.f32 %v2492, %v2545
      %v2552 = vadd.f32 %v2493, %v2525
      %v2553 = vadd.f32 %v2494, %v2548
      %2554 = vrot.lane.b32.xlu0 %v2199, 127
      %v2555 = vpop.permute.xlu0 %2554
      %2556 = vrot.lane.b32.xlu0 %v2201, 127
      %v2557 = vpop.permute.xlu0 %2556
      %2558 = vrot.lane.b32.xlu0 %v2200, 127
      %v2559 = vpop.permute.xlu0 %2558
      %2560 = vrot.lane.b32.xlu0 %v2202, 127
      %v2561 = vpop.permute.xlu0 %2560
      %v2562 = vsel %vm585, %v2555, %v2559
      %v2563 = vsel %vm585, %v2557, %v2561
      %v2564 = vsel %vm585, %v2559, %v2555
      %v2565 = vsel %vm585, %v2561, %v2557
      %v2566 = vmul.f32 %v2562, %v591
      %v2567 = vmul.f32 %v2564, %v592
      %v2568 = vmul.f32 %v2563, %v591
      %v2569 = vmul.f32 %v2565, %v592
      %s2570 = scalar_lea.vmem %s4, 368
      %v2571 = vld [vmem:[%s2570] sm:$0xff]
      %v2572 = vld [vmem:[%s2570 + $0x8] sm:$0xff]
      %v2574 = vsel %vm922, %v2571, 0
      %v2577 = vsel %vm922, %v2572, 0
      %2579 = vmatpush.msra.mxu0 0.0
      %2580 = vmatpush.msra.mxu0 0.0
      %2581 = vmatpush.msra.mxu0 0.0
      %2582 = vmatpush.msra.mxu0 0.0
      %2583 = vmatpush.msra.mxu0 0.0
      %2584 = vmatpush.msra.mxu0 0.0
      %2585 = vmatpush.msra.mxu0 0.0
      %2586 = vmatpush.msra.mxu0 0.0
      %2587 = vmatpush.msra.mxu0 0.0
      %2588 = vmatpush.msra.mxu0 0.0
      %2589 = vmatpush.msra.mxu0 0.0
      %2590 = vmatpush.msra.mxu0 0.0
      %2591 = vmatpush.msra.mxu0 0.0
      %2592 = vmatpush.msra.mxu0 0.0
      %2593 = vmatpush.msra.mxu0 %v2568
      %2594 = vmatpush.msra.mxu0 %v2566
      %2595 = vmatmul.f32.gmra.mxu0 %v2574
      %v2596 = vpop.f32.mrf.mxu0
      %v2597 = vadd.f32 0.0, %v2596
      %2598 = vmatmul.f32.gmra.mxu0 %v2577
      %v2599 = vpop.f32.mrf.mxu0
      %v2600 = vadd.f32 0.0, %v2599
      %2601 = vdwg.mxu0
      %2602 = vmatpush.msra.mxu0 0.0
      %2603 = vmatpush.msra.mxu0 0.0
      %2604 = vmatpush.msra.mxu0 0.0
      %2605 = vmatpush.msra.mxu0 0.0
      %2606 = vmatpush.msra.mxu0 0.0
      %2607 = vmatpush.msra.mxu0 0.0
      %2608 = vmatpush.msra.mxu0 0.0
      %2609 = vmatpush.msra.mxu0 0.0
      %2610 = vmatpush.msra.mxu0 0.0
      %2611 = vmatpush.msra.mxu0 0.0
      %2612 = vmatpush.msra.mxu0 0.0
      %2613 = vmatpush.msra.mxu0 0.0
      %2614 = vmatpush.msra.mxu0 0.0
      %2615 = vmatpush.msra.mxu0 0.0
      %2616 = vmatpush.msra.mxu0 %v2569
      %2617 = vmatpush.msra.mxu0 %v2567
      %2618 = vmatmul.f32.gmra.mxu0 %v2574
      %v2619 = vpop.f32.mrf.mxu0
      %v2620 = vadd.f32 0.0, %v2619
      %2621 = vmatmul.f32.gmra.mxu0 %v2577
      %v2622 = vpop.f32.mrf.mxu0
      %v2623 = vadd.f32 0.0, %v2622
      %2624 = vdwg.mxu0
      %v2625 = vadd.f32 %v2550, %v2597
      %v2626 = vadd.f32 %v2551, %v2620
      %v2627 = vadd.f32 %v2552, %v2600
      %v2628 = vadd.f32 %v2553, %v2623
      %2629 = vrot.lane.b32.xlu0 %v2199, 113
      %v2630 = vpop.permute.xlu0 %2629
      %2631 = vrot.lane.b32.xlu0 %v2201, 113
      %v2632 = vpop.permute.xlu0 %2631
      %2633 = vrot.lane.b32.xlu0 %v2200, 113
      %v2634 = vpop.permute.xlu0 %2633
      %2635 = vrot.lane.b32.xlu0 %v2202, 113
      %v2636 = vpop.permute.xlu0 %2635
      %v2637 = vsel %vm660, %v2630, %v2634
      %v2638 = vsel %vm660, %v2632, %v2636
      %v2639 = vsel %vm660, %v2634, %v2630
      %v2640 = vsel %vm660, %v2636, %v2632
      %v2641 = vmul.f32 %v2637, %v666
      %v2642 = vmul.f32 %v2639, %v667
      %v2643 = vmul.f32 %v2638, %v666
      %v2644 = vmul.f32 %v2640, %v667
      %s2645 = scalar_lea.vmem %s4, 384
      %v2646 = vld [vmem:[%s2645] sm:$0xff]
      %v2647 = vld [vmem:[%s2645 + $0x8] sm:$0xff]
      %v2649 = vsel %vm922, %v2646, 0
      %v2652 = vsel %vm922, %v2647, 0
      %2654 = vmatpush.msra.mxu0 0.0
      %2655 = vmatpush.msra.mxu0 0.0
      %2656 = vmatpush.msra.mxu0 0.0
      %2657 = vmatpush.msra.mxu0 0.0
      %2658 = vmatpush.msra.mxu0 0.0
      %2659 = vmatpush.msra.mxu0 0.0
      %2660 = vmatpush.msra.mxu0 0.0
      %2661 = vmatpush.msra.mxu0 0.0
      %2662 = vmatpush.msra.mxu0 0.0
      %2663 = vmatpush.msra.mxu0 0.0
      %2664 = vmatpush.msra.mxu0 0.0
      %2665 = vmatpush.msra.mxu0 0.0
      %2666 = vmatpush.msra.mxu0 0.0
      %2667 = vmatpush.msra.mxu0 0.0
      %2668 = vmatpush.msra.mxu0 %v2643
      %2669 = vmatpush.msra.mxu0 %v2641
      %2670 = vmatmul.f32.gmra.mxu0 %v2649
      %v2671 = vpop.f32.mrf.mxu0
      %v2672 = vadd.f32 0.0, %v2671
      %2673 = vmatmul.f32.gmra.mxu0 %v2652
      %v2674 = vpop.f32.mrf.mxu0
      %v2675 = vadd.f32 0.0, %v2674
      %2676 = vdwg.mxu0
      %2677 = vmatpush.msra.mxu0 0.0
      %2678 = vmatpush.msra.mxu0 0.0
      %2679 = vmatpush.msra.mxu0 0.0
      %2680 = vmatpush.msra.mxu0 0.0
      %2681 = vmatpush.msra.mxu0 0.0
      %2682 = vmatpush.msra.mxu0 0.0
      %2683 = vmatpush.msra.mxu0 0.0
      %2684 = vmatpush.msra.mxu0 0.0
      %2685 = vmatpush.msra.mxu0 0.0
      %2686 = vmatpush.msra.mxu0 0.0
      %2687 = vmatpush.msra.mxu0 0.0
      %2688 = vmatpush.msra.mxu0 0.0
      %2689 = vmatpush.msra.mxu0 0.0
      %2690 = vmatpush.msra.mxu0 0.0
      %2691 = vmatpush.msra.mxu0 %v2644
      %2692 = vmatpush.msra.mxu0 %v2642
      %2693 = vmatmul.f32.gmra.mxu0 %v2649
      %v2694 = vpop.f32.mrf.mxu0
      %v2695 = vadd.f32 0.0, %v2694
      %2696 = vmatmul.f32.gmra.mxu0 %v2652
      %v2697 = vpop.f32.mrf.mxu0
      %v2698 = vadd.f32 0.0, %v2697
      %2699 = vdwg.mxu0
      %v2700 = vadd.f32 %v2625, %v2672
      %v2701 = vadd.f32 %v2626, %v2695
      %v2702 = vadd.f32 %v2627, %v2675
      %v2703 = vadd.f32 %v2628, %v2698
      %2704 = vrot.lane.b32.xlu0 %v2199, 112
      %v2705 = vpop.permute.xlu0 %2704
      %2706 = vrot.lane.b32.xlu0 %v2201, 112
      %v2707 = vpop.permute.xlu0 %2706
      %2708 = vrot.lane.b32.xlu0 %v2200, 112
      %v2709 = vpop.permute.xlu0 %2708
      %2710 = vrot.lane.b32.xlu0 %v2202, 112
      %v2711 = vpop.permute.xlu0 %2710
      %v2712 = vsel %vm735, %v2705, %v2709
      %v2713 = vsel %vm735, %v2707, %v2711
      %v2714 = vsel %vm735, %v2709, %v2705
      %v2715 = vsel %vm735, %v2711, %v2707
      %v2716 = vmul.f32 %v2712, %v741
      %v2717 = vmul.f32 %v2714, %v742
      %v2718 = vmul.f32 %v2713, %v741
      %v2719 = vmul.f32 %v2715, %v742
      %s2720 = scalar_lea.vmem %s4, 400
      %v2721 = vld [vmem:[%s2720] sm:$0xff]
      %v2722 = vld [vmem:[%s2720 + $0x8] sm:$0xff]
      %v2724 = vsel %vm922, %v2721, 0
      %v2727 = vsel %vm922, %v2722, 0
      %2729 = vmatpush.msra.mxu0 0.0
      %2730 = vmatpush.msra.mxu0 0.0
      %2731 = vmatpush.msra.mxu0 0.0
      %2732 = vmatpush.msra.mxu0 0.0
      %2733 = vmatpush.msra.mxu0 0.0
      %2734 = vmatpush.msra.mxu0 0.0
      %2735 = vmatpush.msra.mxu0 0.0
      %2736 = vmatpush.msra.mxu0 0.0
      %2737 = vmatpush.msra.mxu0 0.0
      %2738 = vmatpush.msra.mxu0 0.0
      %2739 = vmatpush.msra.mxu0 0.0
      %2740 = vmatpush.msra.mxu0 0.0
      %2741 = vmatpush.msra.mxu0 0.0
      %2742 = vmatpush.msra.mxu0 0.0
      %2743 = vmatpush.msra.mxu0 %v2718
      %2744 = vmatpush.msra.mxu0 %v2716
      %2745 = vmatmul.f32.gmra.mxu0 %v2724
      %v2746 = vpop.f32.mrf.mxu0
      %v2747 = vadd.f32 0.0, %v2746
      %2748 = vmatmul.f32.gmra.mxu0 %v2727
      %v2749 = vpop.f32.mrf.mxu0
      %v2750 = vadd.f32 0.0, %v2749
      %2751 = vdwg.mxu0
      %2752 = vmatpush.msra.mxu0 0.0
      %2753 = vmatpush.msra.mxu0 0.0
      %2754 = vmatpush.msra.mxu0 0.0
      %2755 = vmatpush.msra.mxu0 0.0
      %2756 = vmatpush.msra.mxu0 0.0
      %2757 = vmatpush.msra.mxu0 0.0
      %2758 = vmatpush.msra.mxu0 0.0
      %2759 = vmatpush.msra.mxu0 0.0
      %2760 = vmatpush.msra.mxu0 0.0
      %2761 = vmatpush.msra.mxu0 0.0
      %2762 = vmatpush.msra.mxu0 0.0
      %2763 = vmatpush.msra.mxu0 0.0
      %2764 = vmatpush.msra.mxu0 0.0
      %2765 = vmatpush.msra.mxu0 0.0
      %2766 = vmatpush.msra.mxu0 %v2719
      %2767 = vmatpush.msra.mxu0 %v2717
      %2768 = vmatmul.f32.gmra.mxu0 %v2724
      %v2769 = vpop.f32.mrf.mxu0
      %v2770 = vadd.f32 0.0, %v2769
      %2771 = vmatmul.f32.gmra.mxu0 %v2727
      %v2772 = vpop.f32.mrf.mxu0
      %v2773 = vadd.f32 0.0, %v2772
      %2774 = vdwg.mxu0
      %v2775 = vadd.f32 %v2700, %v2747
      %v2776 = vadd.f32 %v2701, %v2770
      %v2777 = vadd.f32 %v2702, %v2750
      %v2778 = vadd.f32 %v2703, %v2773
      %2779 = vrot.lane.b32.xlu0 %v2199, 111
      %v2780 = vpop.permute.xlu0 %2779
      %2781 = vrot.lane.b32.xlu0 %v2201, 111
      %v2782 = vpop.permute.xlu0 %2781
      %2783 = vrot.lane.b32.xlu0 %v2200, 111
      %v2784 = vpop.permute.xlu0 %2783
      %2785 = vrot.lane.b32.xlu0 %v2202, 111
      %v2786 = vpop.permute.xlu0 %2785
      %v2787 = vsel %vm810, %v2780, %v2784
      %v2788 = vsel %vm810, %v2782, %v2786
      %v2789 = vsel %vm810, %v2784, %v2780
      %v2790 = vsel %vm810, %v2786, %v2782
      %v2791 = vmul.f32 %v2787, %v816
      %v2792 = vmul.f32 %v2789, %v817
      %v2793 = vmul.f32 %v2788, %v816
      %v2794 = vmul.f32 %v2790, %v817
      %s2795 = scalar_lea.vmem %s4, 416
      %v2796 = vld [vmem:[%s2795] sm:$0xff]
      %v2797 = vld [vmem:[%s2795 + $0x8] sm:$0xff]
      %v2799 = vsel %vm922, %v2796, 0
      %v2802 = vsel %vm922, %v2797, 0
      %2804 = vmatpush.msra.mxu0 0.0
      %2805 = vmatpush.msra.mxu0 0.0
      %2806 = vmatpush.msra.mxu0 0.0
      %2807 = vmatpush.msra.mxu0 0.0
      %2808 = vmatpush.msra.mxu0 0.0
      %2809 = vmatpush.msra.mxu0 0.0
      %2810 = vmatpush.msra.mxu0 0.0
      %2811 = vmatpush.msra.mxu0 0.0
      %2812 = vmatpush.msra.mxu0 0.0
      %2813 = vmatpush.msra.mxu0 0.0
      %2814 = vmatpush.msra.mxu0 0.0
      %2815 = vmatpush.msra.mxu0 0.0
      %2816 = vmatpush.msra.mxu0 0.0
      %2817 = vmatpush.msra.mxu0 0.0
      %2818 = vmatpush.msra.mxu0 %v2793
      %2819 = vmatpush.msra.mxu0 %v2791
      %2820 = vmatmul.f32.gmra.mxu0 %v2799
      %v2821 = vpop.f32.mrf.mxu0
      %v2822 = vadd.f32 0.0, %v2821
      %2823 = vmatmul.f32.gmra.mxu0 %v2802
      %v2824 = vpop.f32.mrf.mxu0
      %v2825 = vadd.f32 0.0, %v2824
      %2826 = vdwg.mxu0
      %2827 = vmatpush.msra.mxu0 0.0
      %2828 = vmatpush.msra.mxu0 0.0
      %2829 = vmatpush.msra.mxu0 0.0
      %2830 = vmatpush.msra.mxu0 0.0
      %2831 = vmatpush.msra.mxu0 0.0
      %2832 = vmatpush.msra.mxu0 0.0
      %2833 = vmatpush.msra.mxu0 0.0
      %2834 = vmatpush.msra.mxu0 0.0
      %2835 = vmatpush.msra.mxu0 0.0
      %2836 = vmatpush.msra.mxu0 0.0
      %2837 = vmatpush.msra.mxu0 0.0
      %2838 = vmatpush.msra.mxu0 0.0
      %2839 = vmatpush.msra.mxu0 0.0
      %2840 = vmatpush.msra.mxu0 0.0
      %2841 = vmatpush.msra.mxu0 %v2794
      %2842 = vmatpush.msra.mxu0 %v2792
      %2843 = vmatmul.f32.gmra.mxu0 %v2799
      %v2844 = vpop.f32.mrf.mxu0
      %v2845 = vadd.f32 0.0, %v2844
      %2846 = vmatmul.f32.gmra.mxu0 %v2802
      %v2847 = vpop.f32.mrf.mxu0
      %v2848 = vadd.f32 0.0, %v2847
      %2849 = vdwg.mxu0
      %v2850 = vadd.f32 %v2775, %v2822
      %v2851 = vadd.f32 %v2776, %v2845
      %v2852 = vadd.f32 %v2777, %v2825
      %v2853 = vadd.f32 %v2778, %v2848
      %v2854 = vadd.f32 %v2850, %v2191
      %v2855 = vadd.f32 %v2851, %v2192
      %v2856 = vadd.f32 %v2852, %v2193
      %v2857 = vadd.f32 %v2853, %v2194
      %v2858 = vmax.f32 %v2854, 0.0
      %v2859 = vmax.f32 %v2855, 0.0
      %v2860 = vmax.f32 %v2856, 0.0
      %v2861 = vmax.f32 %v2857, 0.0
      %v2862 = vld [vmem:[%s2] sm:$0x3]
      %v2864 = vperm.slane %v2862, 0
      %v2865 = vperm.slane %v2862, 1
      %v2868 = vmul.f32 %v2858, %v2864
      %v2869 = vmul.f32 %v2859, %v2865
      %v2870 = vmul.f32 %v2860, %v2864
      %v2871 = vmul.f32 %v2861, %v2865
      %v2872 = vadd.f32 %v2868, %v2869
      %2873 = vadd.xlane.f32.xlu0 %v2872
      %v2874 = vpop.xlane.xlu0 %2873
      %v2875 = vadd.f32 %v2870, %v2871
      %2876 = vadd.xlane.f32.xlu0 %v2875
      %v2877 = vpop.xlane.xlu0 %2876
      %vm2878 = vcmask 7168
      %2879 = vst.msk [vmem:[%s226] sm:$0xff] %vm2878, %v2874
      %2880 = vst.msk [vmem:[%s226 + $0x8] sm:$0xff] %vm2878, %v2877
      %p2881 = scmp.lt.s32.totalorder %s16, 1
      %s2882 = scalar_select %p2881, %s16, 1
      %s2883 = smul.addr %s2882, 2
      %s2884 = smul.addr %s2883, 8
      %s2885 = scalar_lea.vmem %s5, %s2884
      // Predicated region
      $region41: #{tpu_custom_call.1} parent=39 // pred_check
        %p2886 = pneg %p144
      $region42: #{tpu_custom_call.1} parent=39 // pred_check_branch
        %2888 = sbr.rel (%p2886) target = $region44
      $region43: #{tpu_custom_call.1} parent=39 // pred_region
        _
      $region44: #{tpu_custom_call.1} parent=39 // pred_fallthru
        _
    $region40: #{tpu_custom_call.1} parent=5 // pred_fallthru
      _
    %p2889 = scmp.le.s32.totalorder 2, %s11
    // Predicated region
    $region45: #{tpu_custom_call.1} parent=5 // pred_check
      %p2890 = pneg %p2889
    $region46: #{tpu_custom_call.1} parent=5 // pred_check_branch
      %2892 = sbr.rel (%p2890) target = $region48
    $region47: #{tpu_custom_call.1} parent=5 // pred_region
      %s2893 = ssub.s32 %s11, 2
      // Predicated region
      $region49: #{tpu_custom_call.1} parent=47 // pred_check
        %p2894 = pneg %p150
      $region50: #{tpu_custom_call.1} parent=47 // pred_check_branch
        %2896 = sbr.rel (%p2894) target = $region52
      $region51: #{tpu_custom_call.1} parent=47 // pred_region
        %p2897 = scmp.lt.s32.totalorder %s17, 1
        %s2898 = scalar_select %p2897, %s17, 1
        %s2899 = smul.addr %s2898, 2
        %s2900 = smul.addr %s2899, 8
        %s2901 = scalar_lea.vmem %s5, %s2900
      $region52: #{tpu_custom_call.1} parent=47 // pred_fallthru
        _
    $region48: #{tpu_custom_call.1} parent=5 // pred_fallthru
      _
  $region6: #{tpu_custom_call.1} parent=0 // loop_footer
    %s15 = sadd.s32 1, %s11
  $region7: #{tpu_custom_call.1} parent=0 // loop_footer_branch
    %10 = sbr.rel target = $region3
  $region8: #{tpu_custom_call.1} parent=0 // loop_exit
    _

</llo_original>
